<compile_context>
chip_gen: v7x
topology: tpu7x:2x2x1
jax: 0.10.0
libtpu: 0.0.40
codegen_flags: <defaults>
</compile_context>

<pallas_src>
import math
from functools import partial

import numpy as np
import jax
import jax.numpy as jnp
from jax.experimental import pallas as pl
from jax.experimental.pallas import tpu as pltpu

LN_EPS = 1e-12  # HF Roberta/LiLT LayerNorm eps


# ----------------------------- in-kernel helpers -----------------------------

def _gelu(x):
    # exact (erf-based) GELU, matching HF "gelu"
    return 0.5 * x * (1.0 + jax.lax.erf(x * (1.0 / math.sqrt(2.0))))


def _layernorm(x, gamma, beta):
    mu = jnp.mean(x, axis=-1, keepdims=True)
    var = jnp.mean((x - mu) * (x - mu), axis=-1, keepdims=True)
    return (x - mu) * jax.lax.rsqrt(var + LN_EPS) * gamma + beta


# Order in which per-layer parameters are passed to the kernel.
PARAM_ORDER = [
    # text stream
    "wq", "bq", "wk", "bk", "wv", "bv",
    "wo", "bo", "ln1_g", "ln1_b",
    "wi", "bi", "wo2", "bo2", "ln2_g", "ln2_b",
    # layout stream
    "lwq", "lbq", "lwk", "lbk", "lwv", "lbv",
    "lwo", "lbo", "lln1_g", "lln1_b",
    "lwi", "lbi", "lwo2", "lbo2", "lln2_g", "lln2_b",
]

# 2-D matmul weights -> shipped as bf16 (biases / LayerNorm params stay f32).
MATMUL_WEIGHTS = frozenset(
    {"wq", "wk", "wv", "wo", "wi", "wo2",
     "lwq", "lwk", "lwv", "lwo", "lwi", "lwo2"})


# --------------------------------- the kernel --------------------------------

def lilt_layer_kernel(nh, dh, dl, i_chunk, il_chunk, hid_ref, lay_ref, *refs):
    (wq, bq, wk, bk, wv, bv, wo, bo, ln1g, ln1b, wi, bi, wo2, bo2, ln2g, ln2b,
     lwq, lbq, lwk, lbk, lwv, lbv, lwo, lbo, lln1g, lln1b, lwi, lbi, lwo2, lbo2,
     lln2g, lln2b, hid_out_ref, lay_out_ref) = refs

    f32 = jnp.float32
    bf16 = jnp.bfloat16

    x_bf = hid_ref[...]          # (S, H)  bf16
    xl_bf = lay_ref[...]         # (S, HL) bf16
    x = x_bf.astype(f32)
    xl = xl_bf.astype(f32)
    S = x.shape[0]

    def proj(inp_bf, w_ref, b_ref):
        # bf16 x bf16 -> f32 accumulation on the MXU, bias added in f32.
        return jnp.dot(inp_bf, w_ref[...], preferred_element_type=f32) + b_ref[...]

    # --- dual QKV projections (full-width matmuls, bf16 inputs) ---
    q = proj(x_bf, wq, bq)
    k = proj(x_bf, wk, bk)
    v = proj(x_bf, wv, bv)
    lq = proj(xl_bf, lwq, lbq)
    lk = proj(xl_bf, lwk, lbk)
    lv = proj(xl_bf, lwv, lbv)

    def to_heads(t_f32, d, scale=None):
        # (S, nh*d) -> (nh, S, d), scale folded in before the bf16 cast.
        if scale is not None:
            t_f32 = t_f32 * scale
        t3 = jnp.transpose(t_f32.reshape(S, nh, d), (1, 0, 2))
        return t3.astype(bf16)

    q3 = to_heads(q, dh, 1.0 / math.sqrt(dh))
    k3 = to_heads(k, dh)
    v3 = to_heads(v, dh)
    lq3 = to_heads(lq, dl, 1.0 / math.sqrt(dl))
    lk3 = to_heads(lk, dl)
    lv3 = to_heads(lv, dl)

    # --- BiACM: text + layout scores, one batched matmul per stream ---
    scores = (jnp.einsum("hqd,hkd->hqk", q3, k3, preferred_element_type=f32)
              + jnp.einsum("hqd,hkd->hqk", lq3, lk3, preferred_element_type=f32))

    # softmax over keys (f32; shared by both streams — detach() is gradient-only)
    m = jnp.max(scores, axis=-1, keepdims=True)
    e = jnp.exp(scores - m)
    p = e * pl.reciprocal(jnp.sum(e, axis=-1, keepdims=True), approx=True)
    p_bf = p.astype(bf16)

    def merge_heads(c_f32, d):
        # (nh, S, d) -> (S, nh*d)
        return jnp.transpose(c_f32, (1, 0, 2)).reshape(S, nh * d)

    ctx = merge_heads(
        jnp.einsum("hqk,hkd->hqd", p_bf, v3, preferred_element_type=f32), dh)
    lctx = merge_heads(
        jnp.einsum("hqk,hkd->hqd", p_bf, lv3, preferred_element_type=f32), dl)

    # --- SelfOutput: dense + residual + LayerNorm (stats in f32) ---
    att = _layernorm(
        jnp.dot(ctx.astype(bf16), wo[...], preferred_element_type=f32)
        + bo[...] + x, ln1g[...], ln1b[...])
    latt = _layernorm(
        jnp.dot(lctx.astype(bf16), lwo[...], preferred_element_type=f32)
        + lbo[...] + xl, lln1g[...], lln1b[...])

    # --- FFN: GELU intermediate computed in I-chunks and reduced immediately
    #     into the f32 accumulator of the second dense (no full (S, I) buffer) ---
    def ffn(a_f32, wi_r, bi_r, wo2_r, bo2_r, g_r, b_r, chunk):
        a_bf = a_f32.astype(bf16)
        i_dim = wi_r.shape[1]
        h_out = wo2_r.shape[1]
        acc = jnp.zeros((S, h_out), f32)
        for c in range(0, i_dim, chunk):
            hi = min(c + chunk, i_dim)
            h_c = (jnp.dot(a_bf, wi_r[:, c:hi], preferred_element_type=f32)
                   + bi_r[:, c:hi])
            g_c = _gelu(h_c).astype(bf16)
            acc = acc + jnp.dot(g_c, wo2_r[c:hi, :], preferred_element_type=f32)
        return _layernorm(acc + bo2_r[...] + a_f32, g_r[...], b_r[...])

    out = ffn(att, wi, bi, wo2, bo2, ln2g, ln2b, i_chunk)
    lout = ffn(latt, lwi, lbi, lwo2, lbo2, lln2g, lln2b, il_chunk)

    hid_out_ref[...] = out.astype(hid_out_ref.dtype)
    lay_out_ref[...] = lout.astype(lay_out_ref.dtype)


# ------------------------------- python wrapper -------------------------------

def _vmem_limit_bytes():
    # Raise the scoped-VMEM cap above the defaults (16 MiB v5e / 32 MiB v6e,v7x)
    # while leaving headroom below physical capacity (64 MiB/core on v7x).
    try:
        cap = pltpu.get_tpu_info().vmem_capacity_bytes
        return int(min(100 * 2**20, cap * 7 // 8))
    except Exception:
        return 48 * 2**20


def lilt_layer_pallas(hidden, layout, params, nh, dh, dl, ffn_chunk=512):
    B, S, H = hidden.shape
    HL = layout.shape[-1]
    I = params["wi"].shape[1]
    IL = params["lwi"].shape[1]

    weights = []
    for name in PARAM_ORDER:
        w = params[name]
        if name in MATMUL_WEIGHTS:
            w = w.astype(jnp.bfloat16)     # bf16 weight storage / DMA
        else:
            w = w.astype(jnp.float32)      # biases & LayerNorm params stay f32
        weights.append(w)

    in_specs = [
        pl.BlockSpec((None, S, H), lambda b: (b, 0, 0)),
        pl.BlockSpec((None, S, HL), lambda b: (b, 0, 0)),
    ]
    # Weights: whole array resident in VMEM, single copy for the entire grid
    # (no per-step re-DMA, no double-buffering of constant-index inputs).
    in_specs += [pl.BlockSpec(memory_space=pltpu.MemorySpace.VMEM)] * len(weights)

    out_specs = (
        pl.BlockSpec((None, S, H), lambda b: (b, 0, 0)),
        pl.BlockSpec((None, S, HL), lambda b: (b, 0, 0)),
    )
    # inter-layer activations in bf16 (halves HBM traffic between layer calls)
    out_shape = (
        jax.ShapeDtypeStruct((B, S, H), jnp.bfloat16),
        jax.ShapeDtypeStruct((B, S, HL), jnp.bfloat16),
    )

    kernel = partial(lilt_layer_kernel, nh, dh, dl,
                     min(I, ffn_chunk), min(IL, ffn_chunk))

    return pl.pallas_call(
        kernel,
        grid=(B,),
        in_specs=in_specs,
        out_specs=out_specs,
        out_shape=out_shape,
        compiler_params=pltpu.CompilerParams(
            dimension_semantics=("parallel",),
            vmem_limit_bytes=_vmem_limit_bytes(),
        ),
    )(hidden.astype(jnp.bfloat16), layout.astype(jnp.bfloat16), *weights)


def lilt_encoder_pallas(hidden, layout, layer_params, nh, dh, dl):
    for p in layer_params:
        hidden, layout = lilt_layer_pallas(hidden, layout, p, nh, dh, dl)
    return hidden, layout


# ------------------------------ pure-JAX reference -----------------------------
# matmul_dtype / act_dtype let the reference mirror the kernel's bf16 numerics
# (matmul inputs in bf16, f32 accumulation, bf16 inter-layer activations).

def lilt_layer_ref(hidden, layout, p, nh, dh, dl, mm=jnp.float32):
    B, S, H = hidden.shape
    HL = layout.shape[-1]

    def lin(x, w, b):
        return jnp.dot(x.astype(mm), w.astype(mm),
                       preferred_element_type=jnp.float32) + b

    def heads(x, d):
        return x.reshape(B, S, nh, d).transpose(0, 2, 1, 3)

    q = heads(lin(hidden, p["wq"], p["bq"]), dh)
    k = heads(lin(hidden, p["wk"], p["bk"]), dh)
    v = heads(lin(hidden, p["wv"], p["bv"]), dh)
    lq = heads(lin(layout, p["lwq"], p["lbq"]), dl)
    lk = heads(lin(layout, p["lwk"], p["lbk"]), dl)
    lv = heads(lin(layout, p["lwv"], p["lbv"]), dl)

    def sc(a, b):
        return jnp.einsum("bhqd,bhkd->bhqk", a.astype(mm), b.astype(mm),
                          preferred_element_type=jnp.float32)

    scores = sc(q, k) / math.sqrt(dh) + sc(lq, lk) / math.sqrt(dl)
    probs = jax.nn.softmax(scores, axis=-1)

    def ctxt(pr, val, d):
        c = jnp.einsum("bhqk,bhkd->bhqd", pr.astype(mm), val.astype(mm),
                       preferred_element_type=jnp.float32)
        return c.transpose(0, 2, 1, 3).reshape(B, S, nh * d)

    ctx = ctxt(probs, v, dh)
    lctx = ctxt(probs, lv, dl)

    att = _layernorm(lin(ctx, p["wo"], p["bo"]) + hidden, p["ln1_g"], p["ln1_b"])
    latt = _layernorm(lin(lctx, p["lwo"], p["lbo"]) + layout, p["lln1_g"], p["lln1_b"])

    out = _layernorm(lin(_gelu(lin(att, p["wi"], p["bi"])), p["wo2"], p["bo2"]) + att,
                     p["ln2_g"], p["ln2_b"])
    lout = _layernorm(lin(_gelu(lin(latt, p["lwi"], p["lbi"])), p["lwo2"], p["lbo2"]) + latt,
                      p["lln2_g"], p["lln2_b"])
    return out, lout


def lilt_encoder_ref(hidden, layout, layer_params, nh, dh, dl,
                     matmul_dtype=jnp.float32, act_dtype=jnp.float32):
    hidden = hidden.astype(act_dtype).astype(jnp.float32)
    layout = layout.astype(act_dtype).astype(jnp.float32)
    for p in layer_params:
        hidden, layout = lilt_layer_ref(hidden, layout, p, nh, dh, dl, matmul_dtype)
        hidden = hidden.astype(act_dtype).astype(jnp.float32)
        layout = layout.astype(act_dtype).astype(jnp.float32)
    return hidden, layout


# --------------------------------- param init ---------------------------------

def init_layer_params(key, H, HL, I, IL):
    ks = jax.random.split(key, 16)
    it = iter(ks)

    def lin_w(fan_in, fan_out):
        return 0.02 * jax.random.normal(next(it), (fan_in, fan_out), jnp.float32)

    z = lambda n: jnp.zeros((1, n), jnp.float32)
    ones = lambda n: jnp.ones((1, n), jnp.float32)

    p = {}
    # text stream
    p["wq"], p["bq"] = lin_w(H, H), z(H)
    p["wk"], p["bk"] = lin_w(H, H), z(H)
    p["wv"], p["bv"] = lin_w(H, H), z(H)
    p["wo"], p["bo"] = lin_w(H, H), z(H)
    p["ln1_g"], p["ln1_b"] = ones(H), z(H)
    p["wi"], p["bi"] = lin_w(H, I), z(I)
    p["wo2"], p["bo2"] = lin_w(I, H), z(H)
    p["ln2_g"], p["ln2_b"] = ones(H), z(H)
    # layout stream
    p["lwq"], p["lbq"] = lin_w(HL, HL), z(HL)
    p["lwk"], p["lbk"] = lin_w(HL, HL), z(HL)
    p["lwv"], p["lbv"] = lin_w(HL, HL), z(HL)
    p["lwo"], p["lbo"] = lin_w(HL, HL), z(HL)
    p["lln1_g"], p["lln1_b"] = ones(HL), z(HL)
    p["lwi"], p["lbi"] = lin_w(HL, IL), z(IL)
    p["lwo2"], p["lbo2"] = lin_w(IL, HL), z(HL)
    p["lln2_g"], p["lln2_b"] = ones(HL), z(HL)
    return p


# ------------------------------------ main ------------------------------------

if __name__ == "__main__":
    # small config consistent with LiLT: hidden=32, heads=4, shrink_ratio=2,
    # intermediate=64, layers=2, batch=2, seq=8
    B, S, H, NH, RATIO = 2, 8, 32, 4, 2
    HL = H // RATIO
    DH = H // NH
    DL = DH // RATIO
    I = 64
    IL = I // RATIO
    NUM_LAYERS = 2

    key = jax.random.PRNGKey(0)
    k_hid, k_lay, k_par = jax.random.split(key, 3)
    hidden = jax.random.normal(k_hid, (B, S, H), jnp.float32)
    layout = jax.random.normal(k_lay, (B, S, HL), jnp.float32)

    layer_params = [init_layer_params(k, H, HL, I, IL)
                    for k in jax.random.split(k_par, NUM_LAYERS)]

    # Pallas kernel (attention_mask=None, head_mask=None, eval-mode dropout)
    h_out, l_out = lilt_encoder_pallas(hidden, layout, layer_params, NH, DH, DL)
    jax.block_until_ready((h_out, l_out))
    h_np = np.asarray(h_out.astype(jnp.float32))
    l_np = np.asarray(l_out.astype(jnp.float32))

    # bf16-matched pure-JAX reference (same matmul/activation dtypes as the kernel)
    h_ref, l_ref = lilt_encoder_ref(hidden, layout, layer_params, NH, DH, DL,
                                    matmul_dtype=jnp.bfloat16, act_dtype=jnp.bfloat16)
    assert np.allclose(h_np, np.asarray(h_ref), rtol=1e-2, atol=1e-2)
    assert np.allclose(l_np, np.asarray(l_ref), rtol=1e-2, atol=1e-2)

    # loose sanity check against full-f32 math (documents the bf16 drift budget)
    h32, l32 = lilt_encoder_ref(hidden, layout, layer_params, NH, DH, DL)
    assert float(np.max(np.abs(h_np - np.asarray(h32)))) < 0.25
    assert float(np.max(np.abs(l_np - np.asarray(l32)))) < 0.25

    print("KERNEL_OK")
</pallas_src>

<mosaic_0001>
module attributes {stable_mosaic.version = 11 : i64} {
  func.func @lilt_layer_kernel(%arg0: i32, %arg1: memref<1x8x32xbf16, #tpu.memory_space<vmem>>, %arg2: memref<1x8x16xbf16, #tpu.memory_space<vmem>>, %arg3: memref<32x32xbf16, #tpu.memory_space<vmem>>, %arg4: memref<1x32xf32, #tpu.memory_space<vmem>>, %arg5: memref<32x32xbf16, #tpu.memory_space<vmem>>, %arg6: memref<1x32xf32, #tpu.memory_space<vmem>>, %arg7: memref<32x32xbf16, #tpu.memory_space<vmem>>, %arg8: memref<1x32xf32, #tpu.memory_space<vmem>>, %arg9: memref<32x32xbf16, #tpu.memory_space<vmem>>, %arg10: memref<1x32xf32, #tpu.memory_space<vmem>>, %arg11: memref<1x32xf32, #tpu.memory_space<vmem>>, %arg12: memref<1x32xf32, #tpu.memory_space<vmem>>, %arg13: memref<32x64xbf16, #tpu.memory_space<vmem>>, %arg14: memref<1x64xf32, #tpu.memory_space<vmem>>, %arg15: memref<64x32xbf16, #tpu.memory_space<vmem>>, %arg16: memref<1x32xf32, #tpu.memory_space<vmem>>, %arg17: memref<1x32xf32, #tpu.memory_space<vmem>>, %arg18: memref<1x32xf32, #tpu.memory_space<vmem>>, %arg19: memref<16x16xbf16, #tpu.memory_space<vmem>>, %arg20: memref<1x16xf32, #tpu.memory_space<vmem>>, %arg21: memref<16x16xbf16, #tpu.memory_space<vmem>>, %arg22: memref<1x16xf32, #tpu.memory_space<vmem>>, %arg23: memref<16x16xbf16, #tpu.memory_space<vmem>>, %arg24: memref<1x16xf32, #tpu.memory_space<vmem>>, %arg25: memref<16x16xbf16, #tpu.memory_space<vmem>>, %arg26: memref<1x16xf32, #tpu.memory_space<vmem>>, %arg27: memref<1x16xf32, #tpu.memory_space<vmem>>, %arg28: memref<1x16xf32, #tpu.memory_space<vmem>>, %arg29: memref<16x32xbf16, #tpu.memory_space<vmem>>, %arg30: memref<1x32xf32, #tpu.memory_space<vmem>>, %arg31: memref<32x16xbf16, #tpu.memory_space<vmem>>, %arg32: memref<1x16xf32, #tpu.memory_space<vmem>>, %arg33: memref<1x16xf32, #tpu.memory_space<vmem>>, %arg34: memref<1x16xf32, #tpu.memory_space<vmem>>, %arg35: memref<1x8x32xbf16, #tpu.memory_space<vmem>>, %arg36: memref<1x8x16xbf16, #tpu.memory_space<vmem>>) attributes {dimension_semantics = [#tpu.dimension_semantics<parallel>], iteration_bounds = array<i64: 2>, scalar_prefetch = 0 : i64, scratch_operands = 0 : i64, tpu.core_type = #tpu.core_type<tc>, window_params = [{transform_indices = @transform_0, window_bounds = array<i64: 1, 8, 32>}, {transform_indices = @transform_1, window_bounds = array<i64: 1, 8, 16>}, {pipeline_mode = #tpu.pipeline_mode<synchronous>, transform_indices = @transform_2, window_bounds = array<i64: 32, 32>}, {pipeline_mode = #tpu.pipeline_mode<synchronous>, transform_indices = @transform_3, window_bounds = array<i64: 1, 32>}, {pipeline_mode = #tpu.pipeline_mode<synchronous>, transform_indices = @transform_4, window_bounds = array<i64: 32, 32>}, {pipeline_mode = #tpu.pipeline_mode<synchronous>, transform_indices = @transform_5, window_bounds = array<i64: 1, 32>}, {pipeline_mode = #tpu.pipeline_mode<synchronous>, transform_indices = @transform_6, window_bounds = array<i64: 32, 32>}, {pipeline_mode = #tpu.pipeline_mode<synchronous>, transform_indices = @transform_7, window_bounds = array<i64: 1, 32>}, {pipeline_mode = #tpu.pipeline_mode<synchronous>, transform_indices = @transform_8, window_bounds = array<i64: 32, 32>}, {pipeline_mode = #tpu.pipeline_mode<synchronous>, transform_indices = @transform_9, window_bounds = array<i64: 1, 32>}, {pipeline_mode = #tpu.pipeline_mode<synchronous>, transform_indices = @transform_10, window_bounds = array<i64: 1, 32>}, {pipeline_mode = #tpu.pipeline_mode<synchronous>, transform_indices = @transform_11, window_bounds = array<i64: 1, 32>}, {pipeline_mode = #tpu.pipeline_mode<synchronous>, transform_indices = @transform_12, window_bounds = array<i64: 32, 64>}, {pipeline_mode = #tpu.pipeline_mode<synchronous>, transform_indices = @transform_13, window_bounds = array<i64: 1, 64>}, {pipeline_mode = #tpu.pipeline_mode<synchronous>, transform_indices = @transform_14, window_bounds = array<i64: 64, 32>}, {pipeline_mode = #tpu.pipeline_mode<synchronous>, transform_indices = @transform_15, window_bounds = array<i64: 1, 32>}, {pipeline_mode = #tpu.pipeline_mode<synchronous>, transform_indices = @transform_16, window_bounds = array<i64: 1, 32>}, {pipeline_mode = #tpu.pipeline_mode<synchronous>, transform_indices = @transform_17, window_bounds = array<i64: 1, 32>}, {pipeline_mode = #tpu.pipeline_mode<synchronous>, transform_indices = @transform_18, window_bounds = array<i64: 16, 16>}, {pipeline_mode = #tpu.pipeline_mode<synchronous>, transform_indices = @transform_19, window_bounds = array<i64: 1, 16>}, {pipeline_mode = #tpu.pipeline_mode<synchronous>, transform_indices = @transform_20, window_bounds = array<i64: 16, 16>}, {pipeline_mode = #tpu.pipeline_mode<synchronous>, transform_indices = @transform_21, window_bounds = array<i64: 1, 16>}, {pipeline_mode = #tpu.pipeline_mode<synchronous>, transform_indices = @transform_22, window_bounds = array<i64: 16, 16>}, {pipeline_mode = #tpu.pipeline_mode<synchronous>, transform_indices = @transform_23, window_bounds = array<i64: 1, 16>}, {pipeline_mode = #tpu.pipeline_mode<synchronous>, transform_indices = @transform_24, window_bounds = array<i64: 16, 16>}, {pipeline_mode = #tpu.pipeline_mode<synchronous>, transform_indices = @transform_25, window_bounds = array<i64: 1, 16>}, {pipeline_mode = #tpu.pipeline_mode<synchronous>, transform_indices = @transform_26, window_bounds = array<i64: 1, 16>}, {pipeline_mode = #tpu.pipeline_mode<synchronous>, transform_indices = @transform_27, window_bounds = array<i64: 1, 16>}, {pipeline_mode = #tpu.pipeline_mode<synchronous>, transform_indices = @transform_28, window_bounds = array<i64: 16, 32>}, {pipeline_mode = #tpu.pipeline_mode<synchronous>, transform_indices = @transform_29, window_bounds = array<i64: 1, 32>}, {pipeline_mode = #tpu.pipeline_mode<synchronous>, transform_indices = @transform_30, window_bounds = array<i64: 32, 16>}, {pipeline_mode = #tpu.pipeline_mode<synchronous>, transform_indices = @transform_31, window_bounds = array<i64: 1, 16>}, {pipeline_mode = #tpu.pipeline_mode<synchronous>, transform_indices = @transform_32, window_bounds = array<i64: 1, 16>}, {pipeline_mode = #tpu.pipeline_mode<synchronous>, transform_indices = @transform_33, window_bounds = array<i64: 1, 16>}, {transform_indices = @transform_34, window_bounds = array<i64: 1, 8, 32>}, {transform_indices = @transform_35, window_bounds = array<i64: 1, 8, 16>}]} {
    %c0 = arith.constant 0 : index
    %c0_0 = arith.constant 0 : index
    %c0_1 = arith.constant 0 : index
    %0 = vector.load %arg1[%c0, %c0_0, %c0_1] : memref<1x8x32xbf16, #tpu.memory_space<vmem>>, vector<1x8x32xbf16>
    %1 = vector.shape_cast %0 : vector<1x8x32xbf16> to vector<8x32xbf16>
    %c0_2 = arith.constant 0 : index
    %c0_3 = arith.constant 0 : index
    %c0_4 = arith.constant 0 : index
    %2 = vector.load %arg2[%c0_2, %c0_3, %c0_4] : memref<1x8x16xbf16, #tpu.memory_space<vmem>>, vector<1x8x16xbf16>
    %3 = vector.shape_cast %2 : vector<1x8x16xbf16> to vector<8x16xbf16>
    %4 = arith.extf %1 : vector<8x32xbf16> to vector<8x32xf32>
    %5 = arith.extf %3 : vector<8x16xbf16> to vector<8x16xf32>
    %c0_5 = arith.constant 0 : index
    %c0_6 = arith.constant 0 : index
    %6 = vector.load %arg3[%c0_5, %c0_6] : memref<32x32xbf16, #tpu.memory_space<vmem>>, vector<32x32xbf16>
    %cst = arith.constant dense<0.000000e+00> : vector<8x32xf32>
    %7 = tpu.matmul %1, %6, %cst {dimension_numbers = #tpu.dot_dimension_numbers<[1], [0], [0], [1], [0, 0, 1, 1], [], []>} : vector<8x32xbf16>, vector<32x32xbf16>, vector<8x32xf32> -> vector<8x32xf32>
    %c0_7 = arith.constant 0 : index
    %c0_8 = arith.constant 0 : index
    %8 = vector.load %arg4[%c0_7, %c0_8] : memref<1x32xf32, #tpu.memory_space<vmem>>, vector<1x32xf32>
    %9 = vector.broadcast %8 : vector<1x32xf32> to vector<8x32xf32>
    %10 = arith.addf %7, %9 : vector<8x32xf32>
    %c0_9 = arith.constant 0 : index
    %c0_10 = arith.constant 0 : index
    %11 = vector.load %arg5[%c0_9, %c0_10] : memref<32x32xbf16, #tpu.memory_space<vmem>>, vector<32x32xbf16>
    %cst_11 = arith.constant dense<0.000000e+00> : vector<8x32xf32>
    %12 = tpu.matmul %1, %11, %cst_11 {dimension_numbers = #tpu.dot_dimension_numbers<[1], [0], [0], [1], [0, 0, 1, 1], [], []>} : vector<8x32xbf16>, vector<32x32xbf16>, vector<8x32xf32> -> vector<8x32xf32>
    %c0_12 = arith.constant 0 : index
    %c0_13 = arith.constant 0 : index
    %13 = vector.load %arg6[%c0_12, %c0_13] : memref<1x32xf32, #tpu.memory_space<vmem>>, vector<1x32xf32>
    %14 = vector.broadcast %13 : vector<1x32xf32> to vector<8x32xf32>
    %15 = arith.addf %12, %14 : vector<8x32xf32>
    %c0_14 = arith.constant 0 : index
    %c0_15 = arith.constant 0 : index
    %16 = vector.load %arg7[%c0_14, %c0_15] : memref<32x32xbf16, #tpu.memory_space<vmem>>, vector<32x32xbf16>
    %cst_16 = arith.constant dense<0.000000e+00> : vector<8x32xf32>
    %17 = tpu.matmul %1, %16, %cst_16 {dimension_numbers = #tpu.dot_dimension_numbers<[1], [0], [0], [1], [0, 0, 1, 1], [], []>} : vector<8x32xbf16>, vector<32x32xbf16>, vector<8x32xf32> -> vector<8x32xf32>
    %c0_17 = arith.constant 0 : index
    %c0_18 = arith.constant 0 : index
    %18 = vector.load %arg8[%c0_17, %c0_18] : memref<1x32xf32, #tpu.memory_space<vmem>>, vector<1x32xf32>
    %19 = vector.broadcast %18 : vector<1x32xf32> to vector<8x32xf32>
    %20 = arith.addf %17, %19 : vector<8x32xf32>
    %c0_19 = arith.constant 0 : index
    %c0_20 = arith.constant 0 : index
    %21 = vector.load %arg19[%c0_19, %c0_20] : memref<16x16xbf16, #tpu.memory_space<vmem>>, vector<16x16xbf16>
    %cst_21 = arith.constant dense<0.000000e+00> : vector<8x16xf32>
    %22 = tpu.matmul %3, %21, %cst_21 {dimension_numbers = #tpu.dot_dimension_numbers<[1], [0], [0], [1], [0, 0, 1, 1], [], []>} : vector<8x16xbf16>, vector<16x16xbf16>, vector<8x16xf32> -> vector<8x16xf32>
    %c0_22 = arith.constant 0 : index
    %c0_23 = arith.constant 0 : index
    %23 = vector.load %arg20[%c0_22, %c0_23] : memref<1x16xf32, #tpu.memory_space<vmem>>, vector<1x16xf32>
    %24 = vector.broadcast %23 : vector<1x16xf32> to vector<8x16xf32>
    %25 = arith.addf %22, %24 : vector<8x16xf32>
    %c0_24 = arith.constant 0 : index
    %c0_25 = arith.constant 0 : index
    %26 = vector.load %arg21[%c0_24, %c0_25] : memref<16x16xbf16, #tpu.memory_space<vmem>>, vector<16x16xbf16>
    %cst_26 = arith.constant dense<0.000000e+00> : vector<8x16xf32>
    %27 = tpu.matmul %3, %26, %cst_26 {dimension_numbers = #tpu.dot_dimension_numbers<[1], [0], [0], [1], [0, 0, 1, 1], [], []>} : vector<8x16xbf16>, vector<16x16xbf16>, vector<8x16xf32> -> vector<8x16xf32>
    %c0_27 = arith.constant 0 : index
    %c0_28 = arith.constant 0 : index
    %28 = vector.load %arg22[%c0_27, %c0_28] : memref<1x16xf32, #tpu.memory_space<vmem>>, vector<1x16xf32>
    %29 = vector.broadcast %28 : vector<1x16xf32> to vector<8x16xf32>
    %30 = arith.addf %27, %29 : vector<8x16xf32>
    %c0_29 = arith.constant 0 : index
    %c0_30 = arith.constant 0 : index
    %31 = vector.load %arg23[%c0_29, %c0_30] : memref<16x16xbf16, #tpu.memory_space<vmem>>, vector<16x16xbf16>
    %cst_31 = arith.constant dense<0.000000e+00> : vector<8x16xf32>
    %32 = tpu.matmul %3, %31, %cst_31 {dimension_numbers = #tpu.dot_dimension_numbers<[1], [0], [0], [1], [0, 0, 1, 1], [], []>} : vector<8x16xbf16>, vector<16x16xbf16>, vector<8x16xf32> -> vector<8x16xf32>
    %c0_32 = arith.constant 0 : index
    %c0_33 = arith.constant 0 : index
    %33 = vector.load %arg24[%c0_32, %c0_33] : memref<1x16xf32, #tpu.memory_space<vmem>>, vector<1x16xf32>
    %34 = vector.broadcast %33 : vector<1x16xf32> to vector<8x16xf32>
    %35 = arith.addf %32, %34 : vector<8x16xf32>
    %cst_34 = arith.constant 0.353553385 : f32
    %36 = vector.broadcast %cst_34 : f32 to vector<8x32xf32>
    %37 = arith.mulf %10, %36 : vector<8x32xf32>
    %38 = vector.shape_cast %37 : vector<8x32xf32> to vector<8x4x8xf32>
    %39 = tpu.transpose %38, [1, 0, 2] : vector<8x4x8xf32> -> vector<4x8x8xf32>
    %40 = arith.truncf %39 : vector<4x8x8xf32> to vector<4x8x8xbf16>
    %41 = vector.shape_cast %15 : vector<8x32xf32> to vector<8x4x8xf32>
    %42 = tpu.transpose %41, [1, 0, 2] : vector<8x4x8xf32> -> vector<4x8x8xf32>
    %43 = arith.truncf %42 : vector<4x8x8xf32> to vector<4x8x8xbf16>
    %44 = vector.shape_cast %20 : vector<8x32xf32> to vector<8x4x8xf32>
    %45 = tpu.transpose %44, [1, 0, 2] : vector<8x4x8xf32> -> vector<4x8x8xf32>
    %46 = arith.truncf %45 : vector<4x8x8xf32> to vector<4x8x8xbf16>
    %cst_35 = arith.constant 5.000000e-01 : f32
    %47 = vector.broadcast %cst_35 : f32 to vector<8x16xf32>
    %48 = arith.mulf %25, %47 : vector<8x16xf32>
    %49 = vector.shape_cast %48 : vector<8x16xf32> to vector<8x4x4xf32>
    %50 = tpu.transpose %49, [1, 0, 2] : vector<8x4x4xf32> -> vector<4x8x4xf32>
    %51 = arith.truncf %50 : vector<4x8x4xf32> to vector<4x8x4xbf16>
    %52 = vector.shape_cast %30 : vector<8x16xf32> to vector<8x4x4xf32>
    %53 = tpu.transpose %52, [1, 0, 2] : vector<8x4x4xf32> -> vector<4x8x4xf32>
    %54 = arith.truncf %53 : vector<4x8x4xf32> to vector<4x8x4xbf16>
    %55 = vector.shape_cast %35 : vector<8x16xf32> to vector<8x4x4xf32>
    %56 = tpu.transpose %55, [1, 0, 2] : vector<8x4x4xf32> -> vector<4x8x4xf32>
    %57 = arith.truncf %56 : vector<4x8x4xf32> to vector<4x8x4xbf16>
    "tpu.trace_start"() <{level = 10 : i32, message = "hqd,hkd->hqk"}> : () -> ()
    %cst_36 = arith.constant dense<0.000000e+00> : vector<4x8x8xf32>
    %58 = tpu.matmul %40, %43, %cst_36 {dimension_numbers = #tpu.dot_dimension_numbers<[2], [2], [1], [1], [0, 0, 0, 1, 1, 1], [0], [0]>} : vector<4x8x8xbf16>, vector<4x8x8xbf16>, vector<4x8x8xf32> -> vector<4x8x8xf32>
    %cst_37 = arith.constant dense<0.000000e+00> : vector<4x8x8xf32>
    %59 = tpu.matmul %51, %54, %cst_37 {dimension_numbers = #tpu.dot_dimension_numbers<[2], [2], [1], [1], [0, 0, 0, 1, 1, 1], [0], [0]>} : vector<4x8x4xbf16>, vector<4x8x4xbf16>, vector<4x8x8xf32> -> vector<4x8x8xf32>
    "tpu.trace_stop"() : () -> ()
    %60 = arith.addf %58, %59 : vector<4x8x8xf32>
    %cst_38 = arith.constant dense<0xFF800000> : vector<4x8xf32>
    %61 = vector.multi_reduction <maximumf>, %60, %cst_38 [2] : vector<4x8x8xf32> to vector<4x8xf32>
    %62 = vector.shape_cast %61 : vector<4x8xf32> to vector<4x8x1xf32>
    %63 = vector.broadcast %62 : vector<4x8x1xf32> to vector<4x8x8xf32>
    %64 = arith.subf %60, %63 : vector<4x8x8xf32>
    %65 = math.exp %64 : vector<4x8x8xf32>
    %cst_39 = arith.constant dense<0.000000e+00> : vector<4x8xf32>
    %66 = vector.multi_reduction <add>, %65, %cst_39 [2] : vector<4x8x8xf32> to vector<4x8xf32>
    %67 = vector.shape_cast %66 : vector<4x8xf32> to vector<4x8x1xf32>
    %68 = tpu.reciprocal %67 {approx = true} : vector<4x8x1xf32> -> vector<4x8x1xf32>
    %69 = vector.broadcast %68 : vector<4x8x1xf32> to vector<4x8x8xf32>
    %70 = arith.mulf %65, %69 : vector<4x8x8xf32>
    %71 = arith.truncf %70 : vector<4x8x8xf32> to vector<4x8x8xbf16>
    "tpu.trace_start"() <{level = 10 : i32, message = "hqk,hkd->hqd"}> : () -> ()
    %cst_40 = arith.constant dense<0.000000e+00> : vector<4x8x8xf32>
    %72 = tpu.matmul %71, %46, %cst_40 {dimension_numbers = #tpu.dot_dimension_numbers<[2], [1], [1], [2], [0, 0, 0, 1, 1, 2], [0], [0]>} : vector<4x8x8xbf16>, vector<4x8x8xbf16>, vector<4x8x8xf32> -> vector<4x8x8xf32>
    "tpu.trace_stop"() : () -> ()
    %73 = tpu.transpose %72, [1, 0, 2] : vector<4x8x8xf32> -> vector<8x4x8xf32>
    %74 = vector.shape_cast %73 : vector<8x4x8xf32> to vector<8x32xf32>
    "tpu.trace_start"() <{level = 10 : i32, message = "hqk,hkd->hqd"}> : () -> ()
    %cst_41 = arith.constant dense<0.000000e+00> : vector<4x8x4xf32>
    %75 = tpu.matmul %71, %57, %cst_41 {dimension_numbers = #tpu.dot_dimension_numbers<[2], [1], [1], [2], [0, 0, 0, 1, 1, 2], [0], [0]>} : vector<4x8x8xbf16>, vector<4x8x4xbf16>, vector<4x8x4xf32> -> vector<4x8x4xf32>
    "tpu.trace_stop"() : () -> ()
    %76 = tpu.transpose %75, [1, 0, 2] : vector<4x8x4xf32> -> vector<8x4x4xf32>
    %77 = vector.shape_cast %76 : vector<8x4x4xf32> to vector<8x16xf32>
    %78 = arith.truncf %74 : vector<8x32xf32> to vector<8x32xbf16>
    %c0_42 = arith.constant 0 : index
    %c0_43 = arith.constant 0 : index
    %79 = vector.load %arg9[%c0_42, %c0_43] : memref<32x32xbf16, #tpu.memory_space<vmem>>, vector<32x32xbf16>
    %cst_44 = arith.constant dense<0.000000e+00> : vector<8x32xf32>
    %80 = tpu.matmul %78, %79, %cst_44 {dimension_numbers = #tpu.dot_dimension_numbers<[1], [0], [0], [1], [0, 0, 1, 1], [], []>} : vector<8x32xbf16>, vector<32x32xbf16>, vector<8x32xf32> -> vector<8x32xf32>
    %c0_45 = arith.constant 0 : index
    %c0_46 = arith.constant 0 : index
    %81 = vector.load %arg10[%c0_45, %c0_46] : memref<1x32xf32, #tpu.memory_space<vmem>>, vector<1x32xf32>
    %82 = vector.broadcast %81 : vector<1x32xf32> to vector<8x32xf32>
    %83 = arith.addf %80, %82 : vector<8x32xf32>
    %84 = arith.addf %83, %4 : vector<8x32xf32>
    %c0_47 = arith.constant 0 : index
    %c0_48 = arith.constant 0 : index
    %85 = vector.load %arg11[%c0_47, %c0_48] : memref<1x32xf32, #tpu.memory_space<vmem>>, vector<1x32xf32>
    %c0_49 = arith.constant 0 : index
    %c0_50 = arith.constant 0 : index
    %86 = vector.load %arg12[%c0_49, %c0_50] : memref<1x32xf32, #tpu.memory_space<vmem>>, vector<1x32xf32>
    %cst_51 = arith.constant dense<0.000000e+00> : vector<8xf32>
    %87 = vector.multi_reduction <add>, %84, %cst_51 [1] : vector<8x32xf32> to vector<8xf32>
    %88 = vector.shape_cast %87 : vector<8xf32> to vector<8x1xf32>
    %cst_52 = arith.constant 3.200000e+01 : f32
    %89 = vector.broadcast %cst_52 : f32 to vector<8x1xf32>
    %90 = arith.divf %88, %89 : vector<8x1xf32>
    %91 = vector.broadcast %90 : vector<8x1xf32> to vector<8x32xf32>
    %92 = arith.subf %84, %91 : vector<8x32xf32>
    %93 = vector.broadcast %90 : vector<8x1xf32> to vector<8x32xf32>
    %94 = arith.subf %84, %93 : vector<8x32xf32>
    %95 = arith.mulf %92, %94 : vector<8x32xf32>
    %cst_53 = arith.constant dense<0.000000e+00> : vector<8xf32>
    %96 = vector.multi_reduction <add>, %95, %cst_53 [1] : vector<8x32xf32> to vector<8xf32>
    %97 = vector.shape_cast %96 : vector<8xf32> to vector<8x1xf32>
    %cst_54 = arith.constant 3.200000e+01 : f32
    %98 = vector.broadcast %cst_54 : f32 to vector<8x1xf32>
    %99 = arith.divf %97, %98 : vector<8x1xf32>
    %100 = vector.broadcast %90 : vector<8x1xf32> to vector<8x32xf32>
    %101 = arith.subf %84, %100 : vector<8x32xf32>
    %cst_55 = arith.constant 9.99999996E-13 : f32
    %102 = vector.broadcast %cst_55 : f32 to vector<8x1xf32>
    %103 = arith.addf %99, %102 : vector<8x1xf32>
    %104 = math.rsqrt %103 : vector<8x1xf32>
    %105 = vector.broadcast %104 : vector<8x1xf32> to vector<8x32xf32>
    %106 = arith.mulf %101, %105 : vector<8x32xf32>
    %107 = vector.broadcast %85 : vector<1x32xf32> to vector<8x32xf32>
    %108 = arith.mulf %106, %107 : vector<8x32xf32>
    %109 = vector.broadcast %86 : vector<1x32xf32> to vector<8x32xf32>
    %110 = arith.addf %108, %109 : vector<8x32xf32>
    %111 = arith.truncf %77 : vector<8x16xf32> to vector<8x16xbf16>
    %c0_56 = arith.constant 0 : index
    %c0_57 = arith.constant 0 : index
    %112 = vector.load %arg25[%c0_56, %c0_57] : memref<16x16xbf16, #tpu.memory_space<vmem>>, vector<16x16xbf16>
    %cst_58 = arith.constant dense<0.000000e+00> : vector<8x16xf32>
    %113 = tpu.matmul %111, %112, %cst_58 {dimension_numbers = #tpu.dot_dimension_numbers<[1], [0], [0], [1], [0, 0, 1, 1], [], []>} : vector<8x16xbf16>, vector<16x16xbf16>, vector<8x16xf32> -> vector<8x16xf32>
    %c0_59 = arith.constant 0 : index
    %c0_60 = arith.constant 0 : index
    %114 = vector.load %arg26[%c0_59, %c0_60] : memref<1x16xf32, #tpu.memory_space<vmem>>, vector<1x16xf32>
    %115 = vector.broadcast %114 : vector<1x16xf32> to vector<8x16xf32>
    %116 = arith.addf %113, %115 : vector<8x16xf32>
    %117 = arith.addf %116, %5 : vector<8x16xf32>
    %c0_61 = arith.constant 0 : index
    %c0_62 = arith.constant 0 : index
    %118 = vector.load %arg27[%c0_61, %c0_62] : memref<1x16xf32, #tpu.memory_space<vmem>>, vector<1x16xf32>
    %c0_63 = arith.constant 0 : index
    %c0_64 = arith.constant 0 : index
    %119 = vector.load %arg28[%c0_63, %c0_64] : memref<1x16xf32, #tpu.memory_space<vmem>>, vector<1x16xf32>
    %cst_65 = arith.constant dense<0.000000e+00> : vector<8xf32>
    %120 = vector.multi_reduction <add>, %117, %cst_65 [1] : vector<8x16xf32> to vector<8xf32>
    %121 = vector.shape_cast %120 : vector<8xf32> to vector<8x1xf32>
    %cst_66 = arith.constant 1.600000e+01 : f32
    %122 = vector.broadcast %cst_66 : f32 to vector<8x1xf32>
    %123 = arith.divf %121, %122 : vector<8x1xf32>
    %124 = vector.broadcast %123 : vector<8x1xf32> to vector<8x16xf32>
    %125 = arith.subf %117, %124 : vector<8x16xf32>
    %126 = vector.broadcast %123 : vector<8x1xf32> to vector<8x16xf32>
    %127 = arith.subf %117, %126 : vector<8x16xf32>
    %128 = arith.mulf %125, %127 : vector<8x16xf32>
    %cst_67 = arith.constant dense<0.000000e+00> : vector<8xf32>
    %129 = vector.multi_reduction <add>, %128, %cst_67 [1] : vector<8x16xf32> to vector<8xf32>
    %130 = vector.shape_cast %129 : vector<8xf32> to vector<8x1xf32>
    %cst_68 = arith.constant 1.600000e+01 : f32
    %131 = vector.broadcast %cst_68 : f32 to vector<8x1xf32>
    %132 = arith.divf %130, %131 : vector<8x1xf32>
    %133 = vector.broadcast %123 : vector<8x1xf32> to vector<8x16xf32>
    %134 = arith.subf %117, %133 : vector<8x16xf32>
    %cst_69 = arith.constant 9.99999996E-13 : f32
    %135 = vector.broadcast %cst_69 : f32 to vector<8x1xf32>
    %136 = arith.addf %132, %135 : vector<8x1xf32>
    %137 = math.rsqrt %136 : vector<8x1xf32>
    %138 = vector.broadcast %137 : vector<8x1xf32> to vector<8x16xf32>
    %139 = arith.mulf %134, %138 : vector<8x16xf32>
    %140 = vector.broadcast %118 : vector<1x16xf32> to vector<8x16xf32>
    %141 = arith.mulf %139, %140 : vector<8x16xf32>
    %142 = vector.broadcast %119 : vector<1x16xf32> to vector<8x16xf32>
    %143 = arith.addf %141, %142 : vector<8x16xf32>
    %144 = arith.truncf %110 : vector<8x32xf32> to vector<8x32xbf16>
    %cst_70 = arith.constant 0.000000e+00 : f32
    %145 = vector.broadcast %cst_70 : f32 to vector<8x32xf32>
    %c0_71 = arith.constant 0 : index
    %c0_72 = arith.constant 0 : index
    %146 = vector.load %arg13[%c0_71, %c0_72] : memref<32x64xbf16, #tpu.memory_space<vmem>>, vector<32x64xbf16>
    %cst_73 = arith.constant dense<0.000000e+00> : vector<8x64xf32>
    %147 = tpu.matmul %144, %146, %cst_73 {dimension_numbers = #tpu.dot_dimension_numbers<[1], [0], [0], [1], [0, 0, 1, 1], [], []>} : vector<8x32xbf16>, vector<32x64xbf16>, vector<8x64xf32> -> vector<8x64xf32>
    %c0_74 = arith.constant 0 : index
    %c0_75 = arith.constant 0 : index
    %148 = vector.load %arg14[%c0_74, %c0_75] : memref<1x64xf32, #tpu.memory_space<vmem>>, vector<1x64xf32>
    %149 = vector.broadcast %148 : vector<1x64xf32> to vector<8x64xf32>
    %150 = arith.addf %147, %149 : vector<8x64xf32>
    %cst_76 = arith.constant 5.000000e-01 : f32
    %151 = vector.broadcast %cst_76 : f32 to vector<8x64xf32>
    %152 = arith.mulf %151, %150 : vector<8x64xf32>
    %cst_77 = arith.constant 0.707106769 : f32
    %153 = vector.broadcast %cst_77 : f32 to vector<8x64xf32>
    %154 = arith.mulf %150, %153 : vector<8x64xf32>
    %155 = math.erf %154 : vector<8x64xf32>
    %cst_78 = arith.constant 1.000000e+00 : f32
    %156 = vector.broadcast %cst_78 : f32 to vector<8x64xf32>
    %157 = arith.addf %156, %155 : vector<8x64xf32>
    %158 = arith.mulf %152, %157 : vector<8x64xf32>
    %159 = arith.truncf %158 : vector<8x64xf32> to vector<8x64xbf16>
    %c0_79 = arith.constant 0 : index
    %c0_80 = arith.constant 0 : index
    %160 = vector.load %arg15[%c0_79, %c0_80] : memref<64x32xbf16, #tpu.memory_space<vmem>>, vector<64x32xbf16>
    %cst_81 = arith.constant dense<0.000000e+00> : vector<8x32xf32>
    %161 = tpu.matmul %159, %160, %cst_81 {dimension_numbers = #tpu.dot_dimension_numbers<[1], [0], [0], [1], [0, 0, 1, 1], [], []>} : vector<8x64xbf16>, vector<64x32xbf16>, vector<8x32xf32> -> vector<8x32xf32>
    %162 = arith.addf %145, %161 : vector<8x32xf32>
    %c0_82 = arith.constant 0 : index
    %c0_83 = arith.constant 0 : index
    %163 = vector.load %arg16[%c0_82, %c0_83] : memref<1x32xf32, #tpu.memory_space<vmem>>, vector<1x32xf32>
    %164 = vector.broadcast %163 : vector<1x32xf32> to vector<8x32xf32>
    %165 = arith.addf %162, %164 : vector<8x32xf32>
    %166 = arith.addf %165, %110 : vector<8x32xf32>
    %c0_84 = arith.constant 0 : index
    %c0_85 = arith.constant 0 : index
    %167 = vector.load %arg17[%c0_84, %c0_85] : memref<1x32xf32, #tpu.memory_space<vmem>>, vector<1x32xf32>
    %c0_86 = arith.constant 0 : index
    %c0_87 = arith.constant 0 : index
    %168 = vector.load %arg18[%c0_86, %c0_87] : memref<1x32xf32, #tpu.memory_space<vmem>>, vector<1x32xf32>
    %cst_88 = arith.constant dense<0.000000e+00> : vector<8xf32>
    %169 = vector.multi_reduction <add>, %166, %cst_88 [1] : vector<8x32xf32> to vector<8xf32>
    %170 = vector.shape_cast %169 : vector<8xf32> to vector<8x1xf32>
    %cst_89 = arith.constant 3.200000e+01 : f32
    %171 = vector.broadcast %cst_89 : f32 to vector<8x1xf32>
    %172 = arith.divf %170, %171 : vector<8x1xf32>
    %173 = vector.broadcast %172 : vector<8x1xf32> to vector<8x32xf32>
    %174 = arith.subf %166, %173 : vector<8x32xf32>
    %175 = vector.broadcast %172 : vector<8x1xf32> to vector<8x32xf32>
    %176 = arith.subf %166, %175 : vector<8x32xf32>
    %177 = arith.mulf %174, %176 : vector<8x32xf32>
    %cst_90 = arith.constant dense<0.000000e+00> : vector<8xf32>
    %178 = vector.multi_reduction <add>, %177, %cst_90 [1] : vector<8x32xf32> to vector<8xf32>
    %179 = vector.shape_cast %178 : vector<8xf32> to vector<8x1xf32>
    %cst_91 = arith.constant 3.200000e+01 : f32
    %180 = vector.broadcast %cst_91 : f32 to vector<8x1xf32>
    %181 = arith.divf %179, %180 : vector<8x1xf32>
    %182 = vector.broadcast %172 : vector<8x1xf32> to vector<8x32xf32>
    %183 = arith.subf %166, %182 : vector<8x32xf32>
    %cst_92 = arith.constant 9.99999996E-13 : f32
    %184 = vector.broadcast %cst_92 : f32 to vector<8x1xf32>
    %185 = arith.addf %181, %184 : vector<8x1xf32>
    %186 = math.rsqrt %185 : vector<8x1xf32>
    %187 = vector.broadcast %186 : vector<8x1xf32> to vector<8x32xf32>
    %188 = arith.mulf %183, %187 : vector<8x32xf32>
    %189 = vector.broadcast %167 : vector<1x32xf32> to vector<8x32xf32>
    %190 = arith.mulf %188, %189 : vector<8x32xf32>
    %191 = vector.broadcast %168 : vector<1x32xf32> to vector<8x32xf32>
    %192 = arith.addf %190, %191 : vector<8x32xf32>
    %193 = arith.truncf %143 : vector<8x16xf32> to vector<8x16xbf16>
    %cst_93 = arith.constant 0.000000e+00 : f32
    %194 = vector.broadcast %cst_93 : f32 to vector<8x16xf32>
    %c0_94 = arith.constant 0 : index
    %c0_95 = arith.constant 0 : index
    %195 = vector.load %arg29[%c0_94, %c0_95] : memref<16x32xbf16, #tpu.memory_space<vmem>>, vector<16x32xbf16>
    %cst_96 = arith.constant dense<0.000000e+00> : vector<8x32xf32>
    %196 = tpu.matmul %193, %195, %cst_96 {dimension_numbers = #tpu.dot_dimension_numbers<[1], [0], [0], [1], [0, 0, 1, 1], [], []>} : vector<8x16xbf16>, vector<16x32xbf16>, vector<8x32xf32> -> vector<8x32xf32>
    %c0_97 = arith.constant 0 : index
    %c0_98 = arith.constant 0 : index
    %197 = vector.load %arg30[%c0_97, %c0_98] : memref<1x32xf32, #tpu.memory_space<vmem>>, vector<1x32xf32>
    %198 = vector.broadcast %197 : vector<1x32xf32> to vector<8x32xf32>
    %199 = arith.addf %196, %198 : vector<8x32xf32>
    %cst_99 = arith.constant 5.000000e-01 : f32
    %200 = vector.broadcast %cst_99 : f32 to vector<8x32xf32>
    %201 = arith.mulf %200, %199 : vector<8x32xf32>
    %cst_100 = arith.constant 0.707106769 : f32
    %202 = vector.broadcast %cst_100 : f32 to vector<8x32xf32>
    %203 = arith.mulf %199, %202 : vector<8x32xf32>
    %204 = math.erf %203 : vector<8x32xf32>
    %cst_101 = arith.constant 1.000000e+00 : f32
    %205 = vector.broadcast %cst_101 : f32 to vector<8x32xf32>
    %206 = arith.addf %205, %204 : vector<8x32xf32>
    %207 = arith.mulf %201, %206 : vector<8x32xf32>
    %208 = arith.truncf %207 : vector<8x32xf32> to vector<8x32xbf16>
    %c0_102 = arith.constant 0 : index
    %c0_103 = arith.constant 0 : index
    %209 = vector.load %arg31[%c0_102, %c0_103] : memref<32x16xbf16, #tpu.memory_space<vmem>>, vector<32x16xbf16>
    %cst_104 = arith.constant dense<0.000000e+00> : vector<8x16xf32>
    %210 = tpu.matmul %208, %209, %cst_104 {dimension_numbers = #tpu.dot_dimension_numbers<[1], [0], [0], [1], [0, 0, 1, 1], [], []>} : vector<8x32xbf16>, vector<32x16xbf16>, vector<8x16xf32> -> vector<8x16xf32>
    %211 = arith.addf %194, %210 : vector<8x16xf32>
    %c0_105 = arith.constant 0 : index
    %c0_106 = arith.constant 0 : index
    %212 = vector.load %arg32[%c0_105, %c0_106] : memref<1x16xf32, #tpu.memory_space<vmem>>, vector<1x16xf32>
    %213 = vector.broadcast %212 : vector<1x16xf32> to vector<8x16xf32>
    %214 = arith.addf %211, %213 : vector<8x16xf32>
    %215 = arith.addf %214, %143 : vector<8x16xf32>
    %c0_107 = arith.constant 0 : index
    %c0_108 = arith.constant 0 : index
    %216 = vector.load %arg33[%c0_107, %c0_108] : memref<1x16xf32, #tpu.memory_space<vmem>>, vector<1x16xf32>
    %c0_109 = arith.constant 0 : index
    %c0_110 = arith.constant 0 : index
    %217 = vector.load %arg34[%c0_109, %c0_110] : memref<1x16xf32, #tpu.memory_space<vmem>>, vector<1x16xf32>
    %cst_111 = arith.constant dense<0.000000e+00> : vector<8xf32>
    %218 = vector.multi_reduction <add>, %215, %cst_111 [1] : vector<8x16xf32> to vector<8xf32>
    %219 = vector.shape_cast %218 : vector<8xf32> to vector<8x1xf32>
    %cst_112 = arith.constant 1.600000e+01 : f32
    %220 = vector.broadcast %cst_112 : f32 to vector<8x1xf32>
    %221 = arith.divf %219, %220 : vector<8x1xf32>
    %222 = vector.broadcast %221 : vector<8x1xf32> to vector<8x16xf32>
    %223 = arith.subf %215, %222 : vector<8x16xf32>
    %224 = vector.broadcast %221 : vector<8x1xf32> to vector<8x16xf32>
    %225 = arith.subf %215, %224 : vector<8x16xf32>
    %226 = arith.mulf %223, %225 : vector<8x16xf32>
    %cst_113 = arith.constant dense<0.000000e+00> : vector<8xf32>
    %227 = vector.multi_reduction <add>, %226, %cst_113 [1] : vector<8x16xf32> to vector<8xf32>
    %228 = vector.shape_cast %227 : vector<8xf32> to vector<8x1xf32>
    %cst_114 = arith.constant 1.600000e+01 : f32
    %229 = vector.broadcast %cst_114 : f32 to vector<8x1xf32>
    %230 = arith.divf %228, %229 : vector<8x1xf32>
    %231 = vector.broadcast %221 : vector<8x1xf32> to vector<8x16xf32>
    %232 = arith.subf %215, %231 : vector<8x16xf32>
    %cst_115 = arith.constant 9.99999996E-13 : f32
    %233 = vector.broadcast %cst_115 : f32 to vector<8x1xf32>
    %234 = arith.addf %230, %233 : vector<8x1xf32>
    %235 = math.rsqrt %234 : vector<8x1xf32>
    %236 = vector.broadcast %235 : vector<8x1xf32> to vector<8x16xf32>
    %237 = arith.mulf %232, %236 : vector<8x16xf32>
    %238 = vector.broadcast %216 : vector<1x16xf32> to vector<8x16xf32>
    %239 = arith.mulf %237, %238 : vector<8x16xf32>
    %240 = vector.broadcast %217 : vector<1x16xf32> to vector<8x16xf32>
    %241 = arith.addf %239, %240 : vector<8x16xf32>
    %242 = arith.truncf %192 : vector<8x32xf32> to vector<8x32xbf16>
    %c0_116 = arith.constant 0 : index
    %c0_117 = arith.constant 0 : index
    %c0_118 = arith.constant 0 : index
    %243 = vector.load %arg35[%c0_116, %c0_117, %c0_118] : memref<1x8x32xbf16, #tpu.memory_space<vmem>>, vector<1x8x32xbf16>
    %244 = vector.shape_cast %243 : vector<1x8x32xbf16> to vector<8x32xbf16>
    %245 = vector.shape_cast %242 : vector<8x32xbf16> to vector<1x8x32xbf16>
    tpu.vector_store %arg35[%c0_116, %c0_117, %c0_118], %245 {strides = array<i32>} : memref<1x8x32xbf16, #tpu.memory_space<vmem>>, vector<1x8x32xbf16>,
    %246 = arith.truncf %241 : vector<8x16xf32> to vector<8x16xbf16>
    %c0_119 = arith.constant 0 : index
    %c0_120 = arith.constant 0 : index
    %c0_121 = arith.constant 0 : index
    %247 = vector.load %arg36[%c0_119, %c0_120, %c0_121] : memref<1x8x16xbf16, #tpu.memory_space<vmem>>, vector<1x8x16xbf16>
    %248 = vector.shape_cast %247 : vector<1x8x16xbf16> to vector<8x16xbf16>
    %249 = vector.shape_cast %246 : vector<8x16xbf16> to vector<1x8x16xbf16>
    tpu.vector_store %arg36[%c0_119, %c0_120, %c0_121], %249 {strides = array<i32>} : memref<1x8x16xbf16, #tpu.memory_space<vmem>>, vector<1x8x16xbf16>,
    return
  }
  func.func @transform_0(%arg0: i32) -> (i32, i32, i32) {
    %c0_i32 = arith.constant 0 : i32
    %c0_i32_0 = arith.constant 0 : i32
    %c0_i32_1 = arith.constant 0 : i32
    return %arg0, %c0_i32, %c0_i32_0 : i32, i32, i32
  }
  func.func @transform_1(%arg0: i32) -> (i32, i32, i32) {
    %c0_i32 = arith.constant 0 : i32
    %c0_i32_0 = arith.constant 0 : i32
    %c0_i32_1 = arith.constant 0 : i32
    return %arg0, %c0_i32, %c0_i32_0 : i32, i32, i32
  }
  func.func @transform_2(%arg0: i32) -> (i32, i32) {
    %c0_i32 = arith.constant 0 : i32
    %c0_i32_0 = arith.constant 0 : i32
    %c0_i32_1 = arith.constant 0 : i32
    return %c0_i32, %c0_i32_0 : i32, i32
  }
  func.func @transform_3(%arg0: i32) -> (i32, i32) {
    %c0_i32 = arith.constant 0 : i32
    %c0_i32_0 = arith.constant 0 : i32
    %c0_i32_1 = arith.constant 0 : i32
    return %c0_i32, %c0_i32_0 : i32, i32
  }
  func.func @transform_4(%arg0: i32) -> (i32, i32) {
    %c0_i32 = arith.constant 0 : i32
    %c0_i32_0 = arith.constant 0 : i32
    %c0_i32_1 = arith.constant 0 : i32
    return %c0_i32, %c0_i32_0 : i32, i32
  }
  func.func @transform_5(%arg0: i32) -> (i32, i32) {
    %c0_i32 = arith.constant 0 : i32
    %c0_i32_0 = arith.constant 0 : i32
    %c0_i32_1 = arith.constant 0 : i32
    return %c0_i32, %c0_i32_0 : i32, i32
  }
  func.func @transform_6(%arg0: i32) -> (i32, i32) {
    %c0_i32 = arith.constant 0 : i32
    %c0_i32_0 = arith.constant 0 : i32
    %c0_i32_1 = arith.constant 0 : i32
    return %c0_i32, %c0_i32_0 : i32, i32
  }
  func.func @transform_7(%arg0: i32) -> (i32, i32) {
    %c0_i32 = arith.constant 0 : i32
    %c0_i32_0 = arith.constant 0 : i32
    %c0_i32_1 = arith.constant 0 : i32
    return %c0_i32, %c0_i32_0 : i32, i32
  }
  func.func @transform_8(%arg0: i32) -> (i32, i32) {
    %c0_i32 = arith.constant 0 : i32
    %c0_i32_0 = arith.constant 0 : i32
    %c0_i32_1 = arith.constant 0 : i32
    return %c0_i32, %c0_i32_0 : i32, i32
  }
  func.func @transform_9(%arg0: i32) -> (i32, i32) {
    %c0_i32 = arith.constant 0 : i32
    %c0_i32_0 = arith.constant 0 : i32
    %c0_i32_1 = arith.constant 0 : i32
    return %c0_i32, %c0_i32_0 : i32, i32
  }
  func.func @transform_10(%arg0: i32) -> (i32, i32) {
    %c0_i32 = arith.constant 0 : i32
    %c0_i32_0 = arith.constant 0 : i32
    %c0_i32_1 = arith.constant 0 : i32
    return %c0_i32, %c0_i32_0 : i32, i32
  }
  func.func @transform_11(%arg0: i32) -> (i32, i32) {
    %c0_i32 = arith.constant 0 : i32
    %c0_i32_0 = arith.constant 0 : i32
    %c0_i32_1 = arith.constant 0 : i32
    return %c0_i32, %c0_i32_0 : i32, i32
  }
  func.func @transform_12(%arg0: i32) -> (i32, i32) {
    %c0_i32 = arith.constant 0 : i32
    %c0_i32_0 = arith.constant 0 : i32
    %c0_i32_1 = arith.constant 0 : i32
    return %c0_i32, %c0_i32_0 : i32, i32
  }
  func.func @transform_13(%arg0: i32) -> (i32, i32) {
    %c0_i32 = arith.constant 0 : i32
    %c0_i32_0 = arith.constant 0 : i32
    %c0_i32_1 = arith.constant 0 : i32
    return %c0_i32, %c0_i32_0 : i32, i32
  }
  func.func @transform_14(%arg0: i32) -> (i32, i32) {
    %c0_i32 = arith.constant 0 : i32
    %c0_i32_0 = arith.constant 0 : i32
    %c0_i32_1 = arith.constant 0 : i32
    return %c0_i32, %c0_i32_0 : i32, i32
  }
  func.func @transform_15(%arg0: i32) -> (i32, i32) {
    %c0_i32 = arith.constant 0 : i32
    %c0_i32_0 = arith.constant 0 : i32
    %c0_i32_1 = arith.constant 0 : i32
    return %c0_i32, %c0_i32_0 : i32, i32
  }
  func.func @transform_16(%arg0: i32) -> (i32, i32) {
    %c0_i32 = arith.constant 0 : i32
    %c0_i32_0 = arith.constant 0 : i32
    %c0_i32_1 = arith.constant 0 : i32
    return %c0_i32, %c0_i32_0 : i32, i32
  }
  func.func @transform_17(%arg0: i32) -> (i32, i32) {
    %c0_i32 = arith.constant 0 : i32
    %c0_i32_0 = arith.constant 0 : i32
    %c0_i32_1 = arith.constant 0 : i32
    return %c0_i32, %c0_i32_0 : i32, i32
  }
  func.func @transform_18(%arg0: i32) -> (i32, i32) {
    %c0_i32 = arith.constant 0 : i32
    %c0_i32_0 = arith.constant 0 : i32
    %c0_i32_1 = arith.constant 0 : i32
    return %c0_i32, %c0_i32_0 : i32, i32
  }
  func.func @transform_19(%arg0: i32) -> (i32, i32) {
    %c0_i32 = arith.constant 0 : i32
    %c0_i32_0 = arith.constant 0 : i32
    %c0_i32_1 = arith.constant 0 : i32
    return %c0_i32, %c0_i32_0 : i32, i32
  }
  func.func @transform_20(%arg0: i32) -> (i32, i32) {
    %c0_i32 = arith.constant 0 : i32
    %c0_i32_0 = arith.constant 0 : i32
    %c0_i32_1 = arith.constant 0 : i32
    return %c0_i32, %c0_i32_0 : i32, i32
  }
  func.func @transform_21(%arg0: i32) -> (i32, i32) {
    %c0_i32 = arith.constant 0 : i32
    %c0_i32_0 = arith.constant 0 : i32
    %c0_i32_1 = arith.constant 0 : i32
    return %c0_i32, %c0_i32_0 : i32, i32
  }
  func.func @transform_22(%arg0: i32) -> (i32, i32) {
    %c0_i32 = arith.constant 0 : i32
    %c0_i32_0 = arith.constant 0 : i32
    %c0_i32_1 = arith.constant 0 : i32
    return %c0_i32, %c0_i32_0 : i32, i32
  }
  func.func @transform_23(%arg0: i32) -> (i32, i32) {
    %c0_i32 = arith.constant 0 : i32
    %c0_i32_0 = arith.constant 0 : i32
    %c0_i32_1 = arith.constant 0 : i32
    return %c0_i32, %c0_i32_0 : i32, i32
  }
  func.func @transform_24(%arg0: i32) -> (i32, i32) {
    %c0_i32 = arith.constant 0 : i32
    %c0_i32_0 = arith.constant 0 : i32
    %c0_i32_1 = arith.constant 0 : i32
    return %c0_i32, %c0_i32_0 : i32, i32
  }
  func.func @transform_25(%arg0: i32) -> (i32, i32) {
    %c0_i32 = arith.constant 0 : i32
    %c0_i32_0 = arith.constant 0 : i32
    %c0_i32_1 = arith.constant 0 : i32
    return %c0_i32, %c0_i32_0 : i32, i32
  }
  func.func @transform_26(%arg0: i32) -> (i32, i32) {
    %c0_i32 = arith.constant 0 : i32
    %c0_i32_0 = arith.constant 0 : i32
    %c0_i32_1 = arith.constant 0 : i32
    return %c0_i32, %c0_i32_0 : i32, i32
  }
  func.func @transform_27(%arg0: i32) -> (i32, i32) {
    %c0_i32 = arith.constant 0 : i32
    %c0_i32_0 = arith.constant 0 : i32
    %c0_i32_1 = arith.constant 0 : i32
    return %c0_i32, %c0_i32_0 : i32, i32
  }
  func.func @transform_28(%arg0: i32) -> (i32, i32) {
    %c0_i32 = arith.constant 0 : i32
    %c0_i32_0 = arith.constant 0 : i32
    %c0_i32_1 = arith.constant 0 : i32
    return %c0_i32, %c0_i32_0 : i32, i32
  }
  func.func @transform_29(%arg0: i32) -> (i32, i32) {
    %c0_i32 = arith.constant 0 : i32
    %c0_i32_0 = arith.constant 0 : i32
    %c0_i32_1 = arith.constant 0 : i32
    return %c0_i32, %c0_i32_0 : i32, i32
  }
  func.func @transform_30(%arg0: i32) -> (i32, i32) {
    %c0_i32 = arith.constant 0 : i32
    %c0_i32_0 = arith.constant 0 : i32
    %c0_i32_1 = arith.constant 0 : i32
    return %c0_i32, %c0_i32_0 : i32, i32
  }
  func.func @transform_31(%arg0: i32) -> (i32, i32) {
    %c0_i32 = arith.constant 0 : i32
    %c0_i32_0 = arith.constant 0 : i32
    %c0_i32_1 = arith.constant 0 : i32
    return %c0_i32, %c0_i32_0 : i32, i32
  }
  func.func @transform_32(%arg0: i32) -> (i32, i32) {
    %c0_i32 = arith.constant 0 : i32
    %c0_i32_0 = arith.constant 0 : i32
    %c0_i32_1 = arith.constant 0 : i32
    return %c0_i32, %c0_i32_0 : i32, i32
  }
  func.func @transform_33(%arg0: i32) -> (i32, i32) {
    %c0_i32 = arith.constant 0 : i32
    %c0_i32_0 = arith.constant 0 : i32
    %c0_i32_1 = arith.constant 0 : i32
    return %c0_i32, %c0_i32_0 : i32, i32
  }
  func.func @transform_34(%arg0: i32) -> (i32, i32, i32) {
    %c0_i32 = arith.constant 0 : i32
    %c0_i32_0 = arith.constant 0 : i32
    %c0_i32_1 = arith.constant 0 : i32
    return %arg0, %c0_i32, %c0_i32_0 : i32, i32, i32
  }
  func.func @transform_35(%arg0: i32) -> (i32, i32, i32) {
    %c0_i32 = arith.constant 0 : i32
    %c0_i32_0 = arith.constant 0 : i32
    %c0_i32_1 = arith.constant 0 : i32
    return %arg0, %c0_i32, %c0_i32_0 : i32, i32, i32
  }
}

</mosaic_0001>

<llo_original>
// kernel: tpu_custom_call.1
$region0: #{tpu_custom_call.1}
  #allocation0 [shape = 'u32[]', space=smem, size = 0x4, offset = 0x4, fixed_abs, tag = 'smem constant byte address 0x4 - core index']
  #allocation1 [shape = 'u32[144,128]{1,0:T(1,128)}', space=vmem, size = 0x12000, scoped, tag = 'internal scratch']
  %s0 = inlined_call_operand.smem [shape: u32[36], index: -1, kind: input, shape index: {}]
  %s1 = sld [smem:[%s0]]
  %s2 = scalar_lea.smem %s0, 1
  %s3 = sld [smem:[%s2]]
  %s4 = scalar_lea.smem %s0, 2
  %s5 = sld [smem:[%s4]]
  %s6 = scalar_lea.smem %s0, 3
  %s7 = sld [smem:[%s6]]
  %s8 = scalar_lea.smem %s0, 4
  %s9 = sld [smem:[%s8]]
  %s10 = scalar_lea.smem %s0, 5
  %s11 = sld [smem:[%s10]]
  %s12 = scalar_lea.smem %s0, 6
  %s13 = sld [smem:[%s12]]
  %s14 = scalar_lea.smem %s0, 7
  %s15 = sld [smem:[%s14]]
  %s16 = scalar_lea.smem %s0, 8
  %s17 = sld [smem:[%s16]]
  %s18 = scalar_lea.smem %s0, 9
  %s19 = sld [smem:[%s18]]
  %s20 = scalar_lea.smem %s0, 10
  %s21 = sld [smem:[%s20]]
  %s22 = scalar_lea.smem %s0, 11
  %s23 = sld [smem:[%s22]]
  %s24 = scalar_lea.smem %s0, 12
  %s25 = sld [smem:[%s24]]
  %s26 = scalar_lea.smem %s0, 13
  %s27 = sld [smem:[%s26]]
  %s28 = scalar_lea.smem %s0, 14
  %s29 = sld [smem:[%s28]]
  %s30 = scalar_lea.smem %s0, 15
  %s31 = sld [smem:[%s30]]
  %s32 = scalar_lea.smem %s0, 16
  %s33 = sld [smem:[%s32]]
  %s34 = scalar_lea.smem %s0, 17
  %s35 = sld [smem:[%s34]]
  %s36 = scalar_lea.smem %s0, 18
  %s37 = sld [smem:[%s36]]
  %s38 = scalar_lea.smem %s0, 19
  %s39 = sld [smem:[%s38]]
  %s40 = scalar_lea.smem %s0, 20
  %s41 = sld [smem:[%s40]]
  %s42 = scalar_lea.smem %s0, 21
  %s43 = sld [smem:[%s42]]
  %s44 = scalar_lea.smem %s0, 22
  %s45 = sld [smem:[%s44]]
  %s46 = scalar_lea.smem %s0, 23
  %s47 = sld [smem:[%s46]]
  %s48 = scalar_lea.smem %s0, 24
  %s49 = sld [smem:[%s48]]
  %s50 = scalar_lea.smem %s0, 25
  %s51 = sld [smem:[%s50]]
  %s52 = scalar_lea.smem %s0, 26
  %s53 = sld [smem:[%s52]]
  %s54 = scalar_lea.smem %s0, 27
  %s55 = sld [smem:[%s54]]
  %s56 = scalar_lea.smem %s0, 28
  %s57 = sld [smem:[%s56]]
  %s58 = scalar_lea.smem %s0, 29
  %s59 = sld [smem:[%s58]]
  %s60 = scalar_lea.smem %s0, 30
  %s61 = sld [smem:[%s60]]
  %s62 = scalar_lea.smem %s0, 31
  %s63 = sld [smem:[%s62]]
  %s64 = scalar_lea.smem %s0, 32
  %s65 = sld [smem:[%s64]]
  %s66 = scalar_lea.smem %s0, 33
  %s67 = sld [smem:[%s66]]
  %s68 = scalar_lea.smem %s0, 34
  %s69 = sld [smem:[%s68]]
  %s70 = scalar_lea.smem %s0, 35
  %s71 = sld [smem:[%s70]]
  %72 = xla_tuple %s69, %s71
  %s73 = sld [smem:[#allocation0]]
  $region225: #{tpu_custom_call.1} parent=0
    _
  %s75 = ssub.s32 1, %s73
  %s76 = scalar_select 0, %s75, %s73
  $region1: #{tpu_custom_call.1} parent=0
    #allocation2 [shape = 'u8[4096]{0}', space=vmem, size = 0x1000, scoped, tag = 'input window, operand 0']
    #allocation3 [shape = 's32[2]{0}', space=sflag, size = 0x8, scoped, tag = 'scoped memory for tpu_custom_call.1']
    #allocation4 [shape = 's32[2]{0}', space=sflag, size = 0x8, scoped, tag = 'scoped memory for tpu_custom_call.1']
    #allocation5 [shape = 'u8[4096]{0}', space=vmem, size = 0x1000, scoped, tag = 'input window, operand 1']
    #allocation6 [shape = 's32[2]{0}', space=sflag, size = 0x8, scoped, tag = 'scoped memory for tpu_custom_call.1']
    #allocation7 [shape = 'u8[512]{0}', space=vmem, size = 0x400, scoped, tag = 'input window, operand 3, single buffered']
    #allocation8 [shape = 'u8[512]{0}', space=vmem, size = 0x400, scoped, tag = 'input window, operand 5, single buffered']
    #allocation9 [shape = 's32[1]{0}', space=sflag, size = 0x4, scoped, tag = 'scoped memory for tpu_custom_call.1']
    #allocation10 [shape = 'u8[512]{0}', space=vmem, size = 0x400, scoped, tag = 'input window, operand 7, single buffered']
    #allocation11 [shape = 'u8[512]{0}', space=vmem, size = 0x400, scoped, tag = 'input window, operand 9, single buffered']
    #allocation12 [shape = 's32[1]{0}', space=sflag, size = 0x4, scoped, tag = 'scoped memory for tpu_custom_call.1']
    #allocation13 [shape = 'u8[512]{0}', space=vmem, size = 0x400, scoped, tag = 'input window, operand 10, single buffered']
    #allocation14 [shape = 'u8[512]{0}', space=vmem, size = 0x400, scoped, tag = 'input window, operand 11, single buffered']
    #allocation15 [shape = 's32[1]{0}', space=sflag, size = 0x4, scoped, tag = 'scoped memory for tpu_custom_call.1']
    #allocation16 [shape = 'u8[512]{0}', space=vmem, size = 0x400, scoped, tag = 'input window, operand 13, single buffered']
    #allocation17 [shape = 'u8[512]{0}', space=vmem, size = 0x400, scoped, tag = 'input window, operand 15, single buffered']
    #allocation18 [shape = 's32[1]{0}', space=sflag, size = 0x4, scoped, tag = 'scoped memory for tpu_custom_call.1']
    #allocation19 [shape = 'u8[512]{0}', space=vmem, size = 0x400, scoped, tag = 'input window, operand 16, single buffered']
    #allocation20 [shape = 'u8[512]{0}', space=vmem, size = 0x400, scoped, tag = 'input window, operand 17, single buffered']
    #allocation21 [shape = 's32[1]{0}', space=sflag, size = 0x4, scoped, tag = 'scoped memory for tpu_custom_call.1']
    #allocation22 [shape = 'u8[4096]{0}', space=vmem, size = 0x1000, scoped, tag = 'output window, operand 0']
    #allocation23 [shape = 'u8[4096]{0}', space=vmem, size = 0x1000, scoped, tag = 'output window, operand 1']
    #allocation24 [shape = 's32[2]{0}', space=sflag, size = 0x8, scoped, tag = 'scoped memory for tpu_custom_call.1']
    %77 = vsyncpa [#allocation3], 0
    %s78 = scalar_lea.sflag [#allocation3], 1
    %79 = vsyncpa %s78, 0
    %80 = vsyncpa [#allocation6], 0
    %s81 = scalar_lea.sflag [#allocation6], 1
    %82 = vsyncpa %s81, 0
    %83 = vsyncpa [#allocation9], 0
    %84 = vsyncpa [#allocation12], 0
    %85 = vsyncpa [#allocation15], 0
    %86 = vsyncpa [#allocation18], 0
    %87 = vsyncpa [#allocation21], 0
    %88 = vsyncpa [#allocation4], 0
    %s89 = scalar_lea.sflag [#allocation4], 1
    %90 = vsyncpa %s89, 0
    %91 = vsyncpa [#allocation24], 0
    %s92 = scalar_lea.sflag [#allocation24], 1
    %93 = vsyncpa %s92, 0
    loop: start=0, step=1, limit=4
    $region2: #{tpu_custom_call.1} parent=1 // loop_pre_header
      _
    $region3: #{tpu_custom_call.1} parent=1 // loop_header
      %s95 = sphi 0, %s99
      %p96 = scmp.ge.s32.totalorder %s95, 4
      %s105 = sphi 0, %s107
      %s108 = sphi 0, %s105
      %s109 = sphi 0, %s108
      %s125 = sphi 0, %s109
      %s131 = sphi 0, %s133
      %s134 = sphi 0, %s131
      %s135 = sphi 0, %s134
      %s151 = sphi 0, %s135
      %s155 = sphi 0, %s155
      %s157 = sphi 0, %s155
      %s158 = sphi 0, %s157
      %s172 = sphi 0, %s158
      %s176 = sphi 0, %s176
      %s178 = sphi 0, %s176
      %s179 = sphi 0, %s178
      %s193 = sphi 0, %s179
      %s197 = sphi 0, %s197
      %s199 = sphi 0, %s197
      %s200 = sphi 0, %s199
      %s214 = sphi 0, %s200
      %s218 = sphi 0, %s218
      %s220 = sphi 0, %s218
      %s221 = sphi 0, %s220
      %s235 = sphi 0, %s221
      %s239 = sphi 0, %s239
      %s241 = sphi 0, %s239
      %s242 = sphi 0, %s241
      %s256 = sphi 0, %s242
      %s260 = sphi 0, %s260
      %s262 = sphi 0, %s260
      %s263 = sphi 0, %s262
      %s277 = sphi 0, %s263
      %s281 = sphi 0, %s281
      %s283 = sphi 0, %s281
      %s284 = sphi 0, %s283
      %s298 = sphi 0, %s284
      %s302 = sphi 0, %s302
      %s304 = sphi 0, %s302
      %s305 = sphi 0, %s304
      %s319 = sphi 0, %s305
      %s323 = sphi 0, %s323
      %s325 = sphi 0, %s323
      %s326 = sphi 0, %s325
      %s340 = sphi 0, %s326
      %s344 = sphi 0, %s344
      %s346 = sphi 0, %s344
      %s347 = sphi 0, %s346
      %s361 = sphi 0, %s347
      %s365 = sphi 0, %s365
      %s367 = sphi 0, %s365
      %s368 = sphi 0, %s367
      %s382 = sphi 0, %s368
      %s386 = sphi 0, %s386
      %s388 = sphi 0, %s386
      %s389 = sphi 0, %s388
      %s403 = sphi 0, %s389
      %s407 = sphi 0, %s407
      %s409 = sphi 0, %s407
      %s410 = sphi 0, %s409
      %s424 = sphi 0, %s410
      %s428 = sphi 0, %s428
      %s430 = sphi 0, %s428
      %s431 = sphi 0, %s430
      %s445 = sphi 0, %s431
      %s449 = sphi 0, %s449
      %s451 = sphi 0, %s449
      %s452 = sphi 0, %s451
      %s466 = sphi 0, %s452
      %s470 = sphi 0, %s470
      %s472 = sphi 0, %s470
      %s473 = sphi 0, %s472
      %s487 = sphi 0, %s473
      %s491 = sphi 0, %s491
      %s493 = sphi 0, %s491
      %s494 = sphi 0, %s493
      %s508 = sphi 0, %s494
      %s512 = sphi 0, %s512
      %s514 = sphi 0, %s512
      %s515 = sphi 0, %s514
      %s529 = sphi 0, %s515
      %s533 = sphi 0, %s533
      %s535 = sphi 0, %s533
      %s536 = sphi 0, %s535
      %s550 = sphi 0, %s536
      %s554 = sphi 0, %s554
      %s556 = sphi 0, %s554
      %s557 = sphi 0, %s556
      %s571 = sphi 0, %s557
      %s575 = sphi 0, %s575
      %s577 = sphi 0, %s575
      %s578 = sphi 0, %s577
      %s592 = sphi 0, %s578
      %s596 = sphi 0, %s596
      %s598 = sphi 0, %s596
      %s599 = sphi 0, %s598
      %s613 = sphi 0, %s599
      %s617 = sphi 0, %s617
      %s619 = sphi 0, %s617
      %s620 = sphi 0, %s619
      %s634 = sphi 0, %s620
      %s638 = sphi 0, %s638
      %s640 = sphi 0, %s638
      %s641 = sphi 0, %s640
      %s655 = sphi 0, %s641
      %s659 = sphi 0, %s659
      %s661 = sphi 0, %s659
      %s662 = sphi 0, %s661
      %s676 = sphi 0, %s662
      %s680 = sphi 0, %s680
      %s682 = sphi 0, %s680
      %s683 = sphi 0, %s682
      %s697 = sphi 0, %s683
      %s701 = sphi 0, %s701
      %s703 = sphi 0, %s701
      %s704 = sphi 0, %s703
      %s718 = sphi 0, %s704
      %s722 = sphi 0, %s722
      %s724 = sphi 0, %s722
      %s725 = sphi 0, %s724
      %s739 = sphi 0, %s725
      %s743 = sphi 0, %s743
      %s745 = sphi 0, %s743
      %s746 = sphi 0, %s745
      %s760 = sphi 0, %s746
      %s764 = sphi 0, %s764
      %s766 = sphi 0, %s764
      %s767 = sphi 0, %s766
      %s781 = sphi 0, %s767
      %s785 = sphi 0, %s785
      %s787 = sphi 0, %s785
      %s788 = sphi 0, %s787
      %s802 = sphi 0, %s788
      %s806 = sphi 0, %s806
      %s808 = sphi 0, %s806
      %s809 = sphi 0, %s808
      %s823 = sphi 0, %s809
      %s829 = sphi 0, %s831
      %s832 = sphi 0, %s829
      %s833 = sphi 0, %s832
      %s849 = sphi 0, %s833
      %s855 = sphi 0, %s857
      %s858 = sphi 0, %s855
      %s859 = sphi 0, %s858
      %s875 = sphi 0, %s859
    $region4: #{tpu_custom_call.1} parent=1 // loop_header_branch
      %98 = sbr.rel (%p96) target = $region8
    $region5: #{tpu_custom_call.1} parent=1 // loop_body
      %s100 = ssub.s32 %s95, 1
      %s101 = ssub.s32 %s95, 2
      %s102 = sadd.s32 %s95, 1
      %s103 = ssub.s32 %s95, %s102
      %p104 = scmp.eq.s32.totalorder %s103, 0
      %s106 = sadd.s32 %s105, 1
      %s107 = scalar_select %p104, %s105, %s106
      %p110 = pneg %p104
      %p111 = scmp.eq.s32.totalorder %s95, 1
      %p112 = por %p110, %p111
      %p113 = scmp.ne.s32.totalorder %s105, %s108
      %p114 = scmp.eq.s32.totalorder %s95, 0
      %p115 = por %p113, %p114
      %p116 = scmp.ne.s32.totalorder %s105, %s108
      %p117 = scmp.eq.s32.totalorder %s100, 1
      %p118 = por %p116, %p117
      %p119 = scmp.ne.s32.totalorder %s108, %s109
      %p120 = scmp.eq.s32.totalorder %s100, 0
      %p121 = por %p119, %p120
      %p122 = scmp.ne.s32.totalorder %s108, %s109
      %p123 = scmp.eq.s32.totalorder %s101, 1
      %p124 = por %p122, %p123
      %p126 = scmp.ne.s32.totalorder %s109, %s125
      %p127 = scmp.eq.s32.totalorder %s101, 0
      %p128 = por %p126, %p127
      %s129 = ssub.s32 %s95, %s102
      %p130 = scmp.eq.s32.totalorder %s129, 0
      %s132 = sadd.s32 %s131, 1
      %s133 = scalar_select %p130, %s131, %s132
      %p136 = pneg %p130
      %p137 = scmp.eq.s32.totalorder %s95, 1
      %p138 = por %p136, %p137
      %p139 = scmp.ne.s32.totalorder %s131, %s134
      %p140 = scmp.eq.s32.totalorder %s95, 0
      %p141 = por %p139, %p140
      %p142 = scmp.ne.s32.totalorder %s131, %s134
      %p143 = scmp.eq.s32.totalorder %s100, 1
      %p144 = por %p142, %p143
      %p145 = scmp.ne.s32.totalorder %s134, %s135
      %p146 = scmp.eq.s32.totalorder %s100, 0
      %p147 = por %p145, %p146
      %p148 = scmp.ne.s32.totalorder %s134, %s135
      %p149 = scmp.eq.s32.totalorder %s101, 1
      %p150 = por %p148, %p149
      %p152 = scmp.ne.s32.totalorder %s135, %s151
      %p153 = scmp.eq.s32.totalorder %s101, 0
      %p154 = por %p152, %p153
      %s156 = sadd.s32 %s155, 1
      %p159 = scmp.eq.s32.totalorder %s95, 1
      %p160 = scmp.ne.s32.totalorder %s155, %s157
      %p161 = scmp.eq.s32.totalorder %s95, 0
      %p162 = por %p160, %p161
      %p163 = scmp.ne.s32.totalorder %s155, %s157
      %p164 = scmp.eq.s32.totalorder %s100, 1
      %p165 = por %p163, %p164
      %p166 = scmp.ne.s32.totalorder %s157, %s158
      %p167 = scmp.eq.s32.totalorder %s100, 0
      %p168 = por %p166, %p167
      %p169 = scmp.ne.s32.totalorder %s157, %s158
      %p170 = scmp.eq.s32.totalorder %s101, 1
      %p171 = por %p169, %p170
      %p173 = scmp.ne.s32.totalorder %s158, %s172
      %p174 = scmp.eq.s32.totalorder %s101, 0
      %p175 = por %p173, %p174
      %s177 = sadd.s32 %s176, 1
      %p180 = scmp.eq.s32.totalorder %s95, 1
      %p181 = scmp.ne.s32.totalorder %s176, %s178
      %p182 = scmp.eq.s32.totalorder %s95, 0
      %p183 = por %p181, %p182
      %p184 = scmp.ne.s32.totalorder %s176, %s178
      %p185 = scmp.eq.s32.totalorder %s100, 1
      %p186 = por %p184, %p185
      %p187 = scmp.ne.s32.totalorder %s178, %s179
      %p188 = scmp.eq.s32.totalorder %s100, 0
      %p189 = por %p187, %p188
      %p190 = scmp.ne.s32.totalorder %s178, %s179
      %p191 = scmp.eq.s32.totalorder %s101, 1
      %p192 = por %p190, %p191
      %p194 = scmp.ne.s32.totalorder %s179, %s193
      %p195 = scmp.eq.s32.totalorder %s101, 0
      %p196 = por %p194, %p195
      %s198 = sadd.s32 %s197, 1
      %p201 = scmp.eq.s32.totalorder %s95, 1
      %p202 = scmp.ne.s32.totalorder %s197, %s199
      %p203 = scmp.eq.s32.totalorder %s95, 0
      %p204 = por %p202, %p203
      %p205 = scmp.ne.s32.totalorder %s197, %s199
      %p206 = scmp.eq.s32.totalorder %s100, 1
      %p207 = por %p205, %p206
      %p208 = scmp.ne.s32.totalorder %s199, %s200
      %p209 = scmp.eq.s32.totalorder %s100, 0
      %p210 = por %p208, %p209
      %p211 = scmp.ne.s32.totalorder %s199, %s200
      %p212 = scmp.eq.s32.totalorder %s101, 1
      %p213 = por %p211, %p212
      %p215 = scmp.ne.s32.totalorder %s200, %s214
      %p216 = scmp.eq.s32.totalorder %s101, 0
      %p217 = por %p215, %p216
      %s219 = sadd.s32 %s218, 1
      %p222 = scmp.eq.s32.totalorder %s95, 1
      %p223 = scmp.ne.s32.totalorder %s218, %s220
      %p224 = scmp.eq.s32.totalorder %s95, 0
      %p225 = por %p223, %p224
      %p226 = scmp.ne.s32.totalorder %s218, %s220
      %p227 = scmp.eq.s32.totalorder %s100, 1
      %p228 = por %p226, %p227
      %p229 = scmp.ne.s32.totalorder %s220, %s221
      %p230 = scmp.eq.s32.totalorder %s100, 0
      %p231 = por %p229, %p230
      %p232 = scmp.ne.s32.totalorder %s220, %s221
      %p233 = scmp.eq.s32.totalorder %s101, 1
      %p234 = por %p232, %p233
      %p236 = scmp.ne.s32.totalorder %s221, %s235
      %p237 = scmp.eq.s32.totalorder %s101, 0
      %p238 = por %p236, %p237
      %s240 = sadd.s32 %s239, 1
      %p243 = scmp.eq.s32.totalorder %s95, 1
      %p244 = scmp.ne.s32.totalorder %s239, %s241
      %p245 = scmp.eq.s32.totalorder %s95, 0
      %p246 = por %p244, %p245
      %p247 = scmp.ne.s32.totalorder %s239, %s241
      %p248 = scmp.eq.s32.totalorder %s100, 1
      %p249 = por %p247, %p248
      %p250 = scmp.ne.s32.totalorder %s241, %s242
      %p251 = scmp.eq.s32.totalorder %s100, 0
      %p252 = por %p250, %p251
      %p253 = scmp.ne.s32.totalorder %s241, %s242
      %p254 = scmp.eq.s32.totalorder %s101, 1
      %p255 = por %p253, %p254
      %p257 = scmp.ne.s32.totalorder %s242, %s256
      %p258 = scmp.eq.s32.totalorder %s101, 0
      %p259 = por %p257, %p258
      %s261 = sadd.s32 %s260, 1
      %p264 = scmp.eq.s32.totalorder %s95, 1
      %p265 = scmp.ne.s32.totalorder %s260, %s262
      %p266 = scmp.eq.s32.totalorder %s95, 0
      %p267 = por %p265, %p266
      %p268 = scmp.ne.s32.totalorder %s260, %s262
      %p269 = scmp.eq.s32.totalorder %s100, 1
      %p270 = por %p268, %p269
      %p271 = scmp.ne.s32.totalorder %s262, %s263
      %p272 = scmp.eq.s32.totalorder %s100, 0
      %p273 = por %p271, %p272
      %p274 = scmp.ne.s32.totalorder %s262, %s263
      %p275 = scmp.eq.s32.totalorder %s101, 1
      %p276 = por %p274, %p275
      %p278 = scmp.ne.s32.totalorder %s263, %s277
      %p279 = scmp.eq.s32.totalorder %s101, 0
      %p280 = por %p278, %p279
      %s282 = sadd.s32 %s281, 1
      %p285 = scmp.eq.s32.totalorder %s95, 1
      %p286 = scmp.ne.s32.totalorder %s281, %s283
      %p287 = scmp.eq.s32.totalorder %s95, 0
      %p288 = por %p286, %p287
      %p289 = scmp.ne.s32.totalorder %s281, %s283
      %p290 = scmp.eq.s32.totalorder %s100, 1
      %p291 = por %p289, %p290
      %p292 = scmp.ne.s32.totalorder %s283, %s284
      %p293 = scmp.eq.s32.totalorder %s100, 0
      %p294 = por %p292, %p293
      %p295 = scmp.ne.s32.totalorder %s283, %s284
      %p296 = scmp.eq.s32.totalorder %s101, 1
      %p297 = por %p295, %p296
      %p299 = scmp.ne.s32.totalorder %s284, %s298
      %p300 = scmp.eq.s32.totalorder %s101, 0
      %p301 = por %p299, %p300
      %s303 = sadd.s32 %s302, 1
      %p306 = scmp.eq.s32.totalorder %s95, 1
      %p307 = scmp.ne.s32.totalorder %s302, %s304
      %p308 = scmp.eq.s32.totalorder %s95, 0
      %p309 = por %p307, %p308
      %p310 = scmp.ne.s32.totalorder %s302, %s304
      %p311 = scmp.eq.s32.totalorder %s100, 1
      %p312 = por %p310, %p311
      %p313 = scmp.ne.s32.totalorder %s304, %s305
      %p314 = scmp.eq.s32.totalorder %s100, 0
      %p315 = por %p313, %p314
      %p316 = scmp.ne.s32.totalorder %s304, %s305
      %p317 = scmp.eq.s32.totalorder %s101, 1
      %p318 = por %p316, %p317
      %p320 = scmp.ne.s32.totalorder %s305, %s319
      %p321 = scmp.eq.s32.totalorder %s101, 0
      %p322 = por %p320, %p321
      %s324 = sadd.s32 %s323, 1
      %p327 = scmp.eq.s32.totalorder %s95, 1
      %p328 = scmp.ne.s32.totalorder %s323, %s325
      %p329 = scmp.eq.s32.totalorder %s95, 0
      %p330 = por %p328, %p329
      %p331 = scmp.ne.s32.totalorder %s323, %s325
      %p332 = scmp.eq.s32.totalorder %s100, 1
      %p333 = por %p331, %p332
      %p334 = scmp.ne.s32.totalorder %s325, %s326
      %p335 = scmp.eq.s32.totalorder %s100, 0
      %p336 = por %p334, %p335
      %p337 = scmp.ne.s32.totalorder %s325, %s326
      %p338 = scmp.eq.s32.totalorder %s101, 1
      %p339 = por %p337, %p338
      %p341 = scmp.ne.s32.totalorder %s326, %s340
      %p342 = scmp.eq.s32.totalorder %s101, 0
      %p343 = por %p341, %p342
      %s345 = sadd.s32 %s344, 1
      %p348 = scmp.eq.s32.totalorder %s95, 1
      %p349 = scmp.ne.s32.totalorder %s344, %s346
      %p350 = scmp.eq.s32.totalorder %s95, 0
      %p351 = por %p349, %p350
      %p352 = scmp.ne.s32.totalorder %s344, %s346
      %p353 = scmp.eq.s32.totalorder %s100, 1
      %p354 = por %p352, %p353
      %p355 = scmp.ne.s32.totalorder %s346, %s347
      %p356 = scmp.eq.s32.totalorder %s100, 0
      %p357 = por %p355, %p356
      %p358 = scmp.ne.s32.totalorder %s346, %s347
      %p359 = scmp.eq.s32.totalorder %s101, 1
      %p360 = por %p358, %p359
      %p362 = scmp.ne.s32.totalorder %s347, %s361
      %p363 = scmp.eq.s32.totalorder %s101, 0
      %p364 = por %p362, %p363
      %s366 = sadd.s32 %s365, 1
      %p369 = scmp.eq.s32.totalorder %s95, 1
      %p370 = scmp.ne.s32.totalorder %s365, %s367
      %p371 = scmp.eq.s32.totalorder %s95, 0
      %p372 = por %p370, %p371
      %p373 = scmp.ne.s32.totalorder %s365, %s367
      %p374 = scmp.eq.s32.totalorder %s100, 1
      %p375 = por %p373, %p374
      %p376 = scmp.ne.s32.totalorder %s367, %s368
      %p377 = scmp.eq.s32.totalorder %s100, 0
      %p378 = por %p376, %p377
      %p379 = scmp.ne.s32.totalorder %s367, %s368
      %p380 = scmp.eq.s32.totalorder %s101, 1
      %p381 = por %p379, %p380
      %p383 = scmp.ne.s32.totalorder %s368, %s382
      %p384 = scmp.eq.s32.totalorder %s101, 0
      %p385 = por %p383, %p384
      %s387 = sadd.s32 %s386, 1
      %p390 = scmp.eq.s32.totalorder %s95, 1
      %p391 = scmp.ne.s32.totalorder %s386, %s388
      %p392 = scmp.eq.s32.totalorder %s95, 0
      %p393 = por %p391, %p392
      %p394 = scmp.ne.s32.totalorder %s386, %s388
      %p395 = scmp.eq.s32.totalorder %s100, 1
      %p396 = por %p394, %p395
      %p397 = scmp.ne.s32.totalorder %s388, %s389
      %p398 = scmp.eq.s32.totalorder %s100, 0
      %p399 = por %p397, %p398
      %p400 = scmp.ne.s32.totalorder %s388, %s389
      %p401 = scmp.eq.s32.totalorder %s101, 1
      %p402 = por %p400, %p401
      %p404 = scmp.ne.s32.totalorder %s389, %s403
      %p405 = scmp.eq.s32.totalorder %s101, 0
      %p406 = por %p404, %p405
      %s408 = sadd.s32 %s407, 1
      %p411 = scmp.eq.s32.totalorder %s95, 1
      %p412 = scmp.ne.s32.totalorder %s407, %s409
      %p413 = scmp.eq.s32.totalorder %s95, 0
      %p414 = por %p412, %p413
      %p415 = scmp.ne.s32.totalorder %s407, %s409
      %p416 = scmp.eq.s32.totalorder %s100, 1
      %p417 = por %p415, %p416
      %p418 = scmp.ne.s32.totalorder %s409, %s410
      %p419 = scmp.eq.s32.totalorder %s100, 0
      %p420 = por %p418, %p419
      %p421 = scmp.ne.s32.totalorder %s409, %s410
      %p422 = scmp.eq.s32.totalorder %s101, 1
      %p423 = por %p421, %p422
      %p425 = scmp.ne.s32.totalorder %s410, %s424
      %p426 = scmp.eq.s32.totalorder %s101, 0
      %p427 = por %p425, %p426
      %s429 = sadd.s32 %s428, 1
      %p432 = scmp.eq.s32.totalorder %s95, 1
      %p433 = scmp.ne.s32.totalorder %s428, %s430
      %p434 = scmp.eq.s32.totalorder %s95, 0
      %p435 = por %p433, %p434
      %p436 = scmp.ne.s32.totalorder %s428, %s430
      %p437 = scmp.eq.s32.totalorder %s100, 1
      %p438 = por %p436, %p437
      %p439 = scmp.ne.s32.totalorder %s430, %s431
      %p440 = scmp.eq.s32.totalorder %s100, 0
      %p441 = por %p439, %p440
      %p442 = scmp.ne.s32.totalorder %s430, %s431
      %p443 = scmp.eq.s32.totalorder %s101, 1
      %p444 = por %p442, %p443
      %p446 = scmp.ne.s32.totalorder %s431, %s445
      %p447 = scmp.eq.s32.totalorder %s101, 0
      %p448 = por %p446, %p447
      %s450 = sadd.s32 %s449, 1
      %p453 = scmp.eq.s32.totalorder %s95, 1
      %p454 = scmp.ne.s32.totalorder %s449, %s451
      %p455 = scmp.eq.s32.totalorder %s95, 0
      %p456 = por %p454, %p455
      %p457 = scmp.ne.s32.totalorder %s449, %s451
      %p458 = scmp.eq.s32.totalorder %s100, 1
      %p459 = por %p457, %p458
      %p460 = scmp.ne.s32.totalorder %s451, %s452
      %p461 = scmp.eq.s32.totalorder %s100, 0
      %p462 = por %p460, %p461
      %p463 = scmp.ne.s32.totalorder %s451, %s452
      %p464 = scmp.eq.s32.totalorder %s101, 1
      %p465 = por %p463, %p464
      %p467 = scmp.ne.s32.totalorder %s452, %s466
      %p468 = scmp.eq.s32.totalorder %s101, 0
      %p469 = por %p467, %p468
      %s471 = sadd.s32 %s470, 1
      %p474 = scmp.eq.s32.totalorder %s95, 1
      %p475 = scmp.ne.s32.totalorder %s470, %s472
      %p476 = scmp.eq.s32.totalorder %s95, 0
      %p477 = por %p475, %p476
      %p478 = scmp.ne.s32.totalorder %s470, %s472
      %p479 = scmp.eq.s32.totalorder %s100, 1
      %p480 = por %p478, %p479
      %p481 = scmp.ne.s32.totalorder %s472, %s473
      %p482 = scmp.eq.s32.totalorder %s100, 0
      %p483 = por %p481, %p482
      %p484 = scmp.ne.s32.totalorder %s472, %s473
      %p485 = scmp.eq.s32.totalorder %s101, 1
      %p486 = por %p484, %p485
      %p488 = scmp.ne.s32.totalorder %s473, %s487
      %p489 = scmp.eq.s32.totalorder %s101, 0
      %p490 = por %p488, %p489
      %s492 = sadd.s32 %s491, 1
      %p495 = scmp.eq.s32.totalorder %s95, 1
      %p496 = scmp.ne.s32.totalorder %s491, %s493
      %p497 = scmp.eq.s32.totalorder %s95, 0
      %p498 = por %p496, %p497
      %p499 = scmp.ne.s32.totalorder %s491, %s493
      %p500 = scmp.eq.s32.totalorder %s100, 1
      %p501 = por %p499, %p500
      %p502 = scmp.ne.s32.totalorder %s493, %s494
      %p503 = scmp.eq.s32.totalorder %s100, 0
      %p504 = por %p502, %p503
      %p505 = scmp.ne.s32.totalorder %s493, %s494
      %p506 = scmp.eq.s32.totalorder %s101, 1
      %p507 = por %p505, %p506
      %p509 = scmp.ne.s32.totalorder %s494, %s508
      %p510 = scmp.eq.s32.totalorder %s101, 0
      %p511 = por %p509, %p510
      %s513 = sadd.s32 %s512, 1
      %p516 = scmp.eq.s32.totalorder %s95, 1
      %p517 = scmp.ne.s32.totalorder %s512, %s514
      %p518 = scmp.eq.s32.totalorder %s95, 0
      %p519 = por %p517, %p518
      %p520 = scmp.ne.s32.totalorder %s512, %s514
      %p521 = scmp.eq.s32.totalorder %s100, 1
      %p522 = por %p520, %p521
      %p523 = scmp.ne.s32.totalorder %s514, %s515
      %p524 = scmp.eq.s32.totalorder %s100, 0
      %p525 = por %p523, %p524
      %p526 = scmp.ne.s32.totalorder %s514, %s515
      %p527 = scmp.eq.s32.totalorder %s101, 1
      %p528 = por %p526, %p527
      %p530 = scmp.ne.s32.totalorder %s515, %s529
      %p531 = scmp.eq.s32.totalorder %s101, 0
      %p532 = por %p530, %p531
      %s534 = sadd.s32 %s533, 1
      %p537 = scmp.eq.s32.totalorder %s95, 1
      %p538 = scmp.ne.s32.totalorder %s533, %s535
      %p539 = scmp.eq.s32.totalorder %s95, 0
      %p540 = por %p538, %p539
      %p541 = scmp.ne.s32.totalorder %s533, %s535
      %p542 = scmp.eq.s32.totalorder %s100, 1
      %p543 = por %p541, %p542
      %p544 = scmp.ne.s32.totalorder %s535, %s536
      %p545 = scmp.eq.s32.totalorder %s100, 0
      %p546 = por %p544, %p545
      %p547 = scmp.ne.s32.totalorder %s535, %s536
      %p548 = scmp.eq.s32.totalorder %s101, 1
      %p549 = por %p547, %p548
      %p551 = scmp.ne.s32.totalorder %s536, %s550
      %p552 = scmp.eq.s32.totalorder %s101, 0
      %p553 = por %p551, %p552
      %s555 = sadd.s32 %s554, 1
      %p558 = scmp.eq.s32.totalorder %s95, 1
      %p559 = scmp.ne.s32.totalorder %s554, %s556
      %p560 = scmp.eq.s32.totalorder %s95, 0
      %p561 = por %p559, %p560
      %p562 = scmp.ne.s32.totalorder %s554, %s556
      %p563 = scmp.eq.s32.totalorder %s100, 1
      %p564 = por %p562, %p563
      %p565 = scmp.ne.s32.totalorder %s556, %s557
      %p566 = scmp.eq.s32.totalorder %s100, 0
      %p567 = por %p565, %p566
      %p568 = scmp.ne.s32.totalorder %s556, %s557
      %p569 = scmp.eq.s32.totalorder %s101, 1
      %p570 = por %p568, %p569
      %p572 = scmp.ne.s32.totalorder %s557, %s571
      %p573 = scmp.eq.s32.totalorder %s101, 0
      %p574 = por %p572, %p573
      %s576 = sadd.s32 %s575, 1
      %p579 = scmp.eq.s32.totalorder %s95, 1
      %p580 = scmp.ne.s32.totalorder %s575, %s577
      %p581 = scmp.eq.s32.totalorder %s95, 0
      %p582 = por %p580, %p581
      %p583 = scmp.ne.s32.totalorder %s575, %s577
      %p584 = scmp.eq.s32.totalorder %s100, 1
      %p585 = por %p583, %p584
      %p586 = scmp.ne.s32.totalorder %s577, %s578
      %p587 = scmp.eq.s32.totalorder %s100, 0
      %p588 = por %p586, %p587
      %p589 = scmp.ne.s32.totalorder %s577, %s578
      %p590 = scmp.eq.s32.totalorder %s101, 1
      %p591 = por %p589, %p590
      %p593 = scmp.ne.s32.totalorder %s578, %s592
      %p594 = scmp.eq.s32.totalorder %s101, 0
      %p595 = por %p593, %p594
      %s597 = sadd.s32 %s596, 1
      %p600 = scmp.eq.s32.totalorder %s95, 1
      %p601 = scmp.ne.s32.totalorder %s596, %s598
      %p602 = scmp.eq.s32.totalorder %s95, 0
      %p603 = por %p601, %p602
      %p604 = scmp.ne.s32.totalorder %s596, %s598
      %p605 = scmp.eq.s32.totalorder %s100, 1
      %p606 = por %p604, %p605
      %p607 = scmp.ne.s32.totalorder %s598, %s599
      %p608 = scmp.eq.s32.totalorder %s100, 0
      %p609 = por %p607, %p608
      %p610 = scmp.ne.s32.totalorder %s598, %s599
      %p611 = scmp.eq.s32.totalorder %s101, 1
      %p612 = por %p610, %p611
      %p614 = scmp.ne.s32.totalorder %s599, %s613
      %p615 = scmp.eq.s32.totalorder %s101, 0
      %p616 = por %p614, %p615
      %s618 = sadd.s32 %s617, 1
      %p621 = scmp.eq.s32.totalorder %s95, 1
      %p622 = scmp.ne.s32.totalorder %s617, %s619
      %p623 = scmp.eq.s32.totalorder %s95, 0
      %p624 = por %p622, %p623
      %p625 = scmp.ne.s32.totalorder %s617, %s619
      %p626 = scmp.eq.s32.totalorder %s100, 1
      %p627 = por %p625, %p626
      %p628 = scmp.ne.s32.totalorder %s619, %s620
      %p629 = scmp.eq.s32.totalorder %s100, 0
      %p630 = por %p628, %p629
      %p631 = scmp.ne.s32.totalorder %s619, %s620
      %p632 = scmp.eq.s32.totalorder %s101, 1
      %p633 = por %p631, %p632
      %p635 = scmp.ne.s32.totalorder %s620, %s634
      %p636 = scmp.eq.s32.totalorder %s101, 0
      %p637 = por %p635, %p636
      %s639 = sadd.s32 %s638, 1
      %p642 = scmp.eq.s32.totalorder %s95, 1
      %p643 = scmp.ne.s32.totalorder %s638, %s640
      %p644 = scmp.eq.s32.totalorder %s95, 0
      %p645 = por %p643, %p644
      %p646 = scmp.ne.s32.totalorder %s638, %s640
      %p647 = scmp.eq.s32.totalorder %s100, 1
      %p648 = por %p646, %p647
      %p649 = scmp.ne.s32.totalorder %s640, %s641
      %p650 = scmp.eq.s32.totalorder %s100, 0
      %p651 = por %p649, %p650
      %p652 = scmp.ne.s32.totalorder %s640, %s641
      %p653 = scmp.eq.s32.totalorder %s101, 1
      %p654 = por %p652, %p653
      %p656 = scmp.ne.s32.totalorder %s641, %s655
      %p657 = scmp.eq.s32.totalorder %s101, 0
      %p658 = por %p656, %p657
      %s660 = sadd.s32 %s659, 1
      %p663 = scmp.eq.s32.totalorder %s95, 1
      %p664 = scmp.ne.s32.totalorder %s659, %s661
      %p665 = scmp.eq.s32.totalorder %s95, 0
      %p666 = por %p664, %p665
      %p667 = scmp.ne.s32.totalorder %s659, %s661
      %p668 = scmp.eq.s32.totalorder %s100, 1
      %p669 = por %p667, %p668
      %p670 = scmp.ne.s32.totalorder %s661, %s662
      %p671 = scmp.eq.s32.totalorder %s100, 0
      %p672 = por %p670, %p671
      %p673 = scmp.ne.s32.totalorder %s661, %s662
      %p674 = scmp.eq.s32.totalorder %s101, 1
      %p675 = por %p673, %p674
      %p677 = scmp.ne.s32.totalorder %s662, %s676
      %p678 = scmp.eq.s32.totalorder %s101, 0
      %p679 = por %p677, %p678
      %s681 = sadd.s32 %s680, 1
      %p684 = scmp.eq.s32.totalorder %s95, 1
      %p685 = scmp.ne.s32.totalorder %s680, %s682
      %p686 = scmp.eq.s32.totalorder %s95, 0
      %p687 = por %p685, %p686
      %p688 = scmp.ne.s32.totalorder %s680, %s682
      %p689 = scmp.eq.s32.totalorder %s100, 1
      %p690 = por %p688, %p689
      %p691 = scmp.ne.s32.totalorder %s682, %s683
      %p692 = scmp.eq.s32.totalorder %s100, 0
      %p693 = por %p691, %p692
      %p694 = scmp.ne.s32.totalorder %s682, %s683
      %p695 = scmp.eq.s32.totalorder %s101, 1
      %p696 = por %p694, %p695
      %p698 = scmp.ne.s32.totalorder %s683, %s697
      %p699 = scmp.eq.s32.totalorder %s101, 0
      %p700 = por %p698, %p699
      %s702 = sadd.s32 %s701, 1
      %p705 = scmp.eq.s32.totalorder %s95, 1
      %p706 = scmp.ne.s32.totalorder %s701, %s703
      %p707 = scmp.eq.s32.totalorder %s95, 0
      %p708 = por %p706, %p707
      %p709 = scmp.ne.s32.totalorder %s701, %s703
      %p710 = scmp.eq.s32.totalorder %s100, 1
      %p711 = por %p709, %p710
      %p712 = scmp.ne.s32.totalorder %s703, %s704
      %p713 = scmp.eq.s32.totalorder %s100, 0
      %p714 = por %p712, %p713
      %p715 = scmp.ne.s32.totalorder %s703, %s704
      %p716 = scmp.eq.s32.totalorder %s101, 1
      %p717 = por %p715, %p716
      %p719 = scmp.ne.s32.totalorder %s704, %s718
      %p720 = scmp.eq.s32.totalorder %s101, 0
      %p721 = por %p719, %p720
      %s723 = sadd.s32 %s722, 1
      %p726 = scmp.eq.s32.totalorder %s95, 1
      %p727 = scmp.ne.s32.totalorder %s722, %s724
      %p728 = scmp.eq.s32.totalorder %s95, 0
      %p729 = por %p727, %p728
      %p730 = scmp.ne.s32.totalorder %s722, %s724
      %p731 = scmp.eq.s32.totalorder %s100, 1
      %p732 = por %p730, %p731
      %p733 = scmp.ne.s32.totalorder %s724, %s725
      %p734 = scmp.eq.s32.totalorder %s100, 0
      %p735 = por %p733, %p734
      %p736 = scmp.ne.s32.totalorder %s724, %s725
      %p737 = scmp.eq.s32.totalorder %s101, 1
      %p738 = por %p736, %p737
      %p740 = scmp.ne.s32.totalorder %s725, %s739
      %p741 = scmp.eq.s32.totalorder %s101, 0
      %p742 = por %p740, %p741
      %s744 = sadd.s32 %s743, 1
      %p747 = scmp.eq.s32.totalorder %s95, 1
      %p748 = scmp.ne.s32.totalorder %s743, %s745
      %p749 = scmp.eq.s32.totalorder %s95, 0
      %p750 = por %p748, %p749
      %p751 = scmp.ne.s32.totalorder %s743, %s745
      %p752 = scmp.eq.s32.totalorder %s100, 1
      %p753 = por %p751, %p752
      %p754 = scmp.ne.s32.totalorder %s745, %s746
      %p755 = scmp.eq.s32.totalorder %s100, 0
      %p756 = por %p754, %p755
      %p757 = scmp.ne.s32.totalorder %s745, %s746
      %p758 = scmp.eq.s32.totalorder %s101, 1
      %p759 = por %p757, %p758
      %p761 = scmp.ne.s32.totalorder %s746, %s760
      %p762 = scmp.eq.s32.totalorder %s101, 0
      %p763 = por %p761, %p762
      %s765 = sadd.s32 %s764, 1
      %p768 = scmp.eq.s32.totalorder %s95, 1
      %p769 = scmp.ne.s32.totalorder %s764, %s766
      %p770 = scmp.eq.s32.totalorder %s95, 0
      %p771 = por %p769, %p770
      %p772 = scmp.ne.s32.totalorder %s764, %s766
      %p773 = scmp.eq.s32.totalorder %s100, 1
      %p774 = por %p772, %p773
      %p775 = scmp.ne.s32.totalorder %s766, %s767
      %p776 = scmp.eq.s32.totalorder %s100, 0
      %p777 = por %p775, %p776
      %p778 = scmp.ne.s32.totalorder %s766, %s767
      %p779 = scmp.eq.s32.totalorder %s101, 1
      %p780 = por %p778, %p779
      %p782 = scmp.ne.s32.totalorder %s767, %s781
      %p783 = scmp.eq.s32.totalorder %s101, 0
      %p784 = por %p782, %p783
      %s786 = sadd.s32 %s785, 1
      %p789 = scmp.eq.s32.totalorder %s95, 1
      %p790 = scmp.ne.s32.totalorder %s785, %s787
      %p791 = scmp.eq.s32.totalorder %s95, 0
      %p792 = por %p790, %p791
      %p793 = scmp.ne.s32.totalorder %s785, %s787
      %p794 = scmp.eq.s32.totalorder %s100, 1
      %p795 = por %p793, %p794
      %p796 = scmp.ne.s32.totalorder %s787, %s788
      %p797 = scmp.eq.s32.totalorder %s100, 0
      %p798 = por %p796, %p797
      %p799 = scmp.ne.s32.totalorder %s787, %s788
      %p800 = scmp.eq.s32.totalorder %s101, 1
      %p801 = por %p799, %p800
      %p803 = scmp.ne.s32.totalorder %s788, %s802
      %p804 = scmp.eq.s32.totalorder %s101, 0
      %p805 = por %p803, %p804
      %s807 = sadd.s32 %s806, 1
      %p810 = scmp.eq.s32.totalorder %s95, 1
      %p811 = scmp.ne.s32.totalorder %s806, %s808
      %p812 = scmp.eq.s32.totalorder %s95, 0
      %p813 = por %p811, %p812
      %p814 = scmp.ne.s32.totalorder %s806, %s808
      %p815 = scmp.eq.s32.totalorder %s100, 1
      %p816 = por %p814, %p815
      %p817 = scmp.ne.s32.totalorder %s808, %s809
      %p818 = scmp.eq.s32.totalorder %s100, 0
      %p819 = por %p817, %p818
      %p820 = scmp.ne.s32.totalorder %s808, %s809
      %p821 = scmp.eq.s32.totalorder %s101, 1
      %p822 = por %p820, %p821
      %p824 = scmp.ne.s32.totalorder %s809, %s823
      %p825 = scmp.eq.s32.totalorder %s101, 0
      %p826 = por %p824, %p825
      %s827 = ssub.s32 %s95, %s102
      %p828 = scmp.eq.s32.totalorder %s827, 0
      %s830 = sadd.s32 %s829, 1
      %s831 = scalar_select %p828, %s829, %s830
      %p834 = pneg %p828
      %p835 = scmp.eq.s32.totalorder %s95, 1
      %p836 = por %p834, %p835
      %p837 = scmp.ne.s32.totalorder %s829, %s832
      %p838 = scmp.eq.s32.totalorder %s95, 0
      %p839 = por %p837, %p838
      %p840 = scmp.ne.s32.totalorder %s829, %s832
      %p841 = scmp.eq.s32.totalorder %s100, 1
      %p842 = por %p840, %p841
      %p843 = scmp.ne.s32.totalorder %s832, %s833
      %p844 = scmp.eq.s32.totalorder %s100, 0
      %p845 = por %p843, %p844
      %p846 = scmp.ne.s32.totalorder %s832, %s833
      %p847 = scmp.eq.s32.totalorder %s101, 1
      %p848 = por %p846, %p847
      %p850 = scmp.ne.s32.totalorder %s833, %s849
      %p851 = scmp.eq.s32.totalorder %s101, 0
      %p852 = por %p850, %p851
      %s853 = ssub.s32 %s95, %s102
      %p854 = scmp.eq.s32.totalorder %s853, 0
      %s856 = sadd.s32 %s855, 1
      %s857 = scalar_select %p854, %s855, %s856
      %p860 = pneg %p854
      %p861 = scmp.eq.s32.totalorder %s95, 1
      %p862 = por %p860, %p861
      %p863 = scmp.ne.s32.totalorder %s855, %s858
      %p864 = scmp.eq.s32.totalorder %s95, 0
      %p865 = por %p863, %p864
      %p866 = scmp.ne.s32.totalorder %s855, %s858
      %p867 = scmp.eq.s32.totalorder %s100, 1
      %p868 = por %p866, %p867
      %p869 = scmp.ne.s32.totalorder %s858, %s859
      %p870 = scmp.eq.s32.totalorder %s100, 0
      %p871 = por %p869, %p870
      %p872 = scmp.ne.s32.totalorder %s858, %s859
      %p873 = scmp.eq.s32.totalorder %s101, 1
      %p874 = por %p872, %p873
      %p876 = scmp.ne.s32.totalorder %s859, %s875
      %p877 = scmp.eq.s32.totalorder %s101, 0
      %p878 = por %p876, %p877
      %p879 = scmp.le.s32.totalorder 1, %s95
      %p880 = scmp.lt.s32.totalorder %s95, 3
      %p881 = pnand %p879, %p880
      %p882 = pneg %p881
      // Predicated region
      $region9: #{tpu_custom_call.1} parent=5 // pred_check
        _
      $region10: #{tpu_custom_call.1} parent=5 // pred_check_branch
        %884 = sbr.rel (%p881) target = $region12
      $region11: #{tpu_custom_call.1} parent=5 // pred_region
        %s885 = ssub.s32 %s95, 1
        // Predicated region
        $region13: #{tpu_custom_call.1} parent=11 // pred_check
          %p886 = pneg %p168
        $region14: #{tpu_custom_call.1} parent=11 // pred_check_branch
          %888 = sbr.rel (%p886) target = $region16
        $region15: #{tpu_custom_call.1} parent=11 // pred_region
          _
        $region16: #{tpu_custom_call.1} parent=11 // pred_fallthru
          _
        // Predicated region
        $region17: #{tpu_custom_call.1} parent=11 // pred_check
          %p889 = pneg %p189
        $region18: #{tpu_custom_call.1} parent=11 // pred_check_branch
          %891 = sbr.rel (%p889) target = $region20
        $region19: #{tpu_custom_call.1} parent=11 // pred_region
          %s893 = ssub.s32 16, 16
          %894 = vsyncadd [#allocation6], %s893
          %s896 = sshll.u32 [#allocation7], 4
          %s897 = int_to_ptr.vmem [resolvable:$true] %s896
          %899 = dma.hbm_to_vmem [thread:$0]  %s7, 16, %s897, [#allocation6]
        $region20: #{tpu_custom_call.1} parent=11 // pred_fallthru
          _
        // Predicated region
        $region21: #{tpu_custom_call.1} parent=11 // pred_check
          %p900 = pneg %p210
        $region22: #{tpu_custom_call.1} parent=11 // pred_check_branch
          %902 = sbr.rel (%p900) target = $region24
        $region23: #{tpu_custom_call.1} parent=11 // pred_region
          _
        $region24: #{tpu_custom_call.1} parent=11 // pred_fallthru
          _
        // Predicated region
        $region25: #{tpu_custom_call.1} parent=11 // pred_check
          %p903 = pneg %p231
        $region26: #{tpu_custom_call.1} parent=11 // pred_check_branch
          %905 = sbr.rel (%p903) target = $region28
        $region27: #{tpu_custom_call.1} parent=11 // pred_region
          %s907 = ssub.s32 16, 16
          %908 = vsyncadd [#allocation9], %s907
          %s910 = sshll.u32 [#allocation8], 4
          %s911 = int_to_ptr.vmem [resolvable:$true] %s910
          %913 = dma.hbm_to_vmem [thread:$0]  %s11, 16, %s911, [#allocation9]
        $region28: #{tpu_custom_call.1} parent=11 // pred_fallthru
          _
        // Predicated region
        $region29: #{tpu_custom_call.1} parent=11 // pred_check
          %p914 = pneg %p252
        $region30: #{tpu_custom_call.1} parent=11 // pred_check_branch
          %916 = sbr.rel (%p914) target = $region32
        $region31: #{tpu_custom_call.1} parent=11 // pred_region
          _
        $region32: #{tpu_custom_call.1} parent=11 // pred_fallthru
          _
        // Predicated region
        $region33: #{tpu_custom_call.1} parent=11 // pred_check
          %p917 = pneg %p273
        $region34: #{tpu_custom_call.1} parent=11 // pred_check_branch
          %919 = sbr.rel (%p917) target = $region36
        $region35: #{tpu_custom_call.1} parent=11 // pred_region
          %s921 = ssub.s32 16, 16
          %922 = vsyncadd [#allocation9], %s921
          %s924 = sshll.u32 [#allocation10], 4
          %s925 = int_to_ptr.vmem [resolvable:$true] %s924
          %927 = dma.hbm_to_vmem [thread:$0]  %s15, 16, %s925, [#allocation9]
        $region36: #{tpu_custom_call.1} parent=11 // pred_fallthru
          _
        // Predicated region
        $region37: #{tpu_custom_call.1} parent=11 // pred_check
          %p928 = pneg %p294
        $region38: #{tpu_custom_call.1} parent=11 // pred_check_branch
          %930 = sbr.rel (%p928) target = $region40
        $region39: #{tpu_custom_call.1} parent=11 // pred_region
          _
        $region40: #{tpu_custom_call.1} parent=11 // pred_fallthru
          _
        // Predicated region
        $region41: #{tpu_custom_call.1} parent=11 // pred_check
          %p931 = pneg %p315
        $region42: #{tpu_custom_call.1} parent=11 // pred_check_branch
          %933 = sbr.rel (%p931) target = $region44
        $region43: #{tpu_custom_call.1} parent=11 // pred_region
          %s935 = ssub.s32 16, 16
          %936 = vsyncadd [#allocation12], %s935
          %s938 = sshll.u32 [#allocation11], 4
          %s939 = int_to_ptr.vmem [resolvable:$true] %s938
          %941 = dma.hbm_to_vmem [thread:$0]  %s19, 16, %s939, [#allocation12]
        $region44: #{tpu_custom_call.1} parent=11 // pred_fallthru
          _
        // Predicated region
        $region45: #{tpu_custom_call.1} parent=11 // pred_check
          %p942 = pneg %p336
        $region46: #{tpu_custom_call.1} parent=11 // pred_check_branch
          %944 = sbr.rel (%p942) target = $region48
        $region47: #{tpu_custom_call.1} parent=11 // pred_region
          %s946 = ssub.s32 16, 16
          %947 = vsyncadd [#allocation12], %s946
          %s949 = sshll.u32 [#allocation13], 4
          %s950 = int_to_ptr.vmem [resolvable:$true] %s949
          %952 = dma.hbm_to_vmem [thread:$0]  %s21, 16, %s950, [#allocation12]
        $region48: #{tpu_custom_call.1} parent=11 // pred_fallthru
          _
        // Predicated region
        $region49: #{tpu_custom_call.1} parent=11 // pred_check
          %p953 = pneg %p357
        $region50: #{tpu_custom_call.1} parent=11 // pred_check_branch
          %955 = sbr.rel (%p953) target = $region52
        $region51: #{tpu_custom_call.1} parent=11 // pred_region
          %s957 = ssub.s32 16, 16
          %958 = vsyncadd [#allocation15], %s957
          %s960 = sshll.u32 [#allocation14], 4
          %s961 = int_to_ptr.vmem [resolvable:$true] %s960
          %963 = dma.hbm_to_vmem [thread:$0]  %s23, 16, %s961, [#allocation15]
        $region52: #{tpu_custom_call.1} parent=11 // pred_fallthru
          _
        // Predicated region
        $region53: #{tpu_custom_call.1} parent=11 // pred_check
          %p964 = pneg %p378
        $region54: #{tpu_custom_call.1} parent=11 // pred_check_branch
          %966 = sbr.rel (%p964) target = $region56
        $region55: #{tpu_custom_call.1} parent=11 // pred_region
          _
        $region56: #{tpu_custom_call.1} parent=11 // pred_fallthru
          _
        // Predicated region
        $region57: #{tpu_custom_call.1} parent=11 // pred_check
          %p967 = pneg %p399
        $region58: #{tpu_custom_call.1} parent=11 // pred_check_branch
          %969 = sbr.rel (%p967) target = $region60
        $region59: #{tpu_custom_call.1} parent=11 // pred_region
          %s971 = ssub.s32 16, 16
          %972 = vsyncadd [#allocation15], %s971
          %s974 = sshll.u32 [#allocation16], 4
          %s975 = int_to_ptr.vmem [resolvable:$true] %s974
          %977 = dma.hbm_to_vmem [thread:$0]  %s27, 16, %s975, [#allocation15]
        $region60: #{tpu_custom_call.1} parent=11 // pred_fallthru
          _
        // Predicated region
        $region61: #{tpu_custom_call.1} parent=11 // pred_check
          %p978 = pneg %p420
        $region62: #{tpu_custom_call.1} parent=11 // pred_check_branch
          %980 = sbr.rel (%p978) target = $region64
        $region63: #{tpu_custom_call.1} parent=11 // pred_region
          _
        $region64: #{tpu_custom_call.1} parent=11 // pred_fallthru
          _
        // Predicated region
        $region65: #{tpu_custom_call.1} parent=11 // pred_check
          %p981 = pneg %p441
        $region66: #{tpu_custom_call.1} parent=11 // pred_check_branch
          %983 = sbr.rel (%p981) target = $region68
        $region67: #{tpu_custom_call.1} parent=11 // pred_region
          %s985 = ssub.s32 16, 16
          %986 = vsyncadd [#allocation18], %s985
          %s988 = sshll.u32 [#allocation17], 4
          %s989 = int_to_ptr.vmem [resolvable:$true] %s988
          %991 = dma.hbm_to_vmem [thread:$0]  %s31, 16, %s989, [#allocation18]
        $region68: #{tpu_custom_call.1} parent=11 // pred_fallthru
          _
        // Predicated region
        $region69: #{tpu_custom_call.1} parent=11 // pred_check
          %p992 = pneg %p462
        $region70: #{tpu_custom_call.1} parent=11 // pred_check_branch
          %994 = sbr.rel (%p992) target = $region72
        $region71: #{tpu_custom_call.1} parent=11 // pred_region
          %s996 = ssub.s32 16, 16
          %997 = vsyncadd [#allocation18], %s996
          %s999 = sshll.u32 [#allocation19], 4
          %s1000 = int_to_ptr.vmem [resolvable:$true] %s999
          %1002 = dma.hbm_to_vmem [thread:$0]  %s33, 16, %s1000, [#allocation18]
        $region72: #{tpu_custom_call.1} parent=11 // pred_fallthru
          _
        // Predicated region
        $region73: #{tpu_custom_call.1} parent=11 // pred_check
          %p1003 = pneg %p483
        $region74: #{tpu_custom_call.1} parent=11 // pred_check_branch
          %1005 = sbr.rel (%p1003) target = $region76
        $region75: #{tpu_custom_call.1} parent=11 // pred_region
          %s1007 = ssub.s32 16, 16
          %1008 = vsyncadd [#allocation21], %s1007
          %s1010 = sshll.u32 [#allocation20], 4
          %s1011 = int_to_ptr.vmem [resolvable:$true] %s1010
          %1013 = dma.hbm_to_vmem [thread:$0]  %s35, 16, %s1011, [#allocation21]
        $region76: #{tpu_custom_call.1} parent=11 // pred_fallthru
          _
        // Predicated region
        $region77: #{tpu_custom_call.1} parent=11 // pred_check
          %p1014 = pneg %p504
        $region78: #{tpu_custom_call.1} parent=11 // pred_check_branch
          %1016 = sbr.rel (%p1014) target = $region80
        $region79: #{tpu_custom_call.1} parent=11 // pred_region
          _
        $region80: #{tpu_custom_call.1} parent=11 // pred_fallthru
          _
        // Predicated region
        $region81: #{tpu_custom_call.1} parent=11 // pred_check
          %p1017 = pneg %p525
        $region82: #{tpu_custom_call.1} parent=11 // pred_check_branch
          %1019 = sbr.rel (%p1017) target = $region84
        $region83: #{tpu_custom_call.1} parent=11 // pred_region
          _
        $region84: #{tpu_custom_call.1} parent=11 // pred_fallthru
          _
        // Predicated region
        $region85: #{tpu_custom_call.1} parent=11 // pred_check
          %p1020 = pneg %p546
        $region86: #{tpu_custom_call.1} parent=11 // pred_check_branch
          %1022 = sbr.rel (%p1020) target = $region88
        $region87: #{tpu_custom_call.1} parent=11 // pred_region
          _
        $region88: #{tpu_custom_call.1} parent=11 // pred_fallthru
          _
        // Predicated region
        $region89: #{tpu_custom_call.1} parent=11 // pred_check
          %p1023 = pneg %p567
        $region90: #{tpu_custom_call.1} parent=11 // pred_check_branch
          %1025 = sbr.rel (%p1023) target = $region92
        $region91: #{tpu_custom_call.1} parent=11 // pred_region
          _
        $region92: #{tpu_custom_call.1} parent=11 // pred_fallthru
          _
        // Predicated region
        $region93: #{tpu_custom_call.1} parent=11 // pred_check
          %p1026 = pneg %p588
        $region94: #{tpu_custom_call.1} parent=11 // pred_check_branch
          %1028 = sbr.rel (%p1026) target = $region96
        $region95: #{tpu_custom_call.1} parent=11 // pred_region
          _
        $region96: #{tpu_custom_call.1} parent=11 // pred_fallthru
          _
        // Predicated region
        $region97: #{tpu_custom_call.1} parent=11 // pred_check
          %p1029 = pneg %p609
        $region98: #{tpu_custom_call.1} parent=11 // pred_check_branch
          %1031 = sbr.rel (%p1029) target = $region100
        $region99: #{tpu_custom_call.1} parent=11 // pred_region
          _
        $region100: #{tpu_custom_call.1} parent=11 // pred_fallthru
          _
        // Predicated region
        $region101: #{tpu_custom_call.1} parent=11 // pred_check
          %p1032 = pneg %p630
        $region102: #{tpu_custom_call.1} parent=11 // pred_check_branch
          %1034 = sbr.rel (%p1032) target = $region104
        $region103: #{tpu_custom_call.1} parent=11 // pred_region
          _
        $region104: #{tpu_custom_call.1} parent=11 // pred_fallthru
          _
        // Predicated region
        $region105: #{tpu_custom_call.1} parent=11 // pred_check
          %p1035 = pneg %p651
        $region106: #{tpu_custom_call.1} parent=11 // pred_check_branch
          %1037 = sbr.rel (%p1035) target = $region108
        $region107: #{tpu_custom_call.1} parent=11 // pred_region
          _
        $region108: #{tpu_custom_call.1} parent=11 // pred_fallthru
          _
        // Predicated region
        $region109: #{tpu_custom_call.1} parent=11 // pred_check
          %p1038 = pneg %p672
        $region110: #{tpu_custom_call.1} parent=11 // pred_check_branch
          %1040 = sbr.rel (%p1038) target = $region112
        $region111: #{tpu_custom_call.1} parent=11 // pred_region
          _
        $region112: #{tpu_custom_call.1} parent=11 // pred_fallthru
          _
        // Predicated region
        $region113: #{tpu_custom_call.1} parent=11 // pred_check
          %p1041 = pneg %p693
        $region114: #{tpu_custom_call.1} parent=11 // pred_check_branch
          %1043 = sbr.rel (%p1041) target = $region116
        $region115: #{tpu_custom_call.1} parent=11 // pred_region
          _
        $region116: #{tpu_custom_call.1} parent=11 // pred_fallthru
          _
        // Predicated region
        $region117: #{tpu_custom_call.1} parent=11 // pred_check
          %p1044 = pneg %p714
        $region118: #{tpu_custom_call.1} parent=11 // pred_check_branch
          %1046 = sbr.rel (%p1044) target = $region120
        $region119: #{tpu_custom_call.1} parent=11 // pred_region
          _
        $region120: #{tpu_custom_call.1} parent=11 // pred_fallthru
          _
        // Predicated region
        $region121: #{tpu_custom_call.1} parent=11 // pred_check
          %p1047 = pneg %p735
        $region122: #{tpu_custom_call.1} parent=11 // pred_check_branch
          %1049 = sbr.rel (%p1047) target = $region124
        $region123: #{tpu_custom_call.1} parent=11 // pred_region
          _
        $region124: #{tpu_custom_call.1} parent=11 // pred_fallthru
          _
        // Predicated region
        $region125: #{tpu_custom_call.1} parent=11 // pred_check
          %p1050 = pneg %p756
        $region126: #{tpu_custom_call.1} parent=11 // pred_check_branch
          %1052 = sbr.rel (%p1050) target = $region128
        $region127: #{tpu_custom_call.1} parent=11 // pred_region
          _
        $region128: #{tpu_custom_call.1} parent=11 // pred_fallthru
          _
        // Predicated region
        $region129: #{tpu_custom_call.1} parent=11 // pred_check
          %p1053 = pneg %p777
        $region130: #{tpu_custom_call.1} parent=11 // pred_check_branch
          %1055 = sbr.rel (%p1053) target = $region132
        $region131: #{tpu_custom_call.1} parent=11 // pred_region
          _
        $region132: #{tpu_custom_call.1} parent=11 // pred_fallthru
          _
        // Predicated region
        $region133: #{tpu_custom_call.1} parent=11 // pred_check
          %p1056 = pneg %p798
        $region134: #{tpu_custom_call.1} parent=11 // pred_check_branch
          %1058 = sbr.rel (%p1056) target = $region136
        $region135: #{tpu_custom_call.1} parent=11 // pred_region
          _
        $region136: #{tpu_custom_call.1} parent=11 // pred_fallthru
          _
        // Predicated region
        $region137: #{tpu_custom_call.1} parent=11 // pred_check
          %p1059 = pneg %p819
        $region138: #{tpu_custom_call.1} parent=11 // pred_check_branch
          %1061 = sbr.rel (%p1059) target = $region140
        $region139: #{tpu_custom_call.1} parent=11 // pred_region
          _
        $region140: #{tpu_custom_call.1} parent=11 // pred_fallthru
          _
      $region12: #{tpu_custom_call.1} parent=5 // pred_fallthru
        _
      %p1062 = scmp.lt.s32.totalorder %s95, 2
      // Predicated region
      $region141: #{tpu_custom_call.1} parent=5 // pred_check
        %p1063 = pneg %p1062
      $region142: #{tpu_custom_call.1} parent=5 // pred_check_branch
        %1065 = sbr.rel (%p1063) target = $region144
      $region143: #{tpu_custom_call.1} parent=5 // pred_region
        // Predicated region
        $region145: #{tpu_custom_call.1} parent=143 // pred_check
          %p1066 = pneg %p115
        $region146: #{tpu_custom_call.1} parent=143 // pred_check_branch
          %1068 = sbr.rel (%p1066) target = $region148
        $region147: #{tpu_custom_call.1} parent=143 // pred_region
          %s1069 = sand.u32 %s105, 1
          %s1070 = scalar_lea.sflag [#allocation3], %s1069
          %s1071 = sand.u32 %s105, 1
          %s1072 = smul.addr %s1071, 4
          %s1073 = scalar_lea.vmem [#allocation2], %s1072
          %s1075 = ssub.s32 64, 64
          %1076 = vsyncadd %s1070, %s1075
          %s1077 = smul.addr %s95, 64
          %s1078 = scalar_lea.hbm %s1, %s1077
          %s1080 = sshll.u32 %s1073, 4
          %s1081 = int_to_ptr.vmem [resolvable:$true] %s1080
          %1083 = dma.hbm_to_vmem [thread:$0]  %s1078, 64, %s1081, %s1070
        $region148: #{tpu_custom_call.1} parent=143 // pred_fallthru
          _
        // Predicated region
        $region149: #{tpu_custom_call.1} parent=143 // pred_check
          %p1084 = pneg %p141
        $region150: #{tpu_custom_call.1} parent=143 // pred_check_branch
          %1086 = sbr.rel (%p1084) target = $region152
        $region151: #{tpu_custom_call.1} parent=143 // pred_region
          %s1087 = sand.u32 %s95, 1
          %s1088 = scalar_lea.sflag [#allocation6], %s1087
          %s1089 = sand.u32 %s131, 1
          %s1090 = smul.addr %s1089, 4
          %s1091 = scalar_lea.vmem [#allocation5], %s1090
          %s1093 = ssub.s32 64, 64
          %1094 = vsyncadd %s1088, %s1093
          %s1095 = smul.addr %s95, 64
          %s1096 = scalar_lea.hbm %s3, %s1095
          %s1098 = sshll.u32 %s1091, 4
          %s1099 = int_to_ptr.vmem [resolvable:$true] %s1098
          %1101 = dma.hbm_to_vmem [thread:$0]  %s1096, 64, %s1099, %s1088
        $region152: #{tpu_custom_call.1} parent=143 // pred_fallthru
          _
      $region144: #{tpu_custom_call.1} parent=5 // pred_fallthru
        _
      %p1102 = scmp.le.s32.totalorder 1, %s95
      %p1103 = scmp.lt.s32.totalorder %s95, 3
      %p1104 = pnand %p1102, %p1103
      %p1105 = pneg %p1104
      // Predicated region
      $region153: #{tpu_custom_call.1} parent=5 // pred_check
        _
      $region154: #{tpu_custom_call.1} parent=5 // pred_check_branch
        %1107 = sbr.rel (%p1104) target = $region156
      $region155: #{tpu_custom_call.1} parent=5 // pred_region
        %s1108 = ssub.s32 %s95, 1
        %s1109 = sand.u32 %s108, 1
        %s1110 = scalar_lea.sflag [#allocation3], %s1109
        %s1111 = sand.u32 %s108, 1
        %s1112 = smul.addr %s1111, 4
        %s1113 = scalar_lea.vmem [#allocation2], %s1112
        // Predicated region
        $region157: #{tpu_custom_call.1} parent=155 // pred_check
          %p1114 = pneg %p121
        $region158: #{tpu_custom_call.1} parent=155 // pred_check_branch
          %1116 = sbr.rel (%p1114) target = $region160
        $region159: #{tpu_custom_call.1} parent=155 // pred_region
          %1117 = dma.done %s1110, 64
        $region160: #{tpu_custom_call.1} parent=155 // pred_fallthru
          _
        %s1118 = sand.u32 %s100, 1
        %s1119 = scalar_lea.sflag [#allocation6], %s1118
        %s1120 = sand.u32 %s134, 1
        %s1121 = smul.addr %s1120, 4
        %s1122 = scalar_lea.vmem [#allocation5], %s1121
        // Predicated region
        $region161: #{tpu_custom_call.1} parent=155 // pred_check
          %p1123 = pneg %p147
        $region162: #{tpu_custom_call.1} parent=155 // pred_check_branch
          %1125 = sbr.rel (%p1123) target = $region164
        $region163: #{tpu_custom_call.1} parent=155 // pred_region
          %1126 = dma.done %s1119, 64
        $region164: #{tpu_custom_call.1} parent=155 // pred_fallthru
          _
        // Predicated region
        $region165: #{tpu_custom_call.1} parent=155 // pred_check
          %p1127 = pneg %p189
        $region166: #{tpu_custom_call.1} parent=155 // pred_check_branch
          %1129 = sbr.rel (%p1127) target = $region168
        $region167: #{tpu_custom_call.1} parent=155 // pred_region
          %1130 = dma.done [#allocation6], 16
        $region168: #{tpu_custom_call.1} parent=155 // pred_fallthru
          _
        // Predicated region
        $region169: #{tpu_custom_call.1} parent=155 // pred_check
          %p1131 = pneg %p231
        $region170: #{tpu_custom_call.1} parent=155 // pred_check_branch
          %1133 = sbr.rel (%p1131) target = $region172
        $region171: #{tpu_custom_call.1} parent=155 // pred_region
          %1134 = dma.done [#allocation9], 16
        $region172: #{tpu_custom_call.1} parent=155 // pred_fallthru
          _
        // Predicated region
        $region173: #{tpu_custom_call.1} parent=155 // pred_check
          %p1135 = pneg %p273
        $region174: #{tpu_custom_call.1} parent=155 // pred_check_branch
          %1137 = sbr.rel (%p1135) target = $region176
        $region175: #{tpu_custom_call.1} parent=155 // pred_region
          %1138 = dma.done [#allocation9], 16
        $region176: #{tpu_custom_call.1} parent=155 // pred_fallthru
          _
        // Predicated region
        $region177: #{tpu_custom_call.1} parent=155 // pred_check
          %p1139 = pneg %p315
        $region178: #{tpu_custom_call.1} parent=155 // pred_check_branch
          %1141 = sbr.rel (%p1139) target = $region180
        $region179: #{tpu_custom_call.1} parent=155 // pred_region
          %1142 = dma.done [#allocation12], 16
        $region180: #{tpu_custom_call.1} parent=155 // pred_fallthru
          _
        // Predicated region
        $region181: #{tpu_custom_call.1} parent=155 // pred_check
          %p1143 = pneg %p336
        $region182: #{tpu_custom_call.1} parent=155 // pred_check_branch
          %1145 = sbr.rel (%p1143) target = $region184
        $region183: #{tpu_custom_call.1} parent=155 // pred_region
          %1146 = dma.done [#allocation12], 16
        $region184: #{tpu_custom_call.1} parent=155 // pred_fallthru
          _
        // Predicated region
        $region185: #{tpu_custom_call.1} parent=155 // pred_check
          %p1147 = pneg %p357
        $region186: #{tpu_custom_call.1} parent=155 // pred_check_branch
          %1149 = sbr.rel (%p1147) target = $region188
        $region187: #{tpu_custom_call.1} parent=155 // pred_region
          %1150 = dma.done [#allocation15], 16
        $region188: #{tpu_custom_call.1} parent=155 // pred_fallthru
          _
        // Predicated region
        $region189: #{tpu_custom_call.1} parent=155 // pred_check
          %p1151 = pneg %p399
        $region190: #{tpu_custom_call.1} parent=155 // pred_check_branch
          %1153 = sbr.rel (%p1151) target = $region192
        $region191: #{tpu_custom_call.1} parent=155 // pred_region
          %1154 = dma.done [#allocation15], 16
        $region192: #{tpu_custom_call.1} parent=155 // pred_fallthru
          _
        // Predicated region
        $region193: #{tpu_custom_call.1} parent=155 // pred_check
          %p1155 = pneg %p441
        $region194: #{tpu_custom_call.1} parent=155 // pred_check_branch
          %1157 = sbr.rel (%p1155) target = $region196
        $region195: #{tpu_custom_call.1} parent=155 // pred_region
          %1158 = dma.done [#allocation18], 16
        $region196: #{tpu_custom_call.1} parent=155 // pred_fallthru
          _
        // Predicated region
        $region197: #{tpu_custom_call.1} parent=155 // pred_check
          %p1159 = pneg %p462
        $region198: #{tpu_custom_call.1} parent=155 // pred_check_branch
          %1161 = sbr.rel (%p1159) target = $region200
        $region199: #{tpu_custom_call.1} parent=155 // pred_region
          %1162 = dma.done [#allocation18], 16
        $region200: #{tpu_custom_call.1} parent=155 // pred_fallthru
          _
        // Predicated region
        $region201: #{tpu_custom_call.1} parent=155 // pred_check
          %p1163 = pneg %p483
        $region202: #{tpu_custom_call.1} parent=155 // pred_check_branch
          %1165 = sbr.rel (%p1163) target = $region204
        $region203: #{tpu_custom_call.1} parent=155 // pred_region
          %1166 = dma.done [#allocation21], 16
        $region204: #{tpu_custom_call.1} parent=155 // pred_fallthru
          _
        %s1167 = sand.u32 %s108, 1
        %s1168 = scalar_lea.sflag [#allocation3], %s1167
        %s1169 = sand.u32 %s108, 1
        %s1170 = smul.addr %s1169, 4
        %s1171 = scalar_lea.vmem [#allocation2], %s1170
        %p1172 = pneg %p121
        %p1173 = pneg %p118
        %s1174 = sand.u32 %s100, 1
        %s1175 = scalar_lea.sflag [#allocation6], %s1174
        %s1176 = sand.u32 %s134, 1
        %s1177 = smul.addr %s1176, 4
        %s1178 = scalar_lea.vmem [#allocation5], %s1177
        %p1179 = pneg %p147
        %p1180 = pneg %p144
        %p1181 = pneg %p168
        %p1182 = pneg %p165
        %p1183 = pneg %p189
        %p1184 = pneg %p186
        %p1185 = pneg %p210
        %p1186 = pneg %p207
        %p1187 = pneg %p231
        %p1188 = pneg %p228
        %p1189 = pneg %p252
        %p1190 = pneg %p249
        %p1191 = pneg %p273
        %p1192 = pneg %p270
        %p1193 = pneg %p294
        %p1194 = pneg %p291
        %p1195 = pneg %p315
        %p1196 = pneg %p312
        %p1197 = pneg %p336
        %p1198 = pneg %p333
        %p1199 = pneg %p357
        %p1200 = pneg %p354
        %p1201 = pneg %p378
        %p1202 = pneg %p375
        %p1203 = pneg %p399
        %p1204 = pneg %p396
        %p1205 = pneg %p420
        %p1206 = pneg %p417
        %p1207 = pneg %p441
        %p1208 = pneg %p438
        %p1209 = pneg %p462
        %p1210 = pneg %p459
        %p1211 = pneg %p483
        %p1212 = pneg %p480
        %p1213 = pneg %p504
        %p1214 = pneg %p501
        %p1215 = pneg %p525
        %p1216 = pneg %p522
        %p1217 = pneg %p546
        %p1218 = pneg %p543
        %p1219 = pneg %p567
        %p1220 = pneg %p564
        %p1221 = pneg %p588
        %p1222 = pneg %p585
        %p1223 = pneg %p609
        %p1224 = pneg %p606
        %p1225 = pneg %p630
        %p1226 = pneg %p627
        %p1227 = pneg %p651
        %p1228 = pneg %p648
        %p1229 = pneg %p672
        %p1230 = pneg %p669
        %p1231 = pneg %p693
        %p1232 = pneg %p690
        %p1233 = pneg %p714
        %p1234 = pneg %p711
        %p1235 = pneg %p735
        %p1236 = pneg %p732
        %p1237 = pneg %p756
        %p1238 = pneg %p753
        %p1239 = pneg %p777
        %p1240 = pneg %p774
        %p1241 = pneg %p798
        %p1242 = pneg %p795
        %p1243 = pneg %p819
        %p1244 = pneg %p816
        %p1245 = pneg %p845
        %p1246 = pneg %p842
        %s1247 = sand.u32 %s832, 1
        %s1248 = scalar_lea.sflag [#allocation4], %s1247
        %s1249 = sand.u32 %s832, 1
        %s1250 = smul.addr %s1249, 4
        %s1251 = scalar_lea.vmem [#allocation22], %s1250
        %p1252 = pneg %p871
        %p1253 = pneg %p868
        %s1254 = sand.u32 %s858, 1
        %s1255 = scalar_lea.sflag [#allocation24], %s1254
        %s1256 = sand.u32 %s858, 1
        %s1257 = smul.addr %s1256, 4
        %s1258 = scalar_lea.vmem [#allocation23], %s1257
        %v1260 = vld [vmem:[%s1113] sm:$0xf]
        %v1261 = vld [vmem:[%s1122] sm:$0xf]
        %v1262 = vunpack.c.l.bf16 %v1260
        %v1263 = vunpack.c.l.bf16 %v1261
        %v1264 = vld [vmem:[%s5] sm:$0xf]
        %v1265 = vld [vmem:[%s5 + $0x4] sm:$0xf]
        %v1266 = vld [vmem:[%s5 + $0x8] sm:$0xf]
        %v1267 = vld [vmem:[%s5 + $0xc] sm:$0xf]
        %v1268 = vld [vmem:[#allocation7] sm:$0x1]
        %v1270 = vlaneseq
        %v1271 = vshrl.u32 %v1270, 7
        %v1272 = vsub.s32 0, %v1271
        %v1273 = vrot.slane %v1268, %v1272
        %v1279 = vunpack.c.l.b16 %v1264
        %v1280 = vunpack.c.l.b16 %v1265
        %v1281 = vunpack.c.l.b16 %v1266
        %v1282 = vunpack.c.l.b16 %v1267
        %v1283 = vpack.c.b16 %v1280, %v1279
        %v1284 = vpack.c.b16 %v1282, %v1281
        %vm1287 = vcmask 261120
        %v1289 = vsel %vm1287, %v1260, 0
        %1291 = vmatprep.subr.bf16.mxu0 0
        %1292 = vmatpush1.bf16.msra.mxu0 %v1283
        %1293 = vmatprep.subr.bf16.mxu0 0
        %1294 = vmatpush1.bf16.msra.mxu0 %v1284
        %1295 = vmatprep.subr.bf16.mxu0 0
        %1296 = vmatpush1.bf16.msra.mxu0 0
        %1297 = vmatprep.subr.bf16.mxu0 0
        %1298 = vmatpush1.bf16.msra.mxu0 0
        %1299 = vmatprep.subr.bf16.mxu0 0
        %1300 = vmatpush1.bf16.msra.mxu0 0
        %1301 = vmatprep.subr.bf16.mxu0 0
        %1302 = vmatpush1.bf16.msra.mxu0 0
        %1303 = vmatprep.subr.bf16.mxu0 0
        %1304 = vmatpush1.bf16.msra.mxu0 0
        %1305 = vmatprep.subr.bf16.mxu0 0
        %1306 = vmatpush1.bf16.msra.mxu0 0
        %1307 = vmatprep.subr.bf16.mxu0 0
        %1308 = vmatpush1.bf16.msra.mxu0 0
        %1309 = vmatprep.subr.bf16.mxu0 0
        %1310 = vmatpush1.bf16.msra.mxu0 0
        %1311 = vmatprep.subr.bf16.mxu0 0
        %1312 = vmatpush1.bf16.msra.mxu0 0
        %1313 = vmatprep.subr.bf16.mxu0 0
        %1314 = vmatpush1.bf16.msra.mxu0 0
        %1315 = vmatprep.subr.bf16.mxu0 0
        %1316 = vmatpush1.bf16.msra.mxu0 0
        %1317 = vmatprep.subr.bf16.mxu0 0
        %1318 = vmatpush1.bf16.msra.mxu0 0
        %1319 = vmatprep.subr.bf16.mxu0 0
        %1320 = vmatpush1.bf16.msra.mxu0 0
        %1321 = vmatprep.subr.bf16.mxu0 0
        %1322 = vmatpush1.bf16.msra.mxu0 0
        %1323 = vmatprep.mubr.bf16.mxu0 0
        %1324 = vmatmul.mubr.bf16.gmra.mrb[0].mxu0 %v1289
        %v1325 = vpop.f32.mrb[0].mxu0
        %v1326 = vadd.f32 %v1273, %v1325
        %v1327 = vpop.f32.mrb[0].mxu0
        %v1328 = vpop.f32.mrb[0].mxu0
        %v1329 = vpop.f32.mrb[0].mxu0
        %1330 = vdwg.mxu0
        %v1331 = vld [vmem:[%s9] sm:$0xf]
        %v1332 = vld [vmem:[%s9 + $0x4] sm:$0xf]
        %v1333 = vld [vmem:[%s9 + $0x8] sm:$0xf]
        %v1334 = vld [vmem:[%s9 + $0xc] sm:$0xf]
        %v1335 = vld [vmem:[#allocation8] sm:$0x1]
        %v1337 = vlaneseq
        %v1338 = vshrl.u32 %v1337, 7
        %v1339 = vsub.s32 0, %v1338
        %v1340 = vrot.slane %v1335, %v1339
        %v1346 = vunpack.c.l.b16 %v1331
        %v1347 = vunpack.c.l.b16 %v1332
        %v1348 = vunpack.c.l.b16 %v1333
        %v1349 = vunpack.c.l.b16 %v1334
        %v1350 = vpack.c.b16 %v1347, %v1346
        %v1351 = vpack.c.b16 %v1349, %v1348
        %1354 = vmatprep.subr.bf16.mxu0 0
        %1355 = vmatpush1.bf16.msra.mxu0 %v1350
        %1356 = vmatprep.subr.bf16.mxu0 0
        %1357 = vmatpush1.bf16.msra.mxu0 %v1351
        %1358 = vmatprep.subr.bf16.mxu0 0
        %1359 = vmatpush1.bf16.msra.mxu0 0
        %1360 = vmatprep.subr.bf16.mxu0 0
        %1361 = vmatpush1.bf16.msra.mxu0 0
        %1362 = vmatprep.subr.bf16.mxu0 0
        %1363 = vmatpush1.bf16.msra.mxu0 0
        %1364 = vmatprep.subr.bf16.mxu0 0
        %1365 = vmatpush1.bf16.msra.mxu0 0
        %1366 = vmatprep.subr.bf16.mxu0 0
        %1367 = vmatpush1.bf16.msra.mxu0 0
        %1368 = vmatprep.subr.bf16.mxu0 0
        %1369 = vmatpush1.bf16.msra.mxu0 0
        %1370 = vmatprep.subr.bf16.mxu0 0
        %1371 = vmatpush1.bf16.msra.mxu0 0
        %1372 = vmatprep.subr.bf16.mxu0 0
        %1373 = vmatpush1.bf16.msra.mxu0 0
        %1374 = vmatprep.subr.bf16.mxu0 0
        %1375 = vmatpush1.bf16.msra.mxu0 0
        %1376 = vmatprep.subr.bf16.mxu0 0
        %1377 = vmatpush1.bf16.msra.mxu0 0
        %1378 = vmatprep.subr.bf16.mxu0 0
        %1379 = vmatpush1.bf16.msra.mxu0 0
        %1380 = vmatprep.subr.bf16.mxu0 0
        %1381 = vmatpush1.bf16.msra.mxu0 0
        %1382 = vmatprep.subr.bf16.mxu0 0
        %1383 = vmatpush1.bf16.msra.mxu0 0
        %1384 = vmatprep.subr.bf16.mxu0 0
        %1385 = vmatpush1.bf16.msra.mxu0 0
        %1386 = vmatprep.mubr.bf16.mxu0 0
        %1387 = vmatmul.mubr.bf16.gmra.mrb[0].mxu0 %v1289
        %v1388 = vpop.f32.mrb[0].mxu0
        %v1389 = vadd.f32 %v1340, %v1388
        %v1390 = vpop.f32.mrb[0].mxu0
        %v1391 = vpop.f32.mrb[0].mxu0
        %v1392 = vpop.f32.mrb[0].mxu0
        %1393 = vdwg.mxu0
        %v1394 = vld [vmem:[%s13] sm:$0xf]
        %v1395 = vld [vmem:[%s13 + $0x4] sm:$0xf]
        %v1396 = vld [vmem:[%s13 + $0x8] sm:$0xf]
        %v1397 = vld [vmem:[%s13 + $0xc] sm:$0xf]
        %v1398 = vld [vmem:[#allocation10] sm:$0x1]
        %v1400 = vlaneseq
        %v1401 = vshrl.u32 %v1400, 7
        %v1402 = vsub.s32 0, %v1401
        %v1403 = vrot.slane %v1398, %v1402
        %v1409 = vunpack.c.l.b16 %v1394
        %v1410 = vunpack.c.l.b16 %v1395
        %v1411 = vunpack.c.l.b16 %v1396
        %v1412 = vunpack.c.l.b16 %v1397
        %v1413 = vpack.c.b16 %v1410, %v1409
        %v1414 = vpack.c.b16 %v1412, %v1411
        %1417 = vmatprep.subr.bf16.mxu0 0
        %1418 = vmatpush1.bf16.msra.mxu0 %v1413
        %1419 = vmatprep.subr.bf16.mxu0 0
        %1420 = vmatpush1.bf16.msra.mxu0 %v1414
        %1421 = vmatprep.subr.bf16.mxu0 0
        %1422 = vmatpush1.bf16.msra.mxu0 0
        %1423 = vmatprep.subr.bf16.mxu0 0
        %1424 = vmatpush1.bf16.msra.mxu0 0
        %1425 = vmatprep.subr.bf16.mxu0 0
        %1426 = vmatpush1.bf16.msra.mxu0 0
        %1427 = vmatprep.subr.bf16.mxu0 0
        %1428 = vmatpush1.bf16.msra.mxu0 0
        %1429 = vmatprep.subr.bf16.mxu0 0
        %1430 = vmatpush1.bf16.msra.mxu0 0
        %1431 = vmatprep.subr.bf16.mxu0 0
        %1432 = vmatpush1.bf16.msra.mxu0 0
        %1433 = vmatprep.subr.bf16.mxu0 0
        %1434 = vmatpush1.bf16.msra.mxu0 0
        %1435 = vmatprep.subr.bf16.mxu0 0
        %1436 = vmatpush1.bf16.msra.mxu0 0
        %1437 = vmatprep.subr.bf16.mxu0 0
        %1438 = vmatpush1.bf16.msra.mxu0 0
        %1439 = vmatprep.subr.bf16.mxu0 0
        %1440 = vmatpush1.bf16.msra.mxu0 0
        %1441 = vmatprep.subr.bf16.mxu0 0
        %1442 = vmatpush1.bf16.msra.mxu0 0
        %1443 = vmatprep.subr.bf16.mxu0 0
        %1444 = vmatpush1.bf16.msra.mxu0 0
        %1445 = vmatprep.subr.bf16.mxu0 0
        %1446 = vmatpush1.bf16.msra.mxu0 0
        %1447 = vmatprep.subr.bf16.mxu0 0
        %1448 = vmatpush1.bf16.msra.mxu0 0
        %1449 = vmatprep.mubr.bf16.mxu0 0
        %1450 = vmatmul.mubr.bf16.gmra.mrb[0].mxu0 %v1289
        %v1451 = vpop.f32.mrb[0].mxu0
        %v1452 = vadd.f32 %v1403, %v1451
        %v1453 = vpop.f32.mrb[0].mxu0
        %v1454 = vpop.f32.mrb[0].mxu0
        %v1455 = vpop.f32.mrb[0].mxu0
        %1456 = vdwg.mxu0
        %v1457 = vld [vmem:[%s37] sm:$0xf]
        %v1458 = vld [vmem:[%s37 + $0x4] sm:$0xf]
        %v1459 = vld [vmem:[%s39] sm:$0x1]
        %v1461 = vlaneseq
        %v1462 = vshrl.u32 %v1461, 7
        %v1463 = vsub.s32 0, %v1462
        %v1464 = vrot.slane %v1459, %v1463
        %v1468 = vunpack.c.l.b16 %v1457
        %v1469 = vunpack.c.l.b16 %v1458
        %v1470 = vpack.c.b16 %v1469, %v1468
        %vm1472 = vcmask 130048
        %v1474 = vsel %vm1472, %v1261, 0
        %1476 = vmatprep.subr.bf16.mxu0 0
        %1477 = vmatpush1.bf16.msra.mxu0 %v1470
        %1478 = vmatprep.subr.bf16.mxu0 0
        %1479 = vmatpush1.bf16.msra.mxu0 0
        %1480 = vmatprep.subr.bf16.mxu0 0
        %1481 = vmatpush1.bf16.msra.mxu0 0
        %1482 = vmatprep.subr.bf16.mxu0 0
        %1483 = vmatpush1.bf16.msra.mxu0 0
        %1484 = vmatprep.subr.bf16.mxu0 0
        %1485 = vmatpush1.bf16.msra.mxu0 0
        %1486 = vmatprep.subr.bf16.mxu0 0
        %1487 = vmatpush1.bf16.msra.mxu0 0
        %1488 = vmatprep.subr.bf16.mxu0 0
        %1489 = vmatpush1.bf16.msra.mxu0 0
        %1490 = vmatprep.subr.bf16.mxu0 0
        %1491 = vmatpush1.bf16.msra.mxu0 0
        %1492 = vmatprep.subr.bf16.mxu0 0
        %1493 = vmatpush1.bf16.msra.mxu0 0
        %1494 = vmatprep.subr.bf16.mxu0 0
        %1495 = vmatpush1.bf16.msra.mxu0 0
        %1496 = vmatprep.subr.bf16.mxu0 0
        %1497 = vmatpush1.bf16.msra.mxu0 0
        %1498 = vmatprep.subr.bf16.mxu0 0
        %1499 = vmatpush1.bf16.msra.mxu0 0
        %1500 = vmatprep.subr.bf16.mxu0 0
        %1501 = vmatpush1.bf16.msra.mxu0 0
        %1502 = vmatprep.subr.bf16.mxu0 0
        %1503 = vmatpush1.bf16.msra.mxu0 0
        %1504 = vmatprep.subr.bf16.mxu0 0
        %1505 = vmatpush1.bf16.msra.mxu0 0
        %1506 = vmatprep.subr.bf16.mxu0 0
        %1507 = vmatpush1.bf16.msra.mxu0 0
        %1508 = vmatprep.mubr.bf16.mxu0 0
        %1509 = vmatmul.mubr.bf16.gmra.mrb[0].mxu0 %v1474
        %v1510 = vpop.f32.mrb[0].mxu0
        %v1511 = vadd.f32 %v1464, %v1510
        %v1512 = vpop.f32.mrb[0].mxu0
        %v1513 = vpop.f32.mrb[0].mxu0
        %v1514 = vpop.f32.mrb[0].mxu0
        %1515 = vdwg.mxu0
        %v1516 = vld [vmem:[%s41] sm:$0xf]
        %v1517 = vld [vmem:[%s41 + $0x4] sm:$0xf]
        %v1518 = vld [vmem:[%s43] sm:$0x1]
        %v1520 = vlaneseq
        %v1521 = vshrl.u32 %v1520, 7
        %v1522 = vsub.s32 0, %v1521
        %v1523 = vrot.slane %v1518, %v1522
        %v1527 = vunpack.c.l.b16 %v1516
        %v1528 = vunpack.c.l.b16 %v1517
        %v1529 = vpack.c.b16 %v1528, %v1527
        %1531 = vmatprep.subr.bf16.mxu0 0
        %1532 = vmatpush1.bf16.msra.mxu0 %v1529
        %1533 = vmatprep.subr.bf16.mxu0 0
        %1534 = vmatpush1.bf16.msra.mxu0 0
        %1535 = vmatprep.subr.bf16.mxu0 0
        %1536 = vmatpush1.bf16.msra.mxu0 0
        %1537 = vmatprep.subr.bf16.mxu0 0
        %1538 = vmatpush1.bf16.msra.mxu0 0
        %1539 = vmatprep.subr.bf16.mxu0 0
        %1540 = vmatpush1.bf16.msra.mxu0 0
        %1541 = vmatprep.subr.bf16.mxu0 0
        %1542 = vmatpush1.bf16.msra.mxu0 0
        %1543 = vmatprep.subr.bf16.mxu0 0
        %1544 = vmatpush1.bf16.msra.mxu0 0
        %1545 = vmatprep.subr.bf16.mxu0 0
        %1546 = vmatpush1.bf16.msra.mxu0 0
        %1547 = vmatprep.subr.bf16.mxu0 0
        %1548 = vmatpush1.bf16.msra.mxu0 0
        %1549 = vmatprep.subr.bf16.mxu0 0
        %1550 = vmatpush1.bf16.msra.mxu0 0
        %1551 = vmatprep.subr.bf16.mxu0 0
        %1552 = vmatpush1.bf16.msra.mxu0 0
        %1553 = vmatprep.subr.bf16.mxu0 0
        %1554 = vmatpush1.bf16.msra.mxu0 0
        %1555 = vmatprep.subr.bf16.mxu0 0
        %1556 = vmatpush1.bf16.msra.mxu0 0
        %1557 = vmatprep.subr.bf16.mxu0 0
        %1558 = vmatpush1.bf16.msra.mxu0 0
        %1559 = vmatprep.subr.bf16.mxu0 0
        %1560 = vmatpush1.bf16.msra.mxu0 0
        %1561 = vmatprep.subr.bf16.mxu0 0
        %1562 = vmatpush1.bf16.msra.mxu0 0
        %1563 = vmatprep.mubr.bf16.mxu0 0
        %1564 = vmatmul.mubr.bf16.gmra.mrb[0].mxu0 %v1474
        %v1565 = vpop.f32.mrb[0].mxu0
        %v1566 = vadd.f32 %v1523, %v1565
        %v1567 = vpop.f32.mrb[0].mxu0
        %v1568 = vpop.f32.mrb[0].mxu0
        %v1569 = vpop.f32.mrb[0].mxu0
        %1570 = vdwg.mxu0
        %v1571 = vld [vmem:[%s45] sm:$0xf]
        %v1572 = vld [vmem:[%s45 + $0x4] sm:$0xf]
        %v1573 = vld [vmem:[%s47] sm:$0x1]
        %v1575 = vlaneseq
        %v1576 = vshrl.u32 %v1575, 7
        %v1577 = vsub.s32 0, %v1576
        %v1578 = vrot.slane %v1573, %v1577
        %v1582 = vunpack.c.l.b16 %v1571
        %v1583 = vunpack.c.l.b16 %v1572
        %v1584 = vpack.c.b16 %v1583, %v1582
        %1586 = vmatprep.subr.bf16.mxu0 0
        %1587 = vmatpush1.bf16.msra.mxu0 %v1584
        %1588 = vmatprep.subr.bf16.mxu0 0
        %1589 = vmatpush1.bf16.msra.mxu0 0
        %1590 = vmatprep.subr.bf16.mxu0 0
        %1591 = vmatpush1.bf16.msra.mxu0 0
        %1592 = vmatprep.subr.bf16.mxu0 0
        %1593 = vmatpush1.bf16.msra.mxu0 0
        %1594 = vmatprep.subr.bf16.mxu0 0
        %1595 = vmatpush1.bf16.msra.mxu0 0
        %1596 = vmatprep.subr.bf16.mxu0 0
        %1597 = vmatpush1.bf16.msra.mxu0 0
        %1598 = vmatprep.subr.bf16.mxu0 0
        %1599 = vmatpush1.bf16.msra.mxu0 0
        %1600 = vmatprep.subr.bf16.mxu0 0
        %1601 = vmatpush1.bf16.msra.mxu0 0
        %1602 = vmatprep.subr.bf16.mxu0 0
        %1603 = vmatpush1.bf16.msra.mxu0 0
        %1604 = vmatprep.subr.bf16.mxu0 0
        %1605 = vmatpush1.bf16.msra.mxu0 0
        %1606 = vmatprep.subr.bf16.mxu0 0
        %1607 = vmatpush1.bf16.msra.mxu0 0
        %1608 = vmatprep.subr.bf16.mxu0 0
        %1609 = vmatpush1.bf16.msra.mxu0 0
        %1610 = vmatprep.subr.bf16.mxu0 0
        %1611 = vmatpush1.bf16.msra.mxu0 0
        %1612 = vmatprep.subr.bf16.mxu0 0
        %1613 = vmatpush1.bf16.msra.mxu0 0
        %1614 = vmatprep.subr.bf16.mxu0 0
        %1615 = vmatpush1.bf16.msra.mxu0 0
        %1616 = vmatprep.subr.bf16.mxu0 0
        %1617 = vmatpush1.bf16.msra.mxu0 0
        %1618 = vmatprep.mubr.bf16.mxu0 0
        %1619 = vmatmul.mubr.bf16.gmra.mrb[0].mxu0 %v1474
        %v1620 = vpop.f32.mrb[0].mxu0
        %v1621 = vadd.f32 %v1578, %v1620
        %v1622 = vpop.f32.mrb[0].mxu0
        %v1623 = vpop.f32.mrb[0].mxu0
        %v1624 = vpop.f32.mrb[0].mxu0
        %1625 = vdwg.mxu0
        %v1626 = vmul.f32 %v1326, 0.35355338
        %1628 = vrot.lane.b32.xlu0 %v1626, 120
        %v1629 = vpop.permute.xlu0 %1628
        %1631 = vrot.lane.b32.xlu0 %v1626, 112
        %v1632 = vpop.permute.xlu0 %1631
        %1634 = vrot.lane.b32.xlu0 %v1626, 104
        %v1635 = vpop.permute.xlu0 %1634
        %v1637 = vcombine.low %v1626, %v1632
        %v1638 = vcombine.high %v1626, %v1632
        %v1640 = vunpack.c.l.s4 1983009808
        %v1641 = vunpack.c.0.s8 %v1640
        %v1642 = vlaneseq
        %v1643 = vshrl.u32 %v1642, 7
        %v1644 = vsub.s32 %v1641, %v1643
        %v1645 = vrot.slane %v1637, %v1644
        %v1647 = vunpack.c.l.s4 1983009808
        %v1648 = vunpack.c.0.s8 %v1647
        %v1649 = vlaneseq
        %v1650 = vshrl.u32 %v1649, 7
        %v1651 = vsub.s32 %v1648, %v1650
        %v1652 = vrot.slane %v1638, %v1651
        %v1653 = vcombine.low %v1629, %v1635
        %v1654 = vcombine.high %v1629, %v1635
        %v1656 = vunpack.c.l.s4 1983009808
        %v1657 = vunpack.c.0.s8 %v1656
        %v1658 = vlaneseq
        %v1659 = vshrl.u32 %v1658, 7
        %v1660 = vsub.s32 %v1657, %v1659
        %v1661 = vrot.slane %v1653, %v1660
        %v1663 = vunpack.c.l.s4 1983009808
        %v1664 = vunpack.c.0.s8 %v1663
        %v1665 = vlaneseq
        %v1666 = vshrl.u32 %v1665, 7
        %v1667 = vsub.s32 %v1664, %v1666
        %v1668 = vrot.slane %v1654, %v1667
        %v1669 = vcombine.low %v1645, %v1661
        %v1670 = vcombine.high %v1645, %v1661
        %v1672 = vunpack.c.l.s4 1934713408
        %v1673 = vunpack.c.0.s8 %v1672
        %v1674 = vlaneseq
        %v1675 = vshrl.u32 %v1674, 7
        %v1676 = vsub.s32 %v1673, %v1675
        %v1677 = vrot.slane %v1669, %v1676
        %v1679 = vunpack.c.l.s4 1934713408
        %v1680 = vunpack.c.0.s8 %v1679
        %v1681 = vlaneseq
        %v1682 = vshrl.u32 %v1681, 7
        %v1683 = vsub.s32 %v1680, %v1682
        %v1684 = vrot.slane %v1670, %v1683
        %v1685 = vcombine.low %v1652, %v1668
        %v1686 = vcombine.high %v1652, %v1668
        %v1688 = vunpack.c.l.s4 1934713408
        %v1689 = vunpack.c.0.s8 %v1688
        %v1690 = vlaneseq
        %v1691 = vshrl.u32 %v1690, 7
        %v1692 = vsub.s32 %v1689, %v1691
        %v1693 = vrot.slane %v1685, %v1692
        %v1695 = vunpack.c.l.s4 1934713408
        %v1696 = vunpack.c.0.s8 %v1695
        %v1697 = vlaneseq
        %v1698 = vshrl.u32 %v1697, 7
        %v1699 = vsub.s32 %v1696, %v1698
        %v1700 = vrot.slane %v1686, %v1699
        %v1701 = vcombine.high %v1677, 0.0
        %v1702 = vcombine.high %v1684, 0.0
        %v1703 = vcombine.high %v1693, 0.0
        %v1704 = vcombine.high %v1700, 0.0
        %v1705 = vcombine.low %v1677, %v1684
        %v1707 = vunpack.c.l.s4 1983009808
        %v1708 = vunpack.c.0.s8 %v1707
        %v1709 = vlaneseq
        %v1710 = vshrl.u32 %v1709, 7
        %v1711 = vsub.s32 %v1708, %v1710
        %v1712 = vrot.slane %v1705, %v1711
        %v1713 = vcombine.low %v1701, %v1702
        %v1715 = vunpack.c.l.s4 1983009808
        %v1716 = vunpack.c.0.s8 %v1715
        %v1717 = vlaneseq
        %v1718 = vshrl.u32 %v1717, 7
        %v1719 = vsub.s32 %v1716, %v1718
        %v1720 = vrot.slane %v1713, %v1719
        %v1721 = vcombine.low %v1693, %v1700
        %v1723 = vunpack.c.l.s4 1983009808
        %v1724 = vunpack.c.0.s8 %v1723
        %v1725 = vlaneseq
        %v1726 = vshrl.u32 %v1725, 7
        %v1727 = vsub.s32 %v1724, %v1726
        %v1728 = vrot.slane %v1721, %v1727
        %v1729 = vcombine.low %v1703, %v1704
        %v1731 = vunpack.c.l.s4 1983009808
        %v1732 = vunpack.c.0.s8 %v1731
        %v1733 = vlaneseq
        %v1734 = vshrl.u32 %v1733, 7
        %v1735 = vsub.s32 %v1732, %v1734
        %v1736 = vrot.slane %v1729, %v1735
        %v1737 = vcombine.low %v1712, %v1720
        %v1738 = vcombine.high %v1712, %v1720
        %v1740 = vunpack.c.l.s4 1934713408
        %v1741 = vunpack.c.0.s8 %v1740
        %v1742 = vlaneseq
        %v1743 = vshrl.u32 %v1742, 7
        %v1744 = vsub.s32 %v1741, %v1743
        %v1745 = vrot.slane %v1737, %v1744
        %v1747 = vunpack.c.l.s4 1934713408
        %v1748 = vunpack.c.0.s8 %v1747
        %v1749 = vlaneseq
        %v1750 = vshrl.u32 %v1749, 7
        %v1751 = vsub.s32 %v1748, %v1750
        %v1752 = vrot.slane %v1738, %v1751
        %v1753 = vcombine.low %v1728, %v1736
        %v1754 = vcombine.high %v1728, %v1736
        %v1756 = vunpack.c.l.s4 1934713408
        %v1757 = vunpack.c.0.s8 %v1756
        %v1758 = vlaneseq
        %v1759 = vshrl.u32 %v1758, 7
        %v1760 = vsub.s32 %v1757, %v1759
        %v1761 = vrot.slane %v1753, %v1760
        %v1763 = vunpack.c.l.s4 1934713408
        %v1764 = vunpack.c.0.s8 %v1763
        %v1765 = vlaneseq
        %v1766 = vshrl.u32 %v1765, 7
        %v1767 = vsub.s32 %v1764, %v1766
        %v1768 = vrot.slane %v1754, %v1767
        %v1769 = vcombine.low %v1745, %v1761
        %v1770 = vcombine.high %v1745, %v1761
        %v1771 = vcombine.low %v1752, %v1768
        %v1772 = vcombine.high %v1752, %v1768
        %v1773 = vpack.c.bf16 %v1769, %v1769
        %v1774 = vpack.c.bf16 %v1770, %v1770
        %v1775 = vpack.c.bf16 %v1771, %v1771
        %v1776 = vpack.c.bf16 %v1772, %v1772
        %1778 = vrot.lane.b32.xlu0 %v1389, 120
        %v1779 = vpop.permute.xlu0 %1778
        %1781 = vrot.lane.b32.xlu0 %v1389, 112
        %v1782 = vpop.permute.xlu0 %1781
        %1784 = vrot.lane.b32.xlu0 %v1389, 104
        %v1785 = vpop.permute.xlu0 %1784
        %v1787 = vcombine.low %v1389, %v1782
        %v1788 = vcombine.high %v1389, %v1782
        %v1790 = vunpack.c.l.s4 1983009808
        %v1791 = vunpack.c.0.s8 %v1790
        %v1792 = vlaneseq
        %v1793 = vshrl.u32 %v1792, 7
        %v1794 = vsub.s32 %v1791, %v1793
        %v1795 = vrot.slane %v1787, %v1794
        %v1797 = vunpack.c.l.s4 1983009808
        %v1798 = vunpack.c.0.s8 %v1797
        %v1799 = vlaneseq
        %v1800 = vshrl.u32 %v1799, 7
        %v1801 = vsub.s32 %v1798, %v1800
        %v1802 = vrot.slane %v1788, %v1801
        %v1803 = vcombine.low %v1779, %v1785
        %v1804 = vcombine.high %v1779, %v1785
        %v1806 = vunpack.c.l.s4 1983009808
        %v1807 = vunpack.c.0.s8 %v1806
        %v1808 = vlaneseq
        %v1809 = vshrl.u32 %v1808, 7
        %v1810 = vsub.s32 %v1807, %v1809
        %v1811 = vrot.slane %v1803, %v1810
        %v1813 = vunpack.c.l.s4 1983009808
        %v1814 = vunpack.c.0.s8 %v1813
        %v1815 = vlaneseq
        %v1816 = vshrl.u32 %v1815, 7
        %v1817 = vsub.s32 %v1814, %v1816
        %v1818 = vrot.slane %v1804, %v1817
        %v1819 = vcombine.low %v1795, %v1811
        %v1820 = vcombine.high %v1795, %v1811
        %v1822 = vunpack.c.l.s4 1934713408
        %v1823 = vunpack.c.0.s8 %v1822
        %v1824 = vlaneseq
        %v1825 = vshrl.u32 %v1824, 7
        %v1826 = vsub.s32 %v1823, %v1825
        %v1827 = vrot.slane %v1819, %v1826
        %v1829 = vunpack.c.l.s4 1934713408
        %v1830 = vunpack.c.0.s8 %v1829
        %v1831 = vlaneseq
        %v1832 = vshrl.u32 %v1831, 7
        %v1833 = vsub.s32 %v1830, %v1832
        %v1834 = vrot.slane %v1820, %v1833
        %v1835 = vcombine.low %v1802, %v1818
        %v1836 = vcombine.high %v1802, %v1818
        %v1838 = vunpack.c.l.s4 1934713408
        %v1839 = vunpack.c.0.s8 %v1838
        %v1840 = vlaneseq
        %v1841 = vshrl.u32 %v1840, 7
        %v1842 = vsub.s32 %v1839, %v1841
        %v1843 = vrot.slane %v1835, %v1842
        %v1845 = vunpack.c.l.s4 1934713408
        %v1846 = vunpack.c.0.s8 %v1845
        %v1847 = vlaneseq
        %v1848 = vshrl.u32 %v1847, 7
        %v1849 = vsub.s32 %v1846, %v1848
        %v1850 = vrot.slane %v1836, %v1849
        %v1851 = vcombine.high %v1827, 0.0
        %v1852 = vcombine.high %v1834, 0.0
        %v1853 = vcombine.high %v1843, 0.0
        %v1854 = vcombine.high %v1850, 0.0
        %v1855 = vcombine.low %v1827, %v1834
        %v1857 = vunpack.c.l.s4 1983009808
        %v1858 = vunpack.c.0.s8 %v1857
        %v1859 = vlaneseq
        %v1860 = vshrl.u32 %v1859, 7
        %v1861 = vsub.s32 %v1858, %v1860
        %v1862 = vrot.slane %v1855, %v1861
        %v1863 = vcombine.low %v1851, %v1852
        %v1865 = vunpack.c.l.s4 1983009808
        %v1866 = vunpack.c.0.s8 %v1865
        %v1867 = vlaneseq
        %v1868 = vshrl.u32 %v1867, 7
        %v1869 = vsub.s32 %v1866, %v1868
        %v1870 = vrot.slane %v1863, %v1869
        %v1871 = vcombine.low %v1843, %v1850
        %v1873 = vunpack.c.l.s4 1983009808
        %v1874 = vunpack.c.0.s8 %v1873
        %v1875 = vlaneseq
        %v1876 = vshrl.u32 %v1875, 7
        %v1877 = vsub.s32 %v1874, %v1876
        %v1878 = vrot.slane %v1871, %v1877
        %v1879 = vcombine.low %v1853, %v1854
        %v1881 = vunpack.c.l.s4 1983009808
        %v1882 = vunpack.c.0.s8 %v1881
        %v1883 = vlaneseq
        %v1884 = vshrl.u32 %v1883, 7
        %v1885 = vsub.s32 %v1882, %v1884
        %v1886 = vrot.slane %v1879, %v1885
        %v1887 = vcombine.low %v1862, %v1870
        %v1888 = vcombine.high %v1862, %v1870
        %v1890 = vunpack.c.l.s4 1934713408
        %v1891 = vunpack.c.0.s8 %v1890
        %v1892 = vlaneseq
        %v1893 = vshrl.u32 %v1892, 7
        %v1894 = vsub.s32 %v1891, %v1893
        %v1895 = vrot.slane %v1887, %v1894
        %v1897 = vunpack.c.l.s4 1934713408
        %v1898 = vunpack.c.0.s8 %v1897
        %v1899 = vlaneseq
        %v1900 = vshrl.u32 %v1899, 7
        %v1901 = vsub.s32 %v1898, %v1900
        %v1902 = vrot.slane %v1888, %v1901
        %v1903 = vcombine.low %v1878, %v1886
        %v1904 = vcombine.high %v1878, %v1886
        %v1906 = vunpack.c.l.s4 1934713408
        %v1907 = vunpack.c.0.s8 %v1906
        %v1908 = vlaneseq
        %v1909 = vshrl.u32 %v1908, 7
        %v1910 = vsub.s32 %v1907, %v1909
        %v1911 = vrot.slane %v1903, %v1910
        %v1913 = vunpack.c.l.s4 1934713408
        %v1914 = vunpack.c.0.s8 %v1913
        %v1915 = vlaneseq
        %v1916 = vshrl.u32 %v1915, 7
        %v1917 = vsub.s32 %v1914, %v1916
        %v1918 = vrot.slane %v1904, %v1917
        %v1919 = vcombine.low %v1895, %v1911
        %v1920 = vcombine.high %v1895, %v1911
        %v1921 = vcombine.low %v1902, %v1918
        %v1922 = vcombine.high %v1902, %v1918
        %v1923 = vpack.c.bf16 %v1919, %v1919
        %v1924 = vpack.c.bf16 %v1920, %v1920
        %v1925 = vpack.c.bf16 %v1921, %v1921
        %v1926 = vpack.c.bf16 %v1922, %v1922
        %1928 = vrot.lane.b32.xlu0 %v1452, 120
        %v1929 = vpop.permute.xlu0 %1928
        %1931 = vrot.lane.b32.xlu0 %v1452, 112
        %v1932 = vpop.permute.xlu0 %1931
        %1934 = vrot.lane.b32.xlu0 %v1452, 104
        %v1935 = vpop.permute.xlu0 %1934
        %v1937 = vcombine.low %v1452, %v1932
        %v1938 = vcombine.high %v1452, %v1932
        %v1940 = vunpack.c.l.s4 1983009808
        %v1941 = vunpack.c.0.s8 %v1940
        %v1942 = vlaneseq
        %v1943 = vshrl.u32 %v1942, 7
        %v1944 = vsub.s32 %v1941, %v1943
        %v1945 = vrot.slane %v1937, %v1944
        %v1947 = vunpack.c.l.s4 1983009808
        %v1948 = vunpack.c.0.s8 %v1947
        %v1949 = vlaneseq
        %v1950 = vshrl.u32 %v1949, 7
        %v1951 = vsub.s32 %v1948, %v1950
        %v1952 = vrot.slane %v1938, %v1951
        %v1953 = vcombine.low %v1929, %v1935
        %v1954 = vcombine.high %v1929, %v1935
        %v1956 = vunpack.c.l.s4 1983009808
        %v1957 = vunpack.c.0.s8 %v1956
        %v1958 = vlaneseq
        %v1959 = vshrl.u32 %v1958, 7
        %v1960 = vsub.s32 %v1957, %v1959
        %v1961 = vrot.slane %v1953, %v1960
        %v1963 = vunpack.c.l.s4 1983009808
        %v1964 = vunpack.c.0.s8 %v1963
        %v1965 = vlaneseq
        %v1966 = vshrl.u32 %v1965, 7
        %v1967 = vsub.s32 %v1964, %v1966
        %v1968 = vrot.slane %v1954, %v1967
        %v1969 = vcombine.low %v1945, %v1961
        %v1970 = vcombine.high %v1945, %v1961
        %v1972 = vunpack.c.l.s4 1934713408
        %v1973 = vunpack.c.0.s8 %v1972
        %v1974 = vlaneseq
        %v1975 = vshrl.u32 %v1974, 7
        %v1976 = vsub.s32 %v1973, %v1975
        %v1977 = vrot.slane %v1969, %v1976
        %v1979 = vunpack.c.l.s4 1934713408
        %v1980 = vunpack.c.0.s8 %v1979
        %v1981 = vlaneseq
        %v1982 = vshrl.u32 %v1981, 7
        %v1983 = vsub.s32 %v1980, %v1982
        %v1984 = vrot.slane %v1970, %v1983
        %v1985 = vcombine.low %v1952, %v1968
        %v1986 = vcombine.high %v1952, %v1968
        %v1988 = vunpack.c.l.s4 1934713408
        %v1989 = vunpack.c.0.s8 %v1988
        %v1990 = vlaneseq
        %v1991 = vshrl.u32 %v1990, 7
        %v1992 = vsub.s32 %v1989, %v1991
        %v1993 = vrot.slane %v1985, %v1992
        %v1995 = vunpack.c.l.s4 1934713408
        %v1996 = vunpack.c.0.s8 %v1995
        %v1997 = vlaneseq
        %v1998 = vshrl.u32 %v1997, 7
        %v1999 = vsub.s32 %v1996, %v1998
        %v2000 = vrot.slane %v1986, %v1999
        %v2001 = vcombine.high %v1977, 0.0
        %v2002 = vcombine.high %v1984, 0.0
        %v2003 = vcombine.high %v1993, 0.0
        %v2004 = vcombine.high %v2000, 0.0
        %v2005 = vcombine.low %v1977, %v1984
        %v2007 = vunpack.c.l.s4 1983009808
        %v2008 = vunpack.c.0.s8 %v2007
        %v2009 = vlaneseq
        %v2010 = vshrl.u32 %v2009, 7
        %v2011 = vsub.s32 %v2008, %v2010
        %v2012 = vrot.slane %v2005, %v2011
        %v2013 = vcombine.low %v2001, %v2002
        %v2015 = vunpack.c.l.s4 1983009808
        %v2016 = vunpack.c.0.s8 %v2015
        %v2017 = vlaneseq
        %v2018 = vshrl.u32 %v2017, 7
        %v2019 = vsub.s32 %v2016, %v2018
        %v2020 = vrot.slane %v2013, %v2019
        %v2021 = vcombine.low %v1993, %v2000
        %v2023 = vunpack.c.l.s4 1983009808
        %v2024 = vunpack.c.0.s8 %v2023
        %v2025 = vlaneseq
        %v2026 = vshrl.u32 %v2025, 7
        %v2027 = vsub.s32 %v2024, %v2026
        %v2028 = vrot.slane %v2021, %v2027
        %v2029 = vcombine.low %v2003, %v2004
        %v2031 = vunpack.c.l.s4 1983009808
        %v2032 = vunpack.c.0.s8 %v2031
        %v2033 = vlaneseq
        %v2034 = vshrl.u32 %v2033, 7
        %v2035 = vsub.s32 %v2032, %v2034
        %v2036 = vrot.slane %v2029, %v2035
        %v2037 = vcombine.low %v2012, %v2020
        %v2038 = vcombine.high %v2012, %v2020
        %v2040 = vunpack.c.l.s4 1934713408
        %v2041 = vunpack.c.0.s8 %v2040
        %v2042 = vlaneseq
        %v2043 = vshrl.u32 %v2042, 7
        %v2044 = vsub.s32 %v2041, %v2043
        %v2045 = vrot.slane %v2037, %v2044
        %v2047 = vunpack.c.l.s4 1934713408
        %v2048 = vunpack.c.0.s8 %v2047
        %v2049 = vlaneseq
        %v2050 = vshrl.u32 %v2049, 7
        %v2051 = vsub.s32 %v2048, %v2050
        %v2052 = vrot.slane %v2038, %v2051
        %v2053 = vcombine.low %v2028, %v2036
        %v2054 = vcombine.high %v2028, %v2036
        %v2056 = vunpack.c.l.s4 1934713408
        %v2057 = vunpack.c.0.s8 %v2056
        %v2058 = vlaneseq
        %v2059 = vshrl.u32 %v2058, 7
        %v2060 = vsub.s32 %v2057, %v2059
        %v2061 = vrot.slane %v2053, %v2060
        %v2063 = vunpack.c.l.s4 1934713408
        %v2064 = vunpack.c.0.s8 %v2063
        %v2065 = vlaneseq
        %v2066 = vshrl.u32 %v2065, 7
        %v2067 = vsub.s32 %v2064, %v2066
        %v2068 = vrot.slane %v2054, %v2067
        %v2069 = vcombine.low %v2045, %v2061
        %v2070 = vcombine.high %v2045, %v2061
        %v2071 = vcombine.low %v2052, %v2068
        %v2072 = vcombine.high %v2052, %v2068
        %v2073 = vpack.c.bf16 %v2069, %v2069
        %v2074 = vpack.c.bf16 %v2070, %v2070
        %v2075 = vpack.c.bf16 %v2071, %v2071
        %v2076 = vpack.c.bf16 %v2072, %v2072
        %v2077 = vmul.f32 %v1511, 0.5
        %2079 = vrot.lane.b32.xlu0 %v2077, 124
        %v2080 = vpop.permute.xlu0 %2079
        %2082 = vrot.lane.b32.xlu0 %v2077, 120
        %v2083 = vpop.permute.xlu0 %2082
        %2085 = vrot.lane.b32.xlu0 %v2077, 116
        %v2086 = vpop.permute.xlu0 %2085
        %v2088 = vcombine.low %v2077, %v2083
        %v2089 = vcombine.high %v2077, %v2083
        %v2091 = vunpack.c.l.s4 1983009808
        %v2092 = vunpack.c.0.s8 %v2091
        %v2093 = vlaneseq
        %v2094 = vshrl.u32 %v2093, 7
        %v2095 = vsub.s32 %v2092, %v2094
        %v2096 = vrot.slane %v2088, %v2095
        %v2098 = vunpack.c.l.s4 1983009808
        %v2099 = vunpack.c.0.s8 %v2098
        %v2100 = vlaneseq
        %v2101 = vshrl.u32 %v2100, 7
        %v2102 = vsub.s32 %v2099, %v2101
        %v2103 = vrot.slane %v2089, %v2102
        %v2104 = vcombine.low %v2080, %v2086
        %v2105 = vcombine.high %v2080, %v2086
        %v2107 = vunpack.c.l.s4 1983009808
        %v2108 = vunpack.c.0.s8 %v2107
        %v2109 = vlaneseq
        %v2110 = vshrl.u32 %v2109, 7
        %v2111 = vsub.s32 %v2108, %v2110
        %v2112 = vrot.slane %v2104, %v2111
        %v2114 = vunpack.c.l.s4 1983009808
        %v2115 = vunpack.c.0.s8 %v2114
        %v2116 = vlaneseq
        %v2117 = vshrl.u32 %v2116, 7
        %v2118 = vsub.s32 %v2115, %v2117
        %v2119 = vrot.slane %v2105, %v2118
        %v2120 = vcombine.low %v2096, %v2112
        %v2121 = vcombine.high %v2096, %v2112
        %v2123 = vunpack.c.l.s4 1934713408
        %v2124 = vunpack.c.0.s8 %v2123
        %v2125 = vlaneseq
        %v2126 = vshrl.u32 %v2125, 7
        %v2127 = vsub.s32 %v2124, %v2126
        %v2128 = vrot.slane %v2120, %v2127
        %v2130 = vunpack.c.l.s4 1934713408
        %v2131 = vunpack.c.0.s8 %v2130
        %v2132 = vlaneseq
        %v2133 = vshrl.u32 %v2132, 7
        %v2134 = vsub.s32 %v2131, %v2133
        %v2135 = vrot.slane %v2121, %v2134
        %v2136 = vcombine.low %v2103, %v2119
        %v2137 = vcombine.high %v2103, %v2119
        %v2139 = vunpack.c.l.s4 1934713408
        %v2140 = vunpack.c.0.s8 %v2139
        %v2141 = vlaneseq
        %v2142 = vshrl.u32 %v2141, 7
        %v2143 = vsub.s32 %v2140, %v2142
        %v2144 = vrot.slane %v2136, %v2143
        %v2146 = vunpack.c.l.s4 1934713408
        %v2147 = vunpack.c.0.s8 %v2146
        %v2148 = vlaneseq
        %v2149 = vshrl.u32 %v2148, 7
        %v2150 = vsub.s32 %v2147, %v2149
        %v2151 = vrot.slane %v2137, %v2150
        %v2152 = vcombine.high %v2128, 0.0
        %v2153 = vcombine.high %v2135, 0.0
        %v2154 = vcombine.high %v2144, 0.0
        %v2155 = vcombine.high %v2151, 0.0
        %v2156 = vcombine.low %v2128, %v2135
        %v2158 = vunpack.c.l.s4 1983009808
        %v2159 = vunpack.c.0.s8 %v2158
        %v2160 = vlaneseq
        %v2161 = vshrl.u32 %v2160, 7
        %v2162 = vsub.s32 %v2159, %v2161
        %v2163 = vrot.slane %v2156, %v2162
        %v2164 = vcombine.low %v2152, %v2153
        %v2166 = vunpack.c.l.s4 1983009808
        %v2167 = vunpack.c.0.s8 %v2166
        %v2168 = vlaneseq
        %v2169 = vshrl.u32 %v2168, 7
        %v2170 = vsub.s32 %v2167, %v2169
        %v2171 = vrot.slane %v2164, %v2170
        %v2172 = vcombine.low %v2144, %v2151
        %v2174 = vunpack.c.l.s4 1983009808
        %v2175 = vunpack.c.0.s8 %v2174
        %v2176 = vlaneseq
        %v2177 = vshrl.u32 %v2176, 7
        %v2178 = vsub.s32 %v2175, %v2177
        %v2179 = vrot.slane %v2172, %v2178
        %v2180 = vcombine.low %v2154, %v2155
        %v2182 = vunpack.c.l.s4 1983009808
        %v2183 = vunpack.c.0.s8 %v2182
        %v2184 = vlaneseq
        %v2185 = vshrl.u32 %v2184, 7
        %v2186 = vsub.s32 %v2183, %v2185
        %v2187 = vrot.slane %v2180, %v2186
        %v2188 = vcombine.low %v2163, %v2171
        %v2189 = vcombine.high %v2163, %v2171
        %v2191 = vunpack.c.l.s4 1934713408
        %v2192 = vunpack.c.0.s8 %v2191
        %v2193 = vlaneseq
        %v2194 = vshrl.u32 %v2193, 7
        %v2195 = vsub.s32 %v2192, %v2194
        %v2196 = vrot.slane %v2188, %v2195
        %v2198 = vunpack.c.l.s4 1934713408
        %v2199 = vunpack.c.0.s8 %v2198
        %v2200 = vlaneseq
        %v2201 = vshrl.u32 %v2200, 7
        %v2202 = vsub.s32 %v2199, %v2201
        %v2203 = vrot.slane %v2189, %v2202
        %v2204 = vcombine.low %v2179, %v2187
        %v2205 = vcombine.high %v2179, %v2187
        %v2207 = vunpack.c.l.s4 1934713408
        %v2208 = vunpack.c.0.s8 %v2207
        %v2209 = vlaneseq
        %v2210 = vshrl.u32 %v2209, 7
        %v2211 = vsub.s32 %v2208, %v2210
        %v2212 = vrot.slane %v2204, %v2211
        %v2214 = vunpack.c.l.s4 1934713408
        %v2215 = vunpack.c.0.s8 %v2214
        %v2216 = vlaneseq
        %v2217 = vshrl.u32 %v2216, 7
        %v2218 = vsub.s32 %v2215, %v2217
        %v2219 = vrot.slane %v2205, %v2218
        %v2220 = vcombine.low %v2196, %v2212
        %v2221 = vcombine.high %v2196, %v2212
        %v2222 = vcombine.low %v2203, %v2219
        %v2223 = vcombine.high %v2203, %v2219
        %v2224 = vpack.c.bf16 %v2220, %v2220
        %v2225 = vpack.c.bf16 %v2221, %v2221
        %v2226 = vpack.c.bf16 %v2222, %v2222
        %v2227 = vpack.c.bf16 %v2223, %v2223
        %2229 = vrot.lane.b32.xlu0 %v1566, 124
        %v2230 = vpop.permute.xlu0 %2229
        %2232 = vrot.lane.b32.xlu0 %v1566, 120
        %v2233 = vpop.permute.xlu0 %2232
        %2235 = vrot.lane.b32.xlu0 %v1566, 116
        %v2236 = vpop.permute.xlu0 %2235
        %v2238 = vcombine.low %v1566, %v2233
        %v2239 = vcombine.high %v1566, %v2233
        %v2241 = vunpack.c.l.s4 1983009808
        %v2242 = vunpack.c.0.s8 %v2241
        %v2243 = vlaneseq
        %v2244 = vshrl.u32 %v2243, 7
        %v2245 = vsub.s32 %v2242, %v2244
        %v2246 = vrot.slane %v2238, %v2245
        %v2248 = vunpack.c.l.s4 1983009808
        %v2249 = vunpack.c.0.s8 %v2248
        %v2250 = vlaneseq
        %v2251 = vshrl.u32 %v2250, 7
        %v2252 = vsub.s32 %v2249, %v2251
        %v2253 = vrot.slane %v2239, %v2252
        %v2254 = vcombine.low %v2230, %v2236
        %v2255 = vcombine.high %v2230, %v2236
        %v2257 = vunpack.c.l.s4 1983009808
        %v2258 = vunpack.c.0.s8 %v2257
        %v2259 = vlaneseq
        %v2260 = vshrl.u32 %v2259, 7
        %v2261 = vsub.s32 %v2258, %v2260
        %v2262 = vrot.slane %v2254, %v2261
        %v2264 = vunpack.c.l.s4 1983009808
        %v2265 = vunpack.c.0.s8 %v2264
        %v2266 = vlaneseq
        %v2267 = vshrl.u32 %v2266, 7
        %v2268 = vsub.s32 %v2265, %v2267
        %v2269 = vrot.slane %v2255, %v2268
        %v2270 = vcombine.low %v2246, %v2262
        %v2271 = vcombine.high %v2246, %v2262
        %v2273 = vunpack.c.l.s4 1934713408
        %v2274 = vunpack.c.0.s8 %v2273
        %v2275 = vlaneseq
        %v2276 = vshrl.u32 %v2275, 7
        %v2277 = vsub.s32 %v2274, %v2276
        %v2278 = vrot.slane %v2270, %v2277
        %v2280 = vunpack.c.l.s4 1934713408
        %v2281 = vunpack.c.0.s8 %v2280
        %v2282 = vlaneseq
        %v2283 = vshrl.u32 %v2282, 7
        %v2284 = vsub.s32 %v2281, %v2283
        %v2285 = vrot.slane %v2271, %v2284
        %v2286 = vcombine.low %v2253, %v2269
        %v2287 = vcombine.high %v2253, %v2269
        %v2289 = vunpack.c.l.s4 1934713408
        %v2290 = vunpack.c.0.s8 %v2289
        %v2291 = vlaneseq
        %v2292 = vshrl.u32 %v2291, 7
        %v2293 = vsub.s32 %v2290, %v2292
        %v2294 = vrot.slane %v2286, %v2293
        %v2296 = vunpack.c.l.s4 1934713408
        %v2297 = vunpack.c.0.s8 %v2296
        %v2298 = vlaneseq
        %v2299 = vshrl.u32 %v2298, 7
        %v2300 = vsub.s32 %v2297, %v2299
        %v2301 = vrot.slane %v2287, %v2300
        %v2302 = vcombine.high %v2278, 0.0
        %v2303 = vcombine.high %v2285, 0.0
        %v2304 = vcombine.high %v2294, 0.0
        %v2305 = vcombine.high %v2301, 0.0
        %v2306 = vcombine.low %v2278, %v2285
        %v2308 = vunpack.c.l.s4 1983009808
        %v2309 = vunpack.c.0.s8 %v2308
        %v2310 = vlaneseq
        %v2311 = vshrl.u32 %v2310, 7
        %v2312 = vsub.s32 %v2309, %v2311
        %v2313 = vrot.slane %v2306, %v2312
        %v2314 = vcombine.low %v2302, %v2303
        %v2316 = vunpack.c.l.s4 1983009808
        %v2317 = vunpack.c.0.s8 %v2316
        %v2318 = vlaneseq
        %v2319 = vshrl.u32 %v2318, 7
        %v2320 = vsub.s32 %v2317, %v2319
        %v2321 = vrot.slane %v2314, %v2320
        %v2322 = vcombine.low %v2294, %v2301
        %v2324 = vunpack.c.l.s4 1983009808
        %v2325 = vunpack.c.0.s8 %v2324
        %v2326 = vlaneseq
        %v2327 = vshrl.u32 %v2326, 7
        %v2328 = vsub.s32 %v2325, %v2327
        %v2329 = vrot.slane %v2322, %v2328
        %v2330 = vcombine.low %v2304, %v2305
        %v2332 = vunpack.c.l.s4 1983009808
        %v2333 = vunpack.c.0.s8 %v2332
        %v2334 = vlaneseq
        %v2335 = vshrl.u32 %v2334, 7
        %v2336 = vsub.s32 %v2333, %v2335
        %v2337 = vrot.slane %v2330, %v2336
        %v2338 = vcombine.low %v2313, %v2321
        %v2339 = vcombine.high %v2313, %v2321
        %v2341 = vunpack.c.l.s4 1934713408
        %v2342 = vunpack.c.0.s8 %v2341
        %v2343 = vlaneseq
        %v2344 = vshrl.u32 %v2343, 7
        %v2345 = vsub.s32 %v2342, %v2344
        %v2346 = vrot.slane %v2338, %v2345
        %v2348 = vunpack.c.l.s4 1934713408
        %v2349 = vunpack.c.0.s8 %v2348
        %v2350 = vlaneseq
        %v2351 = vshrl.u32 %v2350, 7
        %v2352 = vsub.s32 %v2349, %v2351
        %v2353 = vrot.slane %v2339, %v2352
        %v2354 = vcombine.low %v2329, %v2337
        %v2355 = vcombine.high %v2329, %v2337
        %v2357 = vunpack.c.l.s4 1934713408
        %v2358 = vunpack.c.0.s8 %v2357
        %v2359 = vlaneseq
        %v2360 = vshrl.u32 %v2359, 7
        %v2361 = vsub.s32 %v2358, %v2360
        %v2362 = vrot.slane %v2354, %v2361
        %v2364 = vunpack.c.l.s4 1934713408
        %v2365 = vunpack.c.0.s8 %v2364
        %v2366 = vlaneseq
        %v2367 = vshrl.u32 %v2366, 7
        %v2368 = vsub.s32 %v2365, %v2367
        %v2369 = vrot.slane %v2355, %v2368
        %v2370 = vcombine.low %v2346, %v2362
        %v2371 = vcombine.high %v2346, %v2362
        %v2372 = vcombine.low %v2353, %v2369
        %v2373 = vcombine.high %v2353, %v2369
        %v2374 = vpack.c.bf16 %v2370, %v2370
        %v2375 = vpack.c.bf16 %v2371, %v2371
        %v2376 = vpack.c.bf16 %v2372, %v2372
        %v2377 = vpack.c.bf16 %v2373, %v2373
        %2379 = vrot.lane.b32.xlu0 %v1621, 124
        %v2380 = vpop.permute.xlu0 %2379
        %2382 = vrot.lane.b32.xlu0 %v1621, 120
        %v2383 = vpop.permute.xlu0 %2382
        %2385 = vrot.lane.b32.xlu0 %v1621, 116
        %v2386 = vpop.permute.xlu0 %2385
        %v2388 = vcombine.low %v1621, %v2383
        %v2389 = vcombine.high %v1621, %v2383
        %v2391 = vunpack.c.l.s4 1983009808
        %v2392 = vunpack.c.0.s8 %v2391
        %v2393 = vlaneseq
        %v2394 = vshrl.u32 %v2393, 7
        %v2395 = vsub.s32 %v2392, %v2394
        %v2396 = vrot.slane %v2388, %v2395
        %v2398 = vunpack.c.l.s4 1983009808
        %v2399 = vunpack.c.0.s8 %v2398
        %v2400 = vlaneseq
        %v2401 = vshrl.u32 %v2400, 7
        %v2402 = vsub.s32 %v2399, %v2401
        %v2403 = vrot.slane %v2389, %v2402
        %v2404 = vcombine.low %v2380, %v2386
        %v2405 = vcombine.high %v2380, %v2386
        %v2407 = vunpack.c.l.s4 1983009808
        %v2408 = vunpack.c.0.s8 %v2407
        %v2409 = vlaneseq
        %v2410 = vshrl.u32 %v2409, 7
        %v2411 = vsub.s32 %v2408, %v2410
        %v2412 = vrot.slane %v2404, %v2411
        %v2414 = vunpack.c.l.s4 1983009808
        %v2415 = vunpack.c.0.s8 %v2414
        %v2416 = vlaneseq
        %v2417 = vshrl.u32 %v2416, 7
        %v2418 = vsub.s32 %v2415, %v2417
        %v2419 = vrot.slane %v2405, %v2418
        %v2420 = vcombine.low %v2396, %v2412
        %v2421 = vcombine.high %v2396, %v2412
        %v2423 = vunpack.c.l.s4 1934713408
        %v2424 = vunpack.c.0.s8 %v2423
        %v2425 = vlaneseq
        %v2426 = vshrl.u32 %v2425, 7
        %v2427 = vsub.s32 %v2424, %v2426
        %v2428 = vrot.slane %v2420, %v2427
        %v2430 = vunpack.c.l.s4 1934713408
        %v2431 = vunpack.c.0.s8 %v2430
        %v2432 = vlaneseq
        %v2433 = vshrl.u32 %v2432, 7
        %v2434 = vsub.s32 %v2431, %v2433
        %v2435 = vrot.slane %v2421, %v2434
        %v2436 = vcombine.low %v2403, %v2419
        %v2437 = vcombine.high %v2403, %v2419
        %v2439 = vunpack.c.l.s4 1934713408
        %v2440 = vunpack.c.0.s8 %v2439
        %v2441 = vlaneseq
        %v2442 = vshrl.u32 %v2441, 7
        %v2443 = vsub.s32 %v2440, %v2442
        %v2444 = vrot.slane %v2436, %v2443
        %v2446 = vunpack.c.l.s4 1934713408
        %v2447 = vunpack.c.0.s8 %v2446
        %v2448 = vlaneseq
        %v2449 = vshrl.u32 %v2448, 7
        %v2450 = vsub.s32 %v2447, %v2449
        %v2451 = vrot.slane %v2437, %v2450
        %v2452 = vcombine.high %v2428, 0.0
        %v2453 = vcombine.high %v2435, 0.0
        %v2454 = vcombine.high %v2444, 0.0
        %v2455 = vcombine.high %v2451, 0.0
        %v2456 = vcombine.low %v2428, %v2435
        %v2458 = vunpack.c.l.s4 1983009808
        %v2459 = vunpack.c.0.s8 %v2458
        %v2460 = vlaneseq
        %v2461 = vshrl.u32 %v2460, 7
        %v2462 = vsub.s32 %v2459, %v2461
        %v2463 = vrot.slane %v2456, %v2462
        %v2464 = vcombine.low %v2452, %v2453
        %v2466 = vunpack.c.l.s4 1983009808
        %v2467 = vunpack.c.0.s8 %v2466
        %v2468 = vlaneseq
        %v2469 = vshrl.u32 %v2468, 7
        %v2470 = vsub.s32 %v2467, %v2469
        %v2471 = vrot.slane %v2464, %v2470
        %v2472 = vcombine.low %v2444, %v2451
        %v2474 = vunpack.c.l.s4 1983009808
        %v2475 = vunpack.c.0.s8 %v2474
        %v2476 = vlaneseq
        %v2477 = vshrl.u32 %v2476, 7
        %v2478 = vsub.s32 %v2475, %v2477
        %v2479 = vrot.slane %v2472, %v2478
        %v2480 = vcombine.low %v2454, %v2455
        %v2482 = vunpack.c.l.s4 1983009808
        %v2483 = vunpack.c.0.s8 %v2482
        %v2484 = vlaneseq
        %v2485 = vshrl.u32 %v2484, 7
        %v2486 = vsub.s32 %v2483, %v2485
        %v2487 = vrot.slane %v2480, %v2486
        %v2488 = vcombine.low %v2463, %v2471
        %v2489 = vcombine.high %v2463, %v2471
        %v2491 = vunpack.c.l.s4 1934713408
        %v2492 = vunpack.c.0.s8 %v2491
        %v2493 = vlaneseq
        %v2494 = vshrl.u32 %v2493, 7
        %v2495 = vsub.s32 %v2492, %v2494
        %v2496 = vrot.slane %v2488, %v2495
        %v2498 = vunpack.c.l.s4 1934713408
        %v2499 = vunpack.c.0.s8 %v2498
        %v2500 = vlaneseq
        %v2501 = vshrl.u32 %v2500, 7
        %v2502 = vsub.s32 %v2499, %v2501
        %v2503 = vrot.slane %v2489, %v2502
        %v2504 = vcombine.low %v2479, %v2487
        %v2505 = vcombine.high %v2479, %v2487
        %v2507 = vunpack.c.l.s4 1934713408
        %v2508 = vunpack.c.0.s8 %v2507
        %v2509 = vlaneseq
        %v2510 = vshrl.u32 %v2509, 7
        %v2511 = vsub.s32 %v2508, %v2510
        %v2512 = vrot.slane %v2504, %v2511
        %v2514 = vunpack.c.l.s4 1934713408
        %v2515 = vunpack.c.0.s8 %v2514
        %v2516 = vlaneseq
        %v2517 = vshrl.u32 %v2516, 7
        %v2518 = vsub.s32 %v2515, %v2517
        %v2519 = vrot.slane %v2505, %v2518
        %v2520 = vcombine.low %v2496, %v2512
        %v2521 = vcombine.high %v2496, %v2512
        %v2522 = vcombine.low %v2503, %v2519
        %v2523 = vcombine.high %v2503, %v2519
        %v2524 = vpack.c.bf16 %v2520, %v2520
        %v2525 = vpack.c.bf16 %v2521, %v2521
        %v2526 = vpack.c.bf16 %v2522, %v2522
        %v2527 = vpack.c.bf16 %v2523, %v2523
        %vm2528 = vcmask 31744
        %v2530 = vsel %vm2528, %v2224, 0
        %v2533 = vsel %vm2528, %v2374, 0
        %2535 = vmatprep.subr.bf16.mxu0 0
        %2536 = vmatpush1.bf16.xpose.msra.mxu0 %v2533
        %2537 = vmatprep.subr.bf16.mxu0 0
        %2538 = vmatpush1.bf16.xpose.msra.mxu0 0
        %2539 = vmatprep.subr.bf16.mxu0 0
        %2540 = vmatpush1.bf16.xpose.msra.mxu0 0
        %2541 = vmatprep.subr.bf16.mxu0 0
        %2542 = vmatpush1.bf16.xpose.msra.mxu0 0
        %2543 = vmatprep.subr.bf16.mxu0 0
        %2544 = vmatpush1.bf16.xpose.msra.mxu0 0
        %2545 = vmatprep.subr.bf16.mxu0 0
        %2546 = vmatpush1.bf16.xpose.msra.mxu0 0
        %2547 = vmatprep.subr.bf16.mxu0 0
        %2548 = vmatpush1.bf16.xpose.msra.mxu0 0
        %2549 = vmatprep.subr.bf16.mxu0 0
        %2550 = vmatpush1.bf16.xpose.msra.mxu0 0
        %2551 = vmatprep.subr.bf16.mxu0 0
        %2552 = vmatpush1.bf16.xpose.msra.mxu0 0
        %2553 = vmatprep.subr.bf16.mxu0 0
        %2554 = vmatpush1.bf16.xpose.msra.mxu0 0
        %2555 = vmatprep.subr.bf16.mxu0 0
        %2556 = vmatpush1.bf16.xpose.msra.mxu0 0
        %2557 = vmatprep.subr.bf16.mxu0 0
        %2558 = vmatpush1.bf16.xpose.msra.mxu0 0
        %2559 = vmatprep.subr.bf16.mxu0 0
        %2560 = vmatpush1.bf16.xpose.msra.mxu0 0
        %2561 = vmatprep.subr.bf16.mxu0 0
        %2562 = vmatpush1.bf16.xpose.msra.mxu0 0
        %2563 = vmatprep.subr.bf16.mxu0 0
        %2564 = vmatpush1.bf16.xpose.msra.mxu0 0
        %2565 = vmatprep.subr.bf16.mxu0 0
        %2566 = vmatpush1.bf16.xpose.msra.mxu0 0
        %2567 = vmatprep.mubr.bf16.mxu0 0
        %2568 = vmatmul.mubr.bf16.gmra.mrb[0].mxu0 %v2530
        %v2569 = vpop.f32.mrb[0].mxu0
        %v2570 = vadd.f32 0.0, %v2569
        %v2571 = vpop.f32.mrb[0].mxu0
        %v2572 = vpop.f32.mrb[0].mxu0
        %v2573 = vpop.f32.mrb[0].mxu0
        %2574 = vdwg.mxu0
        %v2576 = vsel %vm2528, %v2225, 0
        %v2579 = vsel %vm2528, %v2375, 0
        %2581 = vmatprep.subr.bf16.mxu0 0
        %2582 = vmatpush1.bf16.xpose.msra.mxu0 %v2579
        %2583 = vmatprep.subr.bf16.mxu0 0
        %2584 = vmatpush1.bf16.xpose.msra.mxu0 0
        %2585 = vmatprep.subr.bf16.mxu0 0
        %2586 = vmatpush1.bf16.xpose.msra.mxu0 0
        %2587 = vmatprep.subr.bf16.mxu0 0
        %2588 = vmatpush1.bf16.xpose.msra.mxu0 0
        %2589 = vmatprep.subr.bf16.mxu0 0
        %2590 = vmatpush1.bf16.xpose.msra.mxu0 0
        %2591 = vmatprep.subr.bf16.mxu0 0
        %2592 = vmatpush1.bf16.xpose.msra.mxu0 0
        %2593 = vmatprep.subr.bf16.mxu0 0
        %2594 = vmatpush1.bf16.xpose.msra.mxu0 0
        %2595 = vmatprep.subr.bf16.mxu0 0
        %2596 = vmatpush1.bf16.xpose.msra.mxu0 0
        %2597 = vmatprep.subr.bf16.mxu0 0
        %2598 = vmatpush1.bf16.xpose.msra.mxu0 0
        %2599 = vmatprep.subr.bf16.mxu0 0
        %2600 = vmatpush1.bf16.xpose.msra.mxu0 0
        %2601 = vmatprep.subr.bf16.mxu0 0
        %2602 = vmatpush1.bf16.xpose.msra.mxu0 0
        %2603 = vmatprep.subr.bf16.mxu0 0
        %2604 = vmatpush1.bf16.xpose.msra.mxu0 0
        %2605 = vmatprep.subr.bf16.mxu0 0
        %2606 = vmatpush1.bf16.xpose.msra.mxu0 0
        %2607 = vmatprep.subr.bf16.mxu0 0
        %2608 = vmatpush1.bf16.xpose.msra.mxu0 0
        %2609 = vmatprep.subr.bf16.mxu0 0
        %2610 = vmatpush1.bf16.xpose.msra.mxu0 0
        %2611 = vmatprep.subr.bf16.mxu0 0
        %2612 = vmatpush1.bf16.xpose.msra.mxu0 0
        %2613 = vmatprep.mubr.bf16.mxu0 0
        %2614 = vmatmul.mubr.bf16.gmra.mrb[0].mxu0 %v2576
        %v2615 = vpop.f32.mrb[0].mxu0
        %v2616 = vadd.f32 0.0, %v2615
        %v2617 = vpop.f32.mrb[0].mxu0
        %v2618 = vpop.f32.mrb[0].mxu0
        %v2619 = vpop.f32.mrb[0].mxu0
        %2620 = vdwg.mxu0
        %v2622 = vsel %vm2528, %v2226, 0
        %v2625 = vsel %vm2528, %v2376, 0
        %2627 = vmatprep.subr.bf16.mxu0 0
        %2628 = vmatpush1.bf16.xpose.msra.mxu0 %v2625
        %2629 = vmatprep.subr.bf16.mxu0 0
        %2630 = vmatpush1.bf16.xpose.msra.mxu0 0
        %2631 = vmatprep.subr.bf16.mxu0 0
        %2632 = vmatpush1.bf16.xpose.msra.mxu0 0
        %2633 = vmatprep.subr.bf16.mxu0 0
        %2634 = vmatpush1.bf16.xpose.msra.mxu0 0
        %2635 = vmatprep.subr.bf16.mxu0 0
        %2636 = vmatpush1.bf16.xpose.msra.mxu0 0
        %2637 = vmatprep.subr.bf16.mxu0 0
        %2638 = vmatpush1.bf16.xpose.msra.mxu0 0
        %2639 = vmatprep.subr.bf16.mxu0 0
        %2640 = vmatpush1.bf16.xpose.msra.mxu0 0
        %2641 = vmatprep.subr.bf16.mxu0 0
        %2642 = vmatpush1.bf16.xpose.msra.mxu0 0
        %2643 = vmatprep.subr.bf16.mxu0 0
        %2644 = vmatpush1.bf16.xpose.msra.mxu0 0
        %2645 = vmatprep.subr.bf16.mxu0 0
        %2646 = vmatpush1.bf16.xpose.msra.mxu0 0
        %2647 = vmatprep.subr.bf16.mxu0 0
        %2648 = vmatpush1.bf16.xpose.msra.mxu0 0
        %2649 = vmatprep.subr.bf16.mxu0 0
        %2650 = vmatpush1.bf16.xpose.msra.mxu0 0
        %2651 = vmatprep.subr.bf16.mxu0 0
        %2652 = vmatpush1.bf16.xpose.msra.mxu0 0
        %2653 = vmatprep.subr.bf16.mxu0 0
        %2654 = vmatpush1.bf16.xpose.msra.mxu0 0
        %2655 = vmatprep.subr.bf16.mxu0 0
        %2656 = vmatpush1.bf16.xpose.msra.mxu0 0
        %2657 = vmatprep.subr.bf16.mxu0 0
        %2658 = vmatpush1.bf16.xpose.msra.mxu0 0
        %2659 = vmatprep.mubr.bf16.mxu0 0
        %2660 = vmatmul.mubr.bf16.gmra.mrb[0].mxu0 %v2622
        %v2661 = vpop.f32.mrb[0].mxu0
        %v2662 = vadd.f32 0.0, %v2661
        %v2663 = vpop.f32.mrb[0].mxu0
        %v2664 = vpop.f32.mrb[0].mxu0
        %v2665 = vpop.f32.mrb[0].mxu0
        %2666 = vdwg.mxu0
        %v2668 = vsel %vm2528, %v2227, 0
        %v2671 = vsel %vm2528, %v2377, 0
        %2673 = vmatprep.subr.bf16.mxu0 0
        %2674 = vmatpush1.bf16.xpose.msra.mxu0 %v2671
        %2675 = vmatprep.subr.bf16.mxu0 0
        %2676 = vmatpush1.bf16.xpose.msra.mxu0 0
        %2677 = vmatprep.subr.bf16.mxu0 0
        %2678 = vmatpush1.bf16.xpose.msra.mxu0 0
        %2679 = vmatprep.subr.bf16.mxu0 0
        %2680 = vmatpush1.bf16.xpose.msra.mxu0 0
        %2681 = vmatprep.subr.bf16.mxu0 0
        %2682 = vmatpush1.bf16.xpose.msra.mxu0 0
        %2683 = vmatprep.subr.bf16.mxu0 0
        %2684 = vmatpush1.bf16.xpose.msra.mxu0 0
        %2685 = vmatprep.subr.bf16.mxu0 0
        %2686 = vmatpush1.bf16.xpose.msra.mxu0 0
        %2687 = vmatprep.subr.bf16.mxu0 0
        %2688 = vmatpush1.bf16.xpose.msra.mxu0 0
        %2689 = vmatprep.subr.bf16.mxu0 0
        %2690 = vmatpush1.bf16.xpose.msra.mxu0 0
        %2691 = vmatprep.subr.bf16.mxu0 0
        %2692 = vmatpush1.bf16.xpose.msra.mxu0 0
        %2693 = vmatprep.subr.bf16.mxu0 0
        %2694 = vmatpush1.bf16.xpose.msra.mxu0 0
        %2695 = vmatprep.subr.bf16.mxu0 0
        %2696 = vmatpush1.bf16.xpose.msra.mxu0 0
        %2697 = vmatprep.subr.bf16.mxu0 0
        %2698 = vmatpush1.bf16.xpose.msra.mxu0 0
        %2699 = vmatprep.subr.bf16.mxu0 0
        %2700 = vmatpush1.bf16.xpose.msra.mxu0 0
        %2701 = vmatprep.subr.bf16.mxu0 0
        %2702 = vmatpush1.bf16.xpose.msra.mxu0 0
        %2703 = vmatprep.subr.bf16.mxu0 0
        %2704 = vmatpush1.bf16.xpose.msra.mxu0 0
        %2705 = vmatprep.mubr.bf16.mxu0 0
        %2706 = vmatmul.mubr.bf16.gmra.mrb[0].mxu0 %v2668
        %v2707 = vpop.f32.mrb[0].mxu0
        %v2708 = vadd.f32 0.0, %v2707
        %v2709 = vpop.f32.mrb[0].mxu0
        %v2710 = vpop.f32.mrb[0].mxu0
        %v2711 = vpop.f32.mrb[0].mxu0
        %2712 = vdwg.mxu0
        %vm2713 = vcmask 64512
        %v2715 = vsel %vm2713, %v1773, 0
        %v2718 = vsel %vm2713, %v1923, 0
        %2720 = vmatprep.subr.bf16.mxu0 0
        %2721 = vmatpush1.bf16.xpose.msra.mxu0 %v2718
        %2722 = vmatprep.subr.bf16.mxu0 0
        %2723 = vmatpush1.bf16.xpose.msra.mxu0 0
        %2724 = vmatprep.subr.bf16.mxu0 0
        %2725 = vmatpush1.bf16.xpose.msra.mxu0 0
        %2726 = vmatprep.subr.bf16.mxu0 0
        %2727 = vmatpush1.bf16.xpose.msra.mxu0 0
        %2728 = vmatprep.subr.bf16.mxu0 0
        %2729 = vmatpush1.bf16.xpose.msra.mxu0 0
        %2730 = vmatprep.subr.bf16.mxu0 0
        %2731 = vmatpush1.bf16.xpose.msra.mxu0 0
        %2732 = vmatprep.subr.bf16.mxu0 0
        %2733 = vmatpush1.bf16.xpose.msra.mxu0 0
        %2734 = vmatprep.subr.bf16.mxu0 0
        %2735 = vmatpush1.bf16.xpose.msra.mxu0 0
        %2736 = vmatprep.subr.bf16.mxu0 0
        %2737 = vmatpush1.bf16.xpose.msra.mxu0 0
        %2738 = vmatprep.subr.bf16.mxu0 0
        %2739 = vmatpush1.bf16.xpose.msra.mxu0 0
        %2740 = vmatprep.subr.bf16.mxu0 0
        %2741 = vmatpush1.bf16.xpose.msra.mxu0 0
        %2742 = vmatprep.subr.bf16.mxu0 0
        %2743 = vmatpush1.bf16.xpose.msra.mxu0 0
        %2744 = vmatprep.subr.bf16.mxu0 0
        %2745 = vmatpush1.bf16.xpose.msra.mxu0 0
        %2746 = vmatprep.subr.bf16.mxu0 0
        %2747 = vmatpush1.bf16.xpose.msra.mxu0 0
        %2748 = vmatprep.subr.bf16.mxu0 0
        %2749 = vmatpush1.bf16.xpose.msra.mxu0 0
        %2750 = vmatprep.subr.bf16.mxu0 0
        %2751 = vmatpush1.bf16.xpose.msra.mxu0 0
        %2752 = vmatprep.mubr.bf16.mxu0 0
        %2753 = vmatmul.mubr.bf16.gmra.mrb[0].mxu0 %v2715
        %v2754 = vpop.f32.mrb[0].mxu0
        %v2755 = vadd.f32 %v2570, %v2754
        %v2756 = vpop.f32.mrb[0].mxu0
        %v2757 = vpop.f32.mrb[0].mxu0
        %v2758 = vpop.f32.mrb[0].mxu0
        %2759 = vdwg.mxu0
        %v2761 = vsel %vm2713, %v1774, 0
        %v2764 = vsel %vm2713, %v1924, 0
        %2766 = vmatprep.subr.bf16.mxu0 0
        %2767 = vmatpush1.bf16.xpose.msra.mxu0 %v2764
        %2768 = vmatprep.subr.bf16.mxu0 0
        %2769 = vmatpush1.bf16.xpose.msra.mxu0 0
        %2770 = vmatprep.subr.bf16.mxu0 0
        %2771 = vmatpush1.bf16.xpose.msra.mxu0 0
        %2772 = vmatprep.subr.bf16.mxu0 0
        %2773 = vmatpush1.bf16.xpose.msra.mxu0 0
        %2774 = vmatprep.subr.bf16.mxu0 0
        %2775 = vmatpush1.bf16.xpose.msra.mxu0 0
        %2776 = vmatprep.subr.bf16.mxu0 0
        %2777 = vmatpush1.bf16.xpose.msra.mxu0 0
        %2778 = vmatprep.subr.bf16.mxu0 0
        %2779 = vmatpush1.bf16.xpose.msra.mxu0 0
        %2780 = vmatprep.subr.bf16.mxu0 0
        %2781 = vmatpush1.bf16.xpose.msra.mxu0 0
        %2782 = vmatprep.subr.bf16.mxu0 0
        %2783 = vmatpush1.bf16.xpose.msra.mxu0 0
        %2784 = vmatprep.subr.bf16.mxu0 0
        %2785 = vmatpush1.bf16.xpose.msra.mxu0 0
        %2786 = vmatprep.subr.bf16.mxu0 0
        %2787 = vmatpush1.bf16.xpose.msra.mxu0 0
        %2788 = vmatprep.subr.bf16.mxu0 0
        %2789 = vmatpush1.bf16.xpose.msra.mxu0 0
        %2790 = vmatprep.subr.bf16.mxu0 0
        %2791 = vmatpush1.bf16.xpose.msra.mxu0 0
        %2792 = vmatprep.subr.bf16.mxu0 0
        %2793 = vmatpush1.bf16.xpose.msra.mxu0 0
        %2794 = vmatprep.subr.bf16.mxu0 0
        %2795 = vmatpush1.bf16.xpose.msra.mxu0 0
        %2796 = vmatprep.subr.bf16.mxu0 0
        %2797 = vmatpush1.bf16.xpose.msra.mxu0 0
        %2798 = vmatprep.mubr.bf16.mxu0 0
        %2799 = vmatmul.mubr.bf16.gmra.mrb[0].mxu0 %v2761
        %v2800 = vpop.f32.mrb[0].mxu0
        %v2801 = vadd.f32 %v2616, %v2800
        %v2802 = vpop.f32.mrb[0].mxu0
        %v2803 = vpop.f32.mrb[0].mxu0
        %v2804 = vpop.f32.mrb[0].mxu0
        %2805 = vdwg.mxu0
        %v2807 = vsel %vm2713, %v1775, 0
        %v2810 = vsel %vm2713, %v1925, 0
        %2812 = vmatprep.subr.bf16.mxu0 0
        %2813 = vmatpush1.bf16.xpose.msra.mxu0 %v2810
        %2814 = vmatprep.subr.bf16.mxu0 0
        %2815 = vmatpush1.bf16.xpose.msra.mxu0 0
        %2816 = vmatprep.subr.bf16.mxu0 0
        %2817 = vmatpush1.bf16.xpose.msra.mxu0 0
        %2818 = vmatprep.subr.bf16.mxu0 0
        %2819 = vmatpush1.bf16.xpose.msra.mxu0 0
        %2820 = vmatprep.subr.bf16.mxu0 0
        %2821 = vmatpush1.bf16.xpose.msra.mxu0 0
        %2822 = vmatprep.subr.bf16.mxu0 0
        %2823 = vmatpush1.bf16.xpose.msra.mxu0 0
        %2824 = vmatprep.subr.bf16.mxu0 0
        %2825 = vmatpush1.bf16.xpose.msra.mxu0 0
        %2826 = vmatprep.subr.bf16.mxu0 0
        %2827 = vmatpush1.bf16.xpose.msra.mxu0 0
        %2828 = vmatprep.subr.bf16.mxu0 0
        %2829 = vmatpush1.bf16.xpose.msra.mxu0 0
        %2830 = vmatprep.subr.bf16.mxu0 0
        %2831 = vmatpush1.bf16.xpose.msra.mxu0 0
        %2832 = vmatprep.subr.bf16.mxu0 0
        %2833 = vmatpush1.bf16.xpose.msra.mxu0 0
        %2834 = vmatprep.subr.bf16.mxu0 0
        %2835 = vmatpush1.bf16.xpose.msra.mxu0 0
        %2836 = vmatprep.subr.bf16.mxu0 0
        %2837 = vmatpush1.bf16.xpose.msra.mxu0 0
        %2838 = vmatprep.subr.bf16.mxu0 0
        %2839 = vmatpush1.bf16.xpose.msra.mxu0 0
        %2840 = vmatprep.subr.bf16.mxu0 0
        %2841 = vmatpush1.bf16.xpose.msra.mxu0 0
        %2842 = vmatprep.subr.bf16.mxu0 0
        %2843 = vmatpush1.bf16.xpose.msra.mxu0 0
        %2844 = vmatprep.mubr.bf16.mxu0 0
        %2845 = vmatmul.mubr.bf16.gmra.mrb[0].mxu0 %v2807
        %v2846 = vpop.f32.mrb[0].mxu0
        %v2847 = vadd.f32 %v2662, %v2846
        %v2848 = vpop.f32.mrb[0].mxu0
        %v2849 = vpop.f32.mrb[0].mxu0
        %v2850 = vpop.f32.mrb[0].mxu0
        %2851 = vdwg.mxu0
        %v2853 = vsel %vm2713, %v1776, 0
        %v2856 = vsel %vm2713, %v1926, 0
        %2858 = vmatprep.subr.bf16.mxu0 0
        %2859 = vmatpush1.bf16.xpose.msra.mxu0 %v2856
        %2860 = vmatprep.subr.bf16.mxu0 0
        %2861 = vmatpush1.bf16.xpose.msra.mxu0 0
        %2862 = vmatprep.subr.bf16.mxu0 0
        %2863 = vmatpush1.bf16.xpose.msra.mxu0 0
        %2864 = vmatprep.subr.bf16.mxu0 0
        %2865 = vmatpush1.bf16.xpose.msra.mxu0 0
        %2866 = vmatprep.subr.bf16.mxu0 0
        %2867 = vmatpush1.bf16.xpose.msra.mxu0 0
        %2868 = vmatprep.subr.bf16.mxu0 0
        %2869 = vmatpush1.bf16.xpose.msra.mxu0 0
        %2870 = vmatprep.subr.bf16.mxu0 0
        %2871 = vmatpush1.bf16.xpose.msra.mxu0 0
        %2872 = vmatprep.subr.bf16.mxu0 0
        %2873 = vmatpush1.bf16.xpose.msra.mxu0 0
        %2874 = vmatprep.subr.bf16.mxu0 0
        %2875 = vmatpush1.bf16.xpose.msra.mxu0 0
        %2876 = vmatprep.subr.bf16.mxu0 0
        %2877 = vmatpush1.bf16.xpose.msra.mxu0 0
        %2878 = vmatprep.subr.bf16.mxu0 0
        %2879 = vmatpush1.bf16.xpose.msra.mxu0 0
        %2880 = vmatprep.subr.bf16.mxu0 0
        %2881 = vmatpush1.bf16.xpose.msra.mxu0 0
        %2882 = vmatprep.subr.bf16.mxu0 0
        %2883 = vmatpush1.bf16.xpose.msra.mxu0 0
        %2884 = vmatprep.subr.bf16.mxu0 0
        %2885 = vmatpush1.bf16.xpose.msra.mxu0 0
        %2886 = vmatprep.subr.bf16.mxu0 0
        %2887 = vmatpush1.bf16.xpose.msra.mxu0 0
        %2888 = vmatprep.subr.bf16.mxu0 0
        %2889 = vmatpush1.bf16.xpose.msra.mxu0 0
        %2890 = vmatprep.mubr.bf16.mxu0 0
        %2891 = vmatmul.mubr.bf16.gmra.mrb[0].mxu0 %v2853
        %v2892 = vpop.f32.mrb[0].mxu0
        %v2893 = vadd.f32 %v2708, %v2892
        %v2894 = vpop.f32.mrb[0].mxu0
        %v2895 = vpop.f32.mrb[0].mxu0
        %v2896 = vpop.f32.mrb[0].mxu0
        %2897 = vdwg.mxu0
        %v2898 = vsel %vm2713, %v2755, -inf
        %2899 = vmax.xlane.f32.xlu0 %v2898
        %v2900 = vpop.xlane.xlu0 %2899
        %v2901 = vsel %vm2713, %v2801, -inf
        %2902 = vmax.xlane.f32.xlu0 %v2901
        %v2903 = vpop.xlane.xlu0 %2902
        %v2904 = vsel %vm2713, %v2847, -inf
        %2905 = vmax.xlane.f32.xlu0 %v2904
        %v2906 = vpop.xlane.xlu0 %2905
        %v2907 = vsel %vm2713, %v2893, -inf
        %2908 = vmax.xlane.f32.xlu0 %v2907
        %v2909 = vpop.xlane.xlu0 %2908
        %v2910 = vsub.f32 %v2755, %v2900
        %v2911 = vsub.f32 %v2801, %v2903
        %v2912 = vsub.f32 %v2847, %v2906
        %v2913 = vsub.f32 %v2893, %v2909
        %v2914 = vmul.f32 %v2910, 1.442695
        %v2915 = vpow.pop %v2914
        %v2916 = vmul.f32 %v2911, 1.442695
        %v2917 = vpow.pop %v2916
        %v2918 = vmul.f32 %v2912, 1.442695
        %v2919 = vpow.pop %v2918
        %v2920 = vmul.f32 %v2913, 1.442695
        %v2921 = vpow.pop %v2920
        %v2922 = vsel %vm2713, %v2915, 0.0
        %2923 = vadd.xlane.f32.xlu0 %v2922
        %v2924 = vpop.xlane.xlu0 %2923
        %v2925 = vsel %vm2713, %v2917, 0.0
        %2926 = vadd.xlane.f32.xlu0 %v2925
        %v2927 = vpop.xlane.xlu0 %2926
        %v2928 = vsel %vm2713, %v2919, 0.0
        %2929 = vadd.xlane.f32.xlu0 %v2928
        %v2930 = vpop.xlane.xlu0 %2929
        %v2931 = vsel %vm2713, %v2921, 0.0
        %2932 = vadd.xlane.f32.xlu0 %v2931
        %v2933 = vpop.xlane.xlu0 %2932
        %v2934 = vrcp.pop %v2924
        %v2935 = vrcp.pop %v2927
        %v2936 = vrcp.pop %v2930
        %v2937 = vrcp.pop %v2933
        %v2938 = vmul.f32 %v2915, %v2934
        %v2939 = vmul.f32 %v2917, %v2935
        %v2940 = vmul.f32 %v2919, %v2936
        %v2941 = vmul.f32 %v2921, %v2937
        %v2942 = vpack.c.bf16 %v2938, %v2938
        %v2943 = vpack.c.bf16 %v2939, %v2939
        %v2944 = vpack.c.bf16 %v2940, %v2940
        %v2945 = vpack.c.bf16 %v2941, %v2941
        %v2947 = vsel %vm2713, %v2942, 0
        %vm2949 = vcmask 1043456
        %v2951 = vsel %vm2949, %v2073, 0
        %2953 = vmatprep.subr.bf16.mxu0 0
        %2954 = vmatpush1.bf16.msra.mxu0 %v2951
        %2955 = vmatprep.subr.bf16.mxu0 0
        %2956 = vmatpush1.bf16.msra.mxu0 0
        %2957 = vmatprep.subr.bf16.mxu0 0
        %2958 = vmatpush1.bf16.msra.mxu0 0
        %2959 = vmatprep.subr.bf16.mxu0 0
        %2960 = vmatpush1.bf16.msra.mxu0 0
        %2961 = vmatprep.subr.bf16.mxu0 0
        %2962 = vmatpush1.bf16.msra.mxu0 0
        %2963 = vmatprep.subr.bf16.mxu0 0
        %2964 = vmatpush1.bf16.msra.mxu0 0
        %2965 = vmatprep.subr.bf16.mxu0 0
        %2966 = vmatpush1.bf16.msra.mxu0 0
        %2967 = vmatprep.subr.bf16.mxu0 0
        %2968 = vmatpush1.bf16.msra.mxu0 0
        %2969 = vmatprep.subr.bf16.mxu0 0
        %2970 = vmatpush1.bf16.msra.mxu0 0
        %2971 = vmatprep.subr.bf16.mxu0 0
        %2972 = vmatpush1.bf16.msra.mxu0 0
        %2973 = vmatprep.subr.bf16.mxu0 0
        %2974 = vmatpush1.bf16.msra.mxu0 0
        %2975 = vmatprep.subr.bf16.mxu0 0
        %2976 = vmatpush1.bf16.msra.mxu0 0
        %2977 = vmatprep.subr.bf16.mxu0 0
        %2978 = vmatpush1.bf16.msra.mxu0 0
        %2979 = vmatprep.subr.bf16.mxu0 0
        %2980 = vmatpush1.bf16.msra.mxu0 0
        %2981 = vmatprep.subr.bf16.mxu0 0
        %2982 = vmatpush1.bf16.msra.mxu0 0
        %2983 = vmatprep.subr.bf16.mxu0 0
        %2984 = vmatpush1.bf16.msra.mxu0 0
        %2985 = vmatprep.mubr.bf16.mxu0 0
        %2986 = vmatmul.mubr.bf16.gmra.mrb[0].mxu0 %v2947
        %v2987 = vpop.f32.mrb[0].mxu0
        %v2988 = vadd.f32 0.0, %v2987
        %v2989 = vpop.f32.mrb[0].mxu0
        %v2990 = vpop.f32.mrb[0].mxu0
        %v2991 = vpop.f32.mrb[0].mxu0
        %2992 = vdwg.mxu0
        %v2994 = vsel %vm2713, %v2943, 0
        %v2997 = vsel %vm2949, %v2074, 0
        %2999 = vmatprep.subr.bf16.mxu0 0
        %3000 = vmatpush1.bf16.msra.mxu0 %v2997
        %3001 = vmatprep.subr.bf16.mxu0 0
        %3002 = vmatpush1.bf16.msra.mxu0 0
        %3003 = vmatprep.subr.bf16.mxu0 0
        %3004 = vmatpush1.bf16.msra.mxu0 0
        %3005 = vmatprep.subr.bf16.mxu0 0
        %3006 = vmatpush1.bf16.msra.mxu0 0
        %3007 = vmatprep.subr.bf16.mxu0 0
        %3008 = vmatpush1.bf16.msra.mxu0 0
        %3009 = vmatprep.subr.bf16.mxu0 0
        %3010 = vmatpush1.bf16.msra.mxu0 0
        %3011 = vmatprep.subr.bf16.mxu0 0
        %3012 = vmatpush1.bf16.msra.mxu0 0
        %3013 = vmatprep.subr.bf16.mxu0 0
        %3014 = vmatpush1.bf16.msra.mxu0 0
        %3015 = vmatprep.subr.bf16.mxu0 0
        %3016 = vmatpush1.bf16.msra.mxu0 0
        %3017 = vmatprep.subr.bf16.mxu0 0
        %3018 = vmatpush1.bf16.msra.mxu0 0
        %3019 = vmatprep.subr.bf16.mxu0 0
        %3020 = vmatpush1.bf16.msra.mxu0 0
        %3021 = vmatprep.subr.bf16.mxu0 0
        %3022 = vmatpush1.bf16.msra.mxu0 0
        %3023 = vmatprep.subr.bf16.mxu0 0
        %3024 = vmatpush1.bf16.msra.mxu0 0
        %3025 = vmatprep.subr.bf16.mxu0 0
        %3026 = vmatpush1.bf16.msra.mxu0 0
        %3027 = vmatprep.subr.bf16.mxu0 0
        %3028 = vmatpush1.bf16.msra.mxu0 0
        %3029 = vmatprep.subr.bf16.mxu0 0
        %3030 = vmatpush1.bf16.msra.mxu0 0
        %3031 = vmatprep.mubr.bf16.mxu0 0
        %3032 = vmatmul.mubr.bf16.gmra.mrb[0].mxu0 %v2994
        %v3033 = vpop.f32.mrb[0].mxu0
        %v3034 = vadd.f32 0.0, %v3033
        %v3035 = vpop.f32.mrb[0].mxu0
        %v3036 = vpop.f32.mrb[0].mxu0
        %v3037 = vpop.f32.mrb[0].mxu0
        %3038 = vdwg.mxu0
        %v3040 = vsel %vm2713, %v2944, 0
        %v3043 = vsel %vm2949, %v2075, 0
        %3045 = vmatprep.subr.bf16.mxu0 0
        %3046 = vmatpush1.bf16.msra.mxu0 %v3043
        %3047 = vmatprep.subr.bf16.mxu0 0
        %3048 = vmatpush1.bf16.msra.mxu0 0
        %3049 = vmatprep.subr.bf16.mxu0 0
        %3050 = vmatpush1.bf16.msra.mxu0 0
        %3051 = vmatprep.subr.bf16.mxu0 0
        %3052 = vmatpush1.bf16.msra.mxu0 0
        %3053 = vmatprep.subr.bf16.mxu0 0
        %3054 = vmatpush1.bf16.msra.mxu0 0
        %3055 = vmatprep.subr.bf16.mxu0 0
        %3056 = vmatpush1.bf16.msra.mxu0 0
        %3057 = vmatprep.subr.bf16.mxu0 0
        %3058 = vmatpush1.bf16.msra.mxu0 0
        %3059 = vmatprep.subr.bf16.mxu0 0
        %3060 = vmatpush1.bf16.msra.mxu0 0
        %3061 = vmatprep.subr.bf16.mxu0 0
        %3062 = vmatpush1.bf16.msra.mxu0 0
        %3063 = vmatprep.subr.bf16.mxu0 0
        %3064 = vmatpush1.bf16.msra.mxu0 0
        %3065 = vmatprep.subr.bf16.mxu0 0
        %3066 = vmatpush1.bf16.msra.mxu0 0
        %3067 = vmatprep.subr.bf16.mxu0 0
        %3068 = vmatpush1.bf16.msra.mxu0 0
        %3069 = vmatprep.subr.bf16.mxu0 0
        %3070 = vmatpush1.bf16.msra.mxu0 0
        %3071 = vmatprep.subr.bf16.mxu0 0
        %3072 = vmatpush1.bf16.msra.mxu0 0
        %3073 = vmatprep.subr.bf16.mxu0 0
        %3074 = vmatpush1.bf16.msra.mxu0 0
        %3075 = vmatprep.subr.bf16.mxu0 0
        %3076 = vmatpush1.bf16.msra.mxu0 0
        %3077 = vmatprep.mubr.bf16.mxu0 0
        %3078 = vmatmul.mubr.bf16.gmra.mrb[0].mxu0 %v3040
        %v3079 = vpop.f32.mrb[0].mxu0
        %v3080 = vadd.f32 0.0, %v3079
        %v3081 = vpop.f32.mrb[0].mxu0
        %v3082 = vpop.f32.mrb[0].mxu0
        %v3083 = vpop.f32.mrb[0].mxu0
        %3084 = vdwg.mxu0
        %v3086 = vsel %vm2713, %v2945, 0
        %v3089 = vsel %vm2949, %v2076, 0
        %3091 = vmatprep.subr.bf16.mxu0 0
        %3092 = vmatpush1.bf16.msra.mxu0 %v3089
        %3093 = vmatprep.subr.bf16.mxu0 0
        %3094 = vmatpush1.bf16.msra.mxu0 0
        %3095 = vmatprep.subr.bf16.mxu0 0
        %3096 = vmatpush1.bf16.msra.mxu0 0
        %3097 = vmatprep.subr.bf16.mxu0 0
        %3098 = vmatpush1.bf16.msra.mxu0 0
        %3099 = vmatprep.subr.bf16.mxu0 0
        %3100 = vmatpush1.bf16.msra.mxu0 0
        %3101 = vmatprep.subr.bf16.mxu0 0
        %3102 = vmatpush1.bf16.msra.mxu0 0
        %3103 = vmatprep.subr.bf16.mxu0 0
        %3104 = vmatpush1.bf16.msra.mxu0 0
        %3105 = vmatprep.subr.bf16.mxu0 0
        %3106 = vmatpush1.bf16.msra.mxu0 0
        %3107 = vmatprep.subr.bf16.mxu0 0
        %3108 = vmatpush1.bf16.msra.mxu0 0
        %3109 = vmatprep.subr.bf16.mxu0 0
        %3110 = vmatpush1.bf16.msra.mxu0 0
        %3111 = vmatprep.subr.bf16.mxu0 0
        %3112 = vmatpush1.bf16.msra.mxu0 0
        %3113 = vmatprep.subr.bf16.mxu0 0
        %3114 = vmatpush1.bf16.msra.mxu0 0
        %3115 = vmatprep.subr.bf16.mxu0 0
        %3116 = vmatpush1.bf16.msra.mxu0 0
        %3117 = vmatprep.subr.bf16.mxu0 0
        %3118 = vmatpush1.bf16.msra.mxu0 0
        %3119 = vmatprep.subr.bf16.mxu0 0
        %3120 = vmatpush1.bf16.msra.mxu0 0
        %3121 = vmatprep.subr.bf16.mxu0 0
        %3122 = vmatpush1.bf16.msra.mxu0 0
        %3123 = vmatprep.mubr.bf16.mxu0 0
        %3124 = vmatmul.mubr.bf16.gmra.mrb[0].mxu0 %v3086
        %v3125 = vpop.f32.mrb[0].mxu0
        %v3126 = vadd.f32 0.0, %v3125
        %v3127 = vpop.f32.mrb[0].mxu0
        %v3128 = vpop.f32.mrb[0].mxu0
        %v3129 = vpop.f32.mrb[0].mxu0
        %3130 = vdwg.mxu0
        %v3131 = vcombine.low %v2988, %v3080
        %v3132 = vcombine.high %v2988, %v3080
        %v3134 = vunpack.c.l.s4 1983009808
        %v3135 = vunpack.c.0.s8 %v3134
        %v3136 = vlaneseq
        %v3137 = vshrl.u32 %v3136, 7
        %v3138 = vsub.s32 %v3135, %v3137
        %v3139 = vrot.slane %v3131, %v3138
        %v3141 = vunpack.c.l.s4 1983009808
        %v3142 = vunpack.c.0.s8 %v3141
        %v3143 = vlaneseq
        %v3144 = vshrl.u32 %v3143, 7
        %v3145 = vsub.s32 %v3142, %v3144
        %v3146 = vrot.slane %v3132, %v3145
        %v3147 = vcombine.low %v3034, %v3126
        %v3148 = vcombine.high %v3034, %v3126
        %v3150 = vunpack.c.l.s4 1983009808
        %v3151 = vunpack.c.0.s8 %v3150
        %v3152 = vlaneseq
        %v3153 = vshrl.u32 %v3152, 7
        %v3154 = vsub.s32 %v3151, %v3153
        %v3155 = vrot.slane %v3147, %v3154
        %v3157 = vunpack.c.l.s4 1983009808
        %v3158 = vunpack.c.0.s8 %v3157
        %v3159 = vlaneseq
        %v3160 = vshrl.u32 %v3159, 7
        %v3161 = vsub.s32 %v3158, %v3160
        %v3162 = vrot.slane %v3148, %v3161
        %v3163 = vcombine.low %v3139, %v3155
        %v3164 = vcombine.high %v3139, %v3155
        %v3166 = vunpack.c.l.s4 1934713408
        %v3167 = vunpack.c.0.s8 %v3166
        %v3168 = vlaneseq
        %v3169 = vshrl.u32 %v3168, 7
        %v3170 = vsub.s32 %v3167, %v3169
        %v3171 = vrot.slane %v3163, %v3170
        %v3173 = vunpack.c.l.s4 1934713408
        %v3174 = vunpack.c.0.s8 %v3173
        %v3175 = vlaneseq
        %v3176 = vshrl.u32 %v3175, 7
        %v3177 = vsub.s32 %v3174, %v3176
        %v3178 = vrot.slane %v3164, %v3177
        %v3179 = vcombine.low %v3146, %v3162
        %v3180 = vcombine.high %v3146, %v3162
        %v3182 = vunpack.c.l.s4 1934713408
        %v3183 = vunpack.c.0.s8 %v3182
        %v3184 = vlaneseq
        %v3185 = vshrl.u32 %v3184, 7
        %v3186 = vsub.s32 %v3183, %v3185
        %v3187 = vrot.slane %v3179, %v3186
        %v3189 = vunpack.c.l.s4 1934713408
        %v3190 = vunpack.c.0.s8 %v3189
        %v3191 = vlaneseq
        %v3192 = vshrl.u32 %v3191, 7
        %v3193 = vsub.s32 %v3190, %v3192
        %v3194 = vrot.slane %v3180, %v3193
        %v3195 = vcombine.high %v3171, 0.0
        %v3196 = vcombine.high %v3178, 0.0
        %v3197 = vcombine.high %v3187, 0.0
        %v3198 = vcombine.high %v3194, 0.0
        %v3199 = vcombine.low %v3171, %v3178
        %v3201 = vunpack.c.l.s4 1983009808
        %v3202 = vunpack.c.0.s8 %v3201
        %v3203 = vlaneseq
        %v3204 = vshrl.u32 %v3203, 7
        %v3205 = vsub.s32 %v3202, %v3204
        %v3206 = vrot.slane %v3199, %v3205
        %v3207 = vcombine.low %v3195, %v3196
        %v3209 = vunpack.c.l.s4 1983009808
        %v3210 = vunpack.c.0.s8 %v3209
        %v3211 = vlaneseq
        %v3212 = vshrl.u32 %v3211, 7
        %v3213 = vsub.s32 %v3210, %v3212
        %v3214 = vrot.slane %v3207, %v3213
        %v3215 = vcombine.low %v3187, %v3194
        %v3217 = vunpack.c.l.s4 1983009808
        %v3218 = vunpack.c.0.s8 %v3217
        %v3219 = vlaneseq
        %v3220 = vshrl.u32 %v3219, 7
        %v3221 = vsub.s32 %v3218, %v3220
        %v3222 = vrot.slane %v3215, %v3221
        %v3223 = vcombine.low %v3197, %v3198
        %v3225 = vunpack.c.l.s4 1983009808
        %v3226 = vunpack.c.0.s8 %v3225
        %v3227 = vlaneseq
        %v3228 = vshrl.u32 %v3227, 7
        %v3229 = vsub.s32 %v3226, %v3228
        %v3230 = vrot.slane %v3223, %v3229
        %v3231 = vcombine.low %v3206, %v3214
        %v3232 = vcombine.high %v3206, %v3214
        %v3234 = vunpack.c.l.s4 1934713408
        %v3235 = vunpack.c.0.s8 %v3234
        %v3236 = vlaneseq
        %v3237 = vshrl.u32 %v3236, 7
        %v3238 = vsub.s32 %v3235, %v3237
        %v3239 = vrot.slane %v3231, %v3238
        %v3241 = vunpack.c.l.s4 1934713408
        %v3242 = vunpack.c.0.s8 %v3241
        %v3243 = vlaneseq
        %v3244 = vshrl.u32 %v3243, 7
        %v3245 = vsub.s32 %v3242, %v3244
        %v3246 = vrot.slane %v3232, %v3245
        %v3247 = vcombine.low %v3222, %v3230
        %v3248 = vcombine.high %v3222, %v3230
        %v3250 = vunpack.c.l.s4 1934713408
        %v3251 = vunpack.c.0.s8 %v3250
        %v3252 = vlaneseq
        %v3253 = vshrl.u32 %v3252, 7
        %v3254 = vsub.s32 %v3251, %v3253
        %v3255 = vrot.slane %v3247, %v3254
        %v3257 = vunpack.c.l.s4 1934713408
        %v3258 = vunpack.c.0.s8 %v3257
        %v3259 = vlaneseq
        %v3260 = vshrl.u32 %v3259, 7
        %v3261 = vsub.s32 %v3258, %v3260
        %v3262 = vrot.slane %v3248, %v3261
        %v3263 = vcombine.low %v3239, %v3255
        %v3264 = vcombine.high %v3239, %v3255
        %v3265 = vcombine.low %v3246, %v3262
        %v3266 = vcombine.high %v3246, %v3262
        %3268 = vrot.lane.b32.xlu0 %v3264, 8
        %v3269 = vpop.permute.xlu0 %3268
        %3272 = vrot.lane.b32.xlu0 %v3265, 16
        %v3273 = vpop.permute.xlu0 %3272
        %3276 = vrot.lane.b32.xlu0 %v3266, 24
        %v3277 = vpop.permute.xlu0 %3276
        %v3279 = vsel %vm2713, %v3263, %v3269
        %v3280 = vsel %vm1472, %v3279, %v3273
        %vm3281 = vcmask 195584
        %v3282 = vsel %vm3281, %v3280, %v3277
        %v3284 = vsel %vm2949, %v2524, 0
        %3286 = vmatprep.subr.bf16.mxu0 0
        %3287 = vmatpush1.bf16.msra.mxu0 %v3284
        %3288 = vmatprep.subr.bf16.mxu0 0
        %3289 = vmatpush1.bf16.msra.mxu0 0
        %3290 = vmatprep.subr.bf16.mxu0 0
        %3291 = vmatpush1.bf16.msra.mxu0 0
        %3292 = vmatprep.subr.bf16.mxu0 0
        %3293 = vmatpush1.bf16.msra.mxu0 0
        %3294 = vmatprep.subr.bf16.mxu0 0
        %3295 = vmatpush1.bf16.msra.mxu0 0
        %3296 = vmatprep.subr.bf16.mxu0 0
        %3297 = vmatpush1.bf16.msra.mxu0 0
        %3298 = vmatprep.subr.bf16.mxu0 0
        %3299 = vmatpush1.bf16.msra.mxu0 0
        %3300 = vmatprep.subr.bf16.mxu0 0
        %3301 = vmatpush1.bf16.msra.mxu0 0
        %3302 = vmatprep.subr.bf16.mxu0 0
        %3303 = vmatpush1.bf16.msra.mxu0 0
        %3304 = vmatprep.subr.bf16.mxu0 0
        %3305 = vmatpush1.bf16.msra.mxu0 0
        %3306 = vmatprep.subr.bf16.mxu0 0
        %3307 = vmatpush1.bf16.msra.mxu0 0
        %3308 = vmatprep.subr.bf16.mxu0 0
        %3309 = vmatpush1.bf16.msra.mxu0 0
        %3310 = vmatprep.subr.bf16.mxu0 0
        %3311 = vmatpush1.bf16.msra.mxu0 0
        %3312 = vmatprep.subr.bf16.mxu0 0
        %3313 = vmatpush1.bf16.msra.mxu0 0
        %3314 = vmatprep.subr.bf16.mxu0 0
        %3315 = vmatpush1.bf16.msra.mxu0 0
        %3316 = vmatprep.subr.bf16.mxu0 0
        %3317 = vmatpush1.bf16.msra.mxu0 0
        %3318 = vmatprep.mubr.bf16.mxu0 0
        %3319 = vmatmul.mubr.bf16.gmra.mrb[0].mxu0 %v2947
        %v3320 = vpop.f32.mrb[0].mxu0
        %v3321 = vadd.f32 0.0, %v3320
        %v3322 = vpop.f32.mrb[0].mxu0
        %v3323 = vpop.f32.mrb[0].mxu0
        %v3324 = vpop.f32.mrb[0].mxu0
        %3325 = vdwg.mxu0
        %v3327 = vsel %vm2949, %v2525, 0
        %3329 = vmatprep.subr.bf16.mxu0 0
        %3330 = vmatpush1.bf16.msra.mxu0 %v3327
        %3331 = vmatprep.subr.bf16.mxu0 0
        %3332 = vmatpush1.bf16.msra.mxu0 0
        %3333 = vmatprep.subr.bf16.mxu0 0
        %3334 = vmatpush1.bf16.msra.mxu0 0
        %3335 = vmatprep.subr.bf16.mxu0 0
        %3336 = vmatpush1.bf16.msra.mxu0 0
        %3337 = vmatprep.subr.bf16.mxu0 0
        %3338 = vmatpush1.bf16.msra.mxu0 0
        %3339 = vmatprep.subr.bf16.mxu0 0
        %3340 = vmatpush1.bf16.msra.mxu0 0
        %3341 = vmatprep.subr.bf16.mxu0 0
        %3342 = vmatpush1.bf16.msra.mxu0 0
        %3343 = vmatprep.subr.bf16.mxu0 0
        %3344 = vmatpush1.bf16.msra.mxu0 0
        %3345 = vmatprep.subr.bf16.mxu0 0
        %3346 = vmatpush1.bf16.msra.mxu0 0
        %3347 = vmatprep.subr.bf16.mxu0 0
        %3348 = vmatpush1.bf16.msra.mxu0 0
        %3349 = vmatprep.subr.bf16.mxu0 0
        %3350 = vmatpush1.bf16.msra.mxu0 0
        %3351 = vmatprep.subr.bf16.mxu0 0
        %3352 = vmatpush1.bf16.msra.mxu0 0
        %3353 = vmatprep.subr.bf16.mxu0 0
        %3354 = vmatpush1.bf16.msra.mxu0 0
        %3355 = vmatprep.subr.bf16.mxu0 0
        %3356 = vmatpush1.bf16.msra.mxu0 0
        %3357 = vmatprep.subr.bf16.mxu0 0
        %3358 = vmatpush1.bf16.msra.mxu0 0
        %3359 = vmatprep.subr.bf16.mxu0 0
        %3360 = vmatpush1.bf16.msra.mxu0 0
        %3361 = vmatprep.mubr.bf16.mxu0 0
        %3362 = vmatmul.mubr.bf16.gmra.mrb[0].mxu0 %v2994
        %v3363 = vpop.f32.mrb[0].mxu0
        %v3364 = vadd.f32 0.0, %v3363
        %v3365 = vpop.f32.mrb[0].mxu0
        %v3366 = vpop.f32.mrb[0].mxu0
        %v3367 = vpop.f32.mrb[0].mxu0
        %3368 = vdwg.mxu0
        %v3370 = vsel %vm2949, %v2526, 0
        %3372 = vmatprep.subr.bf16.mxu0 0
        %3373 = vmatpush1.bf16.msra.mxu0 %v3370
        %3374 = vmatprep.subr.bf16.mxu0 0
        %3375 = vmatpush1.bf16.msra.mxu0 0
        %3376 = vmatprep.subr.bf16.mxu0 0
        %3377 = vmatpush1.bf16.msra.mxu0 0
        %3378 = vmatprep.subr.bf16.mxu0 0
        %3379 = vmatpush1.bf16.msra.mxu0 0
        %3380 = vmatprep.subr.bf16.mxu0 0
        %3381 = vmatpush1.bf16.msra.mxu0 0
        %3382 = vmatprep.subr.bf16.mxu0 0
        %3383 = vmatpush1.bf16.msra.mxu0 0
        %3384 = vmatprep.subr.bf16.mxu0 0
        %3385 = vmatpush1.bf16.msra.mxu0 0
        %3386 = vmatprep.subr.bf16.mxu0 0
        %3387 = vmatpush1.bf16.msra.mxu0 0
        %3388 = vmatprep.subr.bf16.mxu0 0
        %3389 = vmatpush1.bf16.msra.mxu0 0
        %3390 = vmatprep.subr.bf16.mxu0 0
        %3391 = vmatpush1.bf16.msra.mxu0 0
        %3392 = vmatprep.subr.bf16.mxu0 0
        %3393 = vmatpush1.bf16.msra.mxu0 0
        %3394 = vmatprep.subr.bf16.mxu0 0
        %3395 = vmatpush1.bf16.msra.mxu0 0
        %3396 = vmatprep.subr.bf16.mxu0 0
        %3397 = vmatpush1.bf16.msra.mxu0 0
        %3398 = vmatprep.subr.bf16.mxu0 0
        %3399 = vmatpush1.bf16.msra.mxu0 0
        %3400 = vmatprep.subr.bf16.mxu0 0
        %3401 = vmatpush1.bf16.msra.mxu0 0
        %3402 = vmatprep.subr.bf16.mxu0 0
        %3403 = vmatpush1.bf16.msra.mxu0 0
        %3404 = vmatprep.mubr.bf16.mxu0 0
        %3405 = vmatmul.mubr.bf16.gmra.mrb[0].mxu0 %v3040
        %v3406 = vpop.f32.mrb[0].mxu0
        %v3407 = vadd.f32 0.0, %v3406
        %v3408 = vpop.f32.mrb[0].mxu0
        %v3409 = vpop.f32.mrb[0].mxu0
        %v3410 = vpop.f32.mrb[0].mxu0
        %3411 = vdwg.mxu0
        %v3413 = vsel %vm2949, %v2527, 0
        %3415 = vmatprep.subr.bf16.mxu0 0
        %3416 = vmatpush1.bf16.msra.mxu0 %v3413
        %3417 = vmatprep.subr.bf16.mxu0 0
        %3418 = vmatpush1.bf16.msra.mxu0 0
        %3419 = vmatprep.subr.bf16.mxu0 0
        %3420 = vmatpush1.bf16.msra.mxu0 0
        %3421 = vmatprep.subr.bf16.mxu0 0
        %3422 = vmatpush1.bf16.msra.mxu0 0
        %3423 = vmatprep.subr.bf16.mxu0 0
        %3424 = vmatpush1.bf16.msra.mxu0 0
        %3425 = vmatprep.subr.bf16.mxu0 0
        %3426 = vmatpush1.bf16.msra.mxu0 0
        %3427 = vmatprep.subr.bf16.mxu0 0
        %3428 = vmatpush1.bf16.msra.mxu0 0
        %3429 = vmatprep.subr.bf16.mxu0 0
        %3430 = vmatpush1.bf16.msra.mxu0 0
        %3431 = vmatprep.subr.bf16.mxu0 0
        %3432 = vmatpush1.bf16.msra.mxu0 0
        %3433 = vmatprep.subr.bf16.mxu0 0
        %3434 = vmatpush1.bf16.msra.mxu0 0
        %3435 = vmatprep.subr.bf16.mxu0 0
        %3436 = vmatpush1.bf16.msra.mxu0 0
        %3437 = vmatprep.subr.bf16.mxu0 0
        %3438 = vmatpush1.bf16.msra.mxu0 0
        %3439 = vmatprep.subr.bf16.mxu0 0
        %3440 = vmatpush1.bf16.msra.mxu0 0
        %3441 = vmatprep.subr.bf16.mxu0 0
        %3442 = vmatpush1.bf16.msra.mxu0 0
        %3443 = vmatprep.subr.bf16.mxu0 0
        %3444 = vmatpush1.bf16.msra.mxu0 0
        %3445 = vmatprep.subr.bf16.mxu0 0
        %3446 = vmatpush1.bf16.msra.mxu0 0
        %3447 = vmatprep.mubr.bf16.mxu0 0
        %3448 = vmatmul.mubr.bf16.gmra.mrb[0].mxu0 %v3086
        %v3449 = vpop.f32.mrb[0].mxu0
        %v3450 = vadd.f32 0.0, %v3449
        %v3451 = vpop.f32.mrb[0].mxu0
        %v3452 = vpop.f32.mrb[0].mxu0
        %v3453 = vpop.f32.mrb[0].mxu0
        %3454 = vdwg.mxu0
        %v3455 = vcombine.low %v3321, %v3407
        %v3456 = vcombine.high %v3321, %v3407
        %v3458 = vunpack.c.l.s4 1983009808
        %v3459 = vunpack.c.0.s8 %v3458
        %v3460 = vlaneseq
        %v3461 = vshrl.u32 %v3460, 7
        %v3462 = vsub.s32 %v3459, %v3461
        %v3463 = vrot.slane %v3455, %v3462
        %v3465 = vunpack.c.l.s4 1983009808
        %v3466 = vunpack.c.0.s8 %v3465
        %v3467 = vlaneseq
        %v3468 = vshrl.u32 %v3467, 7
        %v3469 = vsub.s32 %v3466, %v3468
        %v3470 = vrot.slane %v3456, %v3469
        %v3471 = vcombine.low %v3364, %v3450
        %v3472 = vcombine.high %v3364, %v3450
        %v3474 = vunpack.c.l.s4 1983009808
        %v3475 = vunpack.c.0.s8 %v3474
        %v3476 = vlaneseq
        %v3477 = vshrl.u32 %v3476, 7
        %v3478 = vsub.s32 %v3475, %v3477
        %v3479 = vrot.slane %v3471, %v3478
        %v3481 = vunpack.c.l.s4 1983009808
        %v3482 = vunpack.c.0.s8 %v3481
        %v3483 = vlaneseq
        %v3484 = vshrl.u32 %v3483, 7
        %v3485 = vsub.s32 %v3482, %v3484
        %v3486 = vrot.slane %v3472, %v3485
        %v3487 = vcombine.low %v3463, %v3479
        %v3488 = vcombine.high %v3463, %v3479
        %v3490 = vunpack.c.l.s4 1934713408
        %v3491 = vunpack.c.0.s8 %v3490
        %v3492 = vlaneseq
        %v3493 = vshrl.u32 %v3492, 7
        %v3494 = vsub.s32 %v3491, %v3493
        %v3495 = vrot.slane %v3487, %v3494
        %v3497 = vunpack.c.l.s4 1934713408
        %v3498 = vunpack.c.0.s8 %v3497
        %v3499 = vlaneseq
        %v3500 = vshrl.u32 %v3499, 7
        %v3501 = vsub.s32 %v3498, %v3500
        %v3502 = vrot.slane %v3488, %v3501
        %v3503 = vcombine.low %v3470, %v3486
        %v3504 = vcombine.high %v3470, %v3486
        %v3506 = vunpack.c.l.s4 1934713408
        %v3507 = vunpack.c.0.s8 %v3506
        %v3508 = vlaneseq
        %v3509 = vshrl.u32 %v3508, 7
        %v3510 = vsub.s32 %v3507, %v3509
        %v3511 = vrot.slane %v3503, %v3510
        %v3513 = vunpack.c.l.s4 1934713408
        %v3514 = vunpack.c.0.s8 %v3513
        %v3515 = vlaneseq
        %v3516 = vshrl.u32 %v3515, 7
        %v3517 = vsub.s32 %v3514, %v3516
        %v3518 = vrot.slane %v3504, %v3517
        %v3519 = vcombine.high %v3495, 0.0
        %v3520 = vcombine.high %v3502, 0.0
        %v3521 = vcombine.high %v3511, 0.0
        %v3522 = vcombine.high %v3518, 0.0
        %v3523 = vcombine.low %v3495, %v3502
        %v3525 = vunpack.c.l.s4 1983009808
        %v3526 = vunpack.c.0.s8 %v3525
        %v3527 = vlaneseq
        %v3528 = vshrl.u32 %v3527, 7
        %v3529 = vsub.s32 %v3526, %v3528
        %v3530 = vrot.slane %v3523, %v3529
        %v3531 = vcombine.low %v3519, %v3520
        %v3533 = vunpack.c.l.s4 1983009808
        %v3534 = vunpack.c.0.s8 %v3533
        %v3535 = vlaneseq
        %v3536 = vshrl.u32 %v3535, 7
        %v3537 = vsub.s32 %v3534, %v3536
        %v3538 = vrot.slane %v3531, %v3537
        %v3539 = vcombine.low %v3511, %v3518
        %v3541 = vunpack.c.l.s4 1983009808
        %v3542 = vunpack.c.0.s8 %v3541
        %v3543 = vlaneseq
        %v3544 = vshrl.u32 %v3543, 7
        %v3545 = vsub.s32 %v3542, %v3544
        %v3546 = vrot.slane %v3539, %v3545
        %v3547 = vcombine.low %v3521, %v3522
        %v3549 = vunpack.c.l.s4 1983009808
        %v3550 = vunpack.c.0.s8 %v3549
        %v3551 = vlaneseq
        %v3552 = vshrl.u32 %v3551, 7
        %v3553 = vsub.s32 %v3550, %v3552
        %v3554 = vrot.slane %v3547, %v3553
        %v3555 = vcombine.low %v3530, %v3538
        %v3556 = vcombine.high %v3530, %v3538
        %v3558 = vunpack.c.l.s4 1934713408
        %v3559 = vunpack.c.0.s8 %v3558
        %v3560 = vlaneseq
        %v3561 = vshrl.u32 %v3560, 7
        %v3562 = vsub.s32 %v3559, %v3561
        %v3563 = vrot.slane %v3555, %v3562
        %v3565 = vunpack.c.l.s4 1934713408
        %v3566 = vunpack.c.0.s8 %v3565
        %v3567 = vlaneseq
        %v3568 = vshrl.u32 %v3567, 7
        %v3569 = vsub.s32 %v3566, %v3568
        %v3570 = vrot.slane %v3556, %v3569
        %v3571 = vcombine.low %v3546, %v3554
        %v3572 = vcombine.high %v3546, %v3554
        %v3574 = vunpack.c.l.s4 1934713408
        %v3575 = vunpack.c.0.s8 %v3574
        %v3576 = vlaneseq
        %v3577 = vshrl.u32 %v3576, 7
        %v3578 = vsub.s32 %v3575, %v3577
        %v3579 = vrot.slane %v3571, %v3578
        %v3581 = vunpack.c.l.s4 1934713408
        %v3582 = vunpack.c.0.s8 %v3581
        %v3583 = vlaneseq
        %v3584 = vshrl.u32 %v3583, 7
        %v3585 = vsub.s32 %v3582, %v3584
        %v3586 = vrot.slane %v3572, %v3585
        %v3587 = vcombine.low %v3563, %v3579
        %v3588 = vcombine.high %v3563, %v3579
        %v3589 = vcombine.low %v3570, %v3586
        %v3590 = vcombine.high %v3570, %v3586
        %3592 = vrot.lane.b32.xlu0 %v3588, 4
        %v3593 = vpop.permute.xlu0 %3592
        %3596 = vrot.lane.b32.xlu0 %v3589, 8
        %v3597 = vpop.permute.xlu0 %3596
        %3600 = vrot.lane.b32.xlu0 %v3590, 12
        %v3601 = vpop.permute.xlu0 %3600
        %v3603 = vsel %vm2528, %v3587, %v3593
        %v3604 = vsel %vm2713, %v3603, %v3597
        %vm3605 = vcmask 97280
        %v3606 = vsel %vm3605, %v3604, %v3601
        %v3607 = vpack.c.bf16 %v3282, %v3282
        %v3608 = vld [vmem:[%s17] sm:$0xf]
        %v3609 = vld [vmem:[%s17 + $0x4] sm:$0xf]
        %v3610 = vld [vmem:[%s17 + $0x8] sm:$0xf]
        %v3611 = vld [vmem:[%s17 + $0xc] sm:$0xf]
        %v3612 = vld [vmem:[#allocation11] sm:$0x1]
        %v3614 = vlaneseq
        %v3615 = vshrl.u32 %v3614, 7
        %v3616 = vsub.s32 0, %v3615
        %v3617 = vrot.slane %v3612, %v3616
        %v3623 = vunpack.c.l.b16 %v3608
        %v3624 = vunpack.c.l.b16 %v3609
        %v3625 = vunpack.c.l.b16 %v3610
        %v3626 = vunpack.c.l.b16 %v3611
        %v3627 = vpack.c.b16 %v3624, %v3623
        %v3628 = vpack.c.b16 %v3626, %v3625
        %v3632 = vsel %vm1287, %v3607, 0
        %3634 = vmatprep.subr.bf16.mxu0 0
        %3635 = vmatpush1.bf16.msra.mxu0 %v3627
        %3636 = vmatprep.subr.bf16.mxu0 0
        %3637 = vmatpush1.bf16.msra.mxu0 %v3628
        %3638 = vmatprep.subr.bf16.mxu0 0
        %3639 = vmatpush1.bf16.msra.mxu0 0
        %3640 = vmatprep.subr.bf16.mxu0 0
        %3641 = vmatpush1.bf16.msra.mxu0 0
        %3642 = vmatprep.subr.bf16.mxu0 0
        %3643 = vmatpush1.bf16.msra.mxu0 0
        %3644 = vmatprep.subr.bf16.mxu0 0
        %3645 = vmatpush1.bf16.msra.mxu0 0
        %3646 = vmatprep.subr.bf16.mxu0 0
        %3647 = vmatpush1.bf16.msra.mxu0 0
        %3648 = vmatprep.subr.bf16.mxu0 0
        %3649 = vmatpush1.bf16.msra.mxu0 0
        %3650 = vmatprep.subr.bf16.mxu0 0
        %3651 = vmatpush1.bf16.msra.mxu0 0
        %3652 = vmatprep.subr.bf16.mxu0 0
        %3653 = vmatpush1.bf16.msra.mxu0 0
        %3654 = vmatprep.subr.bf16.mxu0 0
        %3655 = vmatpush1.bf16.msra.mxu0 0
        %3656 = vmatprep.subr.bf16.mxu0 0
        %3657 = vmatpush1.bf16.msra.mxu0 0
        %3658 = vmatprep.subr.bf16.mxu0 0
        %3659 = vmatpush1.bf16.msra.mxu0 0
        %3660 = vmatprep.subr.bf16.mxu0 0
        %3661 = vmatpush1.bf16.msra.mxu0 0
        %3662 = vmatprep.subr.bf16.mxu0 0
        %3663 = vmatpush1.bf16.msra.mxu0 0
        %3664 = vmatprep.subr.bf16.mxu0 0
        %3665 = vmatpush1.bf16.msra.mxu0 0
        %3666 = vmatprep.mubr.bf16.mxu0 0
        %3667 = vmatmul.mubr.bf16.gmra.mrb[0].mxu0 %v3632
        %v3668 = vpop.f32.mrb[0].mxu0
        %v3669 = vadd.f32 %v3617, %v3668
        %v3670 = vpop.f32.mrb[0].mxu0
        %v3671 = vpop.f32.mrb[0].mxu0
        %v3672 = vpop.f32.mrb[0].mxu0
        %3673 = vdwg.mxu0
        %v3674 = vadd.f32 %v3669, %v1262
        %v3675 = vld [vmem:[#allocation13] sm:$0x1]
        %v3676 = vld [vmem:[#allocation14] sm:$0x1]
        %v3677 = vsel %vm1287, %v3674, 0.0
        %3678 = vadd.xlane.f32.xlu0 %v3677
        %v3679 = vpop.xlane.xlu0 %3678
        %v3680 = vrcp.pop 32.0
        %v3681 = vmul.f32 %v3679, %v3680
        %v3682 = vsub.f32 %v3674, %v3681
        %v3683 = vmul.f32 %v3682, %v3682
        %v3684 = vsel %vm1287, %v3683, 0.0
        %3685 = vadd.xlane.f32.xlu0 %v3684
        %v3686 = vpop.xlane.xlu0 %3685
        %v3687 = vmul.f32 %v3686, %v3680
        %v3688 = vadd.f32 %v3687, 1e-12
        %v3689 = vrsqrt.pop %v3688
        %v3690 = vmul.f32 %v3682, %v3689
        %v3692 = vlaneseq
        %v3693 = vshrl.u32 %v3692, 7
        %v3694 = vsub.s32 0, %v3693
        %v3695 = vrot.slane %v3675, %v3694
        %v3697 = vmul.f32 %v3690, %v3695
        %v3699 = vlaneseq
        %v3700 = vshrl.u32 %v3699, 7
        %v3701 = vsub.s32 0, %v3700
        %v3702 = vrot.slane %v3676, %v3701
        %v3704 = vadd.f32 %v3697, %v3702
        %v3705 = vpack.c.bf16 %v3606, %v3606
        %v3706 = vld [vmem:[%s49] sm:$0xf]
        %v3707 = vld [vmem:[%s49 + $0x4] sm:$0xf]
        %v3708 = vld [vmem:[%s51] sm:$0x1]
        %v3710 = vlaneseq
        %v3711 = vshrl.u32 %v3710, 7
        %v3712 = vsub.s32 0, %v3711
        %v3713 = vrot.slane %v3708, %v3712
        %v3717 = vunpack.c.l.b16 %v3706
        %v3718 = vunpack.c.l.b16 %v3707
        %v3719 = vpack.c.b16 %v3718, %v3717
        %v3722 = vsel %vm1472, %v3705, 0
        %3724 = vmatprep.subr.bf16.mxu0 0
        %3725 = vmatpush1.bf16.msra.mxu0 %v3719
        %3726 = vmatprep.subr.bf16.mxu0 0
        %3727 = vmatpush1.bf16.msra.mxu0 0
        %3728 = vmatprep.subr.bf16.mxu0 0
        %3729 = vmatpush1.bf16.msra.mxu0 0
        %3730 = vmatprep.subr.bf16.mxu0 0
        %3731 = vmatpush1.bf16.msra.mxu0 0
        %3732 = vmatprep.subr.bf16.mxu0 0
        %3733 = vmatpush1.bf16.msra.mxu0 0
        %3734 = vmatprep.subr.bf16.mxu0 0
        %3735 = vmatpush1.bf16.msra.mxu0 0
        %3736 = vmatprep.subr.bf16.mxu0 0
        %3737 = vmatpush1.bf16.msra.mxu0 0
        %3738 = vmatprep.subr.bf16.mxu0 0
        %3739 = vmatpush1.bf16.msra.mxu0 0
        %3740 = vmatprep.subr.bf16.mxu0 0
        %3741 = vmatpush1.bf16.msra.mxu0 0
        %3742 = vmatprep.subr.bf16.mxu0 0
        %3743 = vmatpush1.bf16.msra.mxu0 0
        %3744 = vmatprep.subr.bf16.mxu0 0
        %3745 = vmatpush1.bf16.msra.mxu0 0
        %3746 = vmatprep.subr.bf16.mxu0 0
        %3747 = vmatpush1.bf16.msra.mxu0 0
        %3748 = vmatprep.subr.bf16.mxu0 0
        %3749 = vmatpush1.bf16.msra.mxu0 0
        %3750 = vmatprep.subr.bf16.mxu0 0
        %3751 = vmatpush1.bf16.msra.mxu0 0
        %3752 = vmatprep.subr.bf16.mxu0 0
        %3753 = vmatpush1.bf16.msra.mxu0 0
        %3754 = vmatprep.subr.bf16.mxu0 0
        %3755 = vmatpush1.bf16.msra.mxu0 0
        %3756 = vmatprep.mubr.bf16.mxu0 0
        %3757 = vmatmul.mubr.bf16.gmra.mrb[0].mxu0 %v3722
        %v3758 = vpop.f32.mrb[0].mxu0
        %v3759 = vadd.f32 %v3713, %v3758
        %v3760 = vpop.f32.mrb[0].mxu0
        %v3761 = vpop.f32.mrb[0].mxu0
        %v3762 = vpop.f32.mrb[0].mxu0
        %3763 = vdwg.mxu0
        %v3764 = vadd.f32 %v3759, %v1263
        %v3765 = vld [vmem:[%s53] sm:$0x1]
        %v3766 = vld [vmem:[%s55] sm:$0x1]
        %v3767 = vsel %vm1472, %v3764, 0.0
        %3768 = vadd.xlane.f32.xlu0 %v3767
        %v3769 = vpop.xlane.xlu0 %3768
        %v3770 = vrcp.pop 16.0
        %v3771 = vmul.f32 %v3769, %v3770
        %v3772 = vsub.f32 %v3764, %v3771
        %v3773 = vmul.f32 %v3772, %v3772
        %v3774 = vsel %vm1472, %v3773, 0.0
        %3775 = vadd.xlane.f32.xlu0 %v3774
        %v3776 = vpop.xlane.xlu0 %3775
        %v3777 = vmul.f32 %v3776, %v3770
        %v3778 = vadd.f32 %v3777, 1e-12
        %v3779 = vrsqrt.pop %v3778
        %v3780 = vmul.f32 %v3772, %v3779
        %v3782 = vlaneseq
        %v3783 = vshrl.u32 %v3782, 7
        %v3784 = vsub.s32 0, %v3783
        %v3785 = vrot.slane %v3765, %v3784
        %v3787 = vmul.f32 %v3780, %v3785
        %v3789 = vlaneseq
        %v3790 = vshrl.u32 %v3789, 7
        %v3791 = vsub.s32 0, %v3790
        %v3792 = vrot.slane %v3766, %v3791
        %v3794 = vadd.f32 %v3787, %v3792
        %v3795 = vpack.c.bf16 %v3704, %v3704
        %v3796 = vld [vmem:[%s25] sm:$0xf]
        %v3797 = vld [vmem:[%s25 + $0x4] sm:$0xf]
        %v3798 = vld [vmem:[%s25 + $0x8] sm:$0xf]
        %v3799 = vld [vmem:[%s25 + $0xc] sm:$0xf]
        %v3800 = vld [vmem:[#allocation16] sm:$0x1]
        %v3802 = vlaneseq
        %v3803 = vshrl.u32 %v3802, 7
        %v3804 = vsub.s32 0, %v3803
        %v3805 = vrot.slane %v3800, %v3804
        %v3811 = vunpack.c.l.b16 %v3796
        %v3812 = vunpack.c.l.b16 %v3797
        %v3813 = vunpack.c.l.b16 %v3798
        %v3814 = vunpack.c.l.b16 %v3799
        %v3815 = vpack.c.b16 %v3812, %v3811
        %v3816 = vpack.c.b16 %v3814, %v3813
        %v3820 = vsel %vm1287, %v3795, 0
        %3822 = vmatprep.subr.bf16.mxu0 0
        %3823 = vmatpush1.bf16.msra.mxu0 %v3815
        %3824 = vmatprep.subr.bf16.mxu0 0
        %3825 = vmatpush1.bf16.msra.mxu0 %v3816
        %3826 = vmatprep.subr.bf16.mxu0 0
        %3827 = vmatpush1.bf16.msra.mxu0 0
        %3828 = vmatprep.subr.bf16.mxu0 0
        %3829 = vmatpush1.bf16.msra.mxu0 0
        %3830 = vmatprep.subr.bf16.mxu0 0
        %3831 = vmatpush1.bf16.msra.mxu0 0
        %3832 = vmatprep.subr.bf16.mxu0 0
        %3833 = vmatpush1.bf16.msra.mxu0 0
        %3834 = vmatprep.subr.bf16.mxu0 0
        %3835 = vmatpush1.bf16.msra.mxu0 0
        %3836 = vmatprep.subr.bf16.mxu0 0
        %3837 = vmatpush1.bf16.msra.mxu0 0
        %3838 = vmatprep.subr.bf16.mxu0 0
        %3839 = vmatpush1.bf16.msra.mxu0 0
        %3840 = vmatprep.subr.bf16.mxu0 0
        %3841 = vmatpush1.bf16.msra.mxu0 0
        %3842 = vmatprep.subr.bf16.mxu0 0
        %3843 = vmatpush1.bf16.msra.mxu0 0
        %3844 = vmatprep.subr.bf16.mxu0 0
        %3845 = vmatpush1.bf16.msra.mxu0 0
        %3846 = vmatprep.subr.bf16.mxu0 0
        %3847 = vmatpush1.bf16.msra.mxu0 0
        %3848 = vmatprep.subr.bf16.mxu0 0
        %3849 = vmatpush1.bf16.msra.mxu0 0
        %3850 = vmatprep.subr.bf16.mxu0 0
        %3851 = vmatpush1.bf16.msra.mxu0 0
        %3852 = vmatprep.subr.bf16.mxu0 0
        %3853 = vmatpush1.bf16.msra.mxu0 0
        %3854 = vmatprep.mubr.bf16.mxu0 0
        %3855 = vmatmul.mubr.bf16.gmra.mrb[0].mxu0 %v3820
        %v3856 = vpop.f32.mrb[0].mxu0
        %v3857 = vadd.f32 %v3805, %v3856
        %v3858 = vpop.f32.mrb[0].mxu0
        %v3859 = vpop.f32.mrb[0].mxu0
        %v3860 = vpop.f32.mrb[0].mxu0
        %3861 = vdwg.mxu0
        %v3862 = vmul.f32 %v3857, 0.5
        %v3863 = vmul.f32 %v3857, 0.70710677
        %v3864 = verf.f32.pop %v3863
        %v3865 = vadd.f32 %v3864, 1.0
        %v3866 = vmul.f32 %v3862, %v3865
        %v3867 = vpack.c.bf16 %v3866, %v3866
        %v3868 = vld [vmem:[%s29] sm:$0xf]
        %v3869 = vld [vmem:[%s29 + $0x4] sm:$0xf]
        %v3870 = vld [vmem:[%s29 + $0x8] sm:$0xf]
        %v3871 = vld [vmem:[%s29 + $0xc] sm:$0xf]
        %v3872 = vld [vmem:[%s29 + $0x10] sm:$0xf]
        %v3873 = vld [vmem:[%s29 + $0x14] sm:$0xf]
        %v3874 = vld [vmem:[%s29 + $0x18] sm:$0xf]
        %v3875 = vld [vmem:[%s29 + $0x1c] sm:$0xf]
        %v3876 = vld [vmem:[#allocation17] sm:$0x1]
        %v3878 = vlaneseq
        %v3879 = vshrl.u32 %v3878, 7
        %v3880 = vsub.s32 0, %v3879
        %v3881 = vrot.slane %v3876, %v3880
        %v3891 = vunpack.c.l.b16 %v3868
        %v3892 = vunpack.c.l.b16 %v3869
        %v3893 = vunpack.c.l.b16 %v3870
        %v3894 = vunpack.c.l.b16 %v3871
        %v3895 = vunpack.c.l.b16 %v3872
        %v3896 = vunpack.c.l.b16 %v3873
        %v3897 = vunpack.c.l.b16 %v3874
        %v3898 = vunpack.c.l.b16 %v3875
        %v3899 = vpack.c.b16 %v3892, %v3891
        %v3900 = vpack.c.b16 %v3894, %v3893
        %v3901 = vpack.c.b16 %v3896, %v3895
        %v3902 = vpack.c.b16 %v3898, %v3897
        %vm3907 = vcmask 523264
        %v3909 = vsel %vm3907, %v3867, 0
        %3911 = vmatprep.subr.bf16.mxu0 0
        %3912 = vmatpush1.bf16.msra.mxu0 %v3899
        %3913 = vmatprep.subr.bf16.mxu0 0
        %3914 = vmatpush1.bf16.msra.mxu0 %v3900
        %3915 = vmatprep.subr.bf16.mxu0 0
        %3916 = vmatpush1.bf16.msra.mxu0 %v3901
        %3917 = vmatprep.subr.bf16.mxu0 0
        %3918 = vmatpush1.bf16.msra.mxu0 %v3902
        %3919 = vmatprep.subr.bf16.mxu0 0
        %3920 = vmatpush1.bf16.msra.mxu0 0
        %3921 = vmatprep.subr.bf16.mxu0 0
        %3922 = vmatpush1.bf16.msra.mxu0 0
        %3923 = vmatprep.subr.bf16.mxu0 0
        %3924 = vmatpush1.bf16.msra.mxu0 0
        %3925 = vmatprep.subr.bf16.mxu0 0
        %3926 = vmatpush1.bf16.msra.mxu0 0
        %3927 = vmatprep.subr.bf16.mxu0 0
        %3928 = vmatpush1.bf16.msra.mxu0 0
        %3929 = vmatprep.subr.bf16.mxu0 0
        %3930 = vmatpush1.bf16.msra.mxu0 0
        %3931 = vmatprep.subr.bf16.mxu0 0
        %3932 = vmatpush1.bf16.msra.mxu0 0
        %3933 = vmatprep.subr.bf16.mxu0 0
        %3934 = vmatpush1.bf16.msra.mxu0 0
        %3935 = vmatprep.subr.bf16.mxu0 0
        %3936 = vmatpush1.bf16.msra.mxu0 0
        %3937 = vmatprep.subr.bf16.mxu0 0
        %3938 = vmatpush1.bf16.msra.mxu0 0
        %3939 = vmatprep.subr.bf16.mxu0 0
        %3940 = vmatpush1.bf16.msra.mxu0 0
        %3941 = vmatprep.subr.bf16.mxu0 0
        %3942 = vmatpush1.bf16.msra.mxu0 0
        %3943 = vmatprep.mubr.bf16.mxu0 0
        %3944 = vmatmul.mubr.bf16.gmra.mrb[0].mxu0 %v3909
        %v3945 = vpop.f32.mrb[0].mxu0
        %v3946 = vadd.f32 %v3881, %v3945
        %v3947 = vpop.f32.mrb[0].mxu0
        %v3948 = vpop.f32.mrb[0].mxu0
        %v3949 = vpop.f32.mrb[0].mxu0
        %3950 = vdwg.mxu0
        %v3951 = vadd.f32 %v3946, %v3704
        %v3952 = vld [vmem:[#allocation19] sm:$0x1]
        %v3953 = vld [vmem:[#allocation20] sm:$0x1]
        %v3954 = vsel %vm1287, %v3951, 0.0
        %3955 = vadd.xlane.f32.xlu0 %v3954
        %v3956 = vpop.xlane.xlu0 %3955
        %v3957 = vmul.f32 %v3956, %v3680
        %v3958 = vsub.f32 %v3951, %v3957
        %v3959 = vmul.f32 %v3958, %v3958
        %v3960 = vsel %vm1287, %v3959, 0.0
        %3961 = vadd.xlane.f32.xlu0 %v3960
        %v3962 = vpop.xlane.xlu0 %3961
        %v3963 = vmul.f32 %v3962, %v3680
        %v3964 = vadd.f32 %v3963, 1e-12
        %v3965 = vrsqrt.pop %v3964
        %v3966 = vmul.f32 %v3958, %v3965
        %v3968 = vlaneseq
        %v3969 = vshrl.u32 %v3968, 7
        %v3970 = vsub.s32 0, %v3969
        %v3971 = vrot.slane %v3952, %v3970
        %v3973 = vmul.f32 %v3966, %v3971
        %v3975 = vlaneseq
        %v3976 = vshrl.u32 %v3975, 7
        %v3977 = vsub.s32 0, %v3976
        %v3978 = vrot.slane %v3953, %v3977
        %v3980 = vadd.f32 %v3973, %v3978
        %v3981 = vpack.c.bf16 %v3794, %v3794
        %v3982 = vld [vmem:[%s57] sm:$0xf]
        %v3983 = vld [vmem:[%s57 + $0x4] sm:$0xf]
        %v3984 = vld [vmem:[%s59] sm:$0x1]
        %v3986 = vlaneseq
        %v3987 = vshrl.u32 %v3986, 7
        %v3988 = vsub.s32 0, %v3987
        %v3989 = vrot.slane %v3984, %v3988
        %v3993 = vunpack.c.l.b16 %v3982
        %v3994 = vunpack.c.l.b16 %v3983
        %v3995 = vpack.c.b16 %v3994, %v3993
        %v3998 = vsel %vm1472, %v3981, 0
        %4000 = vmatprep.subr.bf16.mxu0 0
        %4001 = vmatpush1.bf16.msra.mxu0 %v3995
        %4002 = vmatprep.subr.bf16.mxu0 0
        %4003 = vmatpush1.bf16.msra.mxu0 0
        %4004 = vmatprep.subr.bf16.mxu0 0
        %4005 = vmatpush1.bf16.msra.mxu0 0
        %4006 = vmatprep.subr.bf16.mxu0 0
        %4007 = vmatpush1.bf16.msra.mxu0 0
        %4008 = vmatprep.subr.bf16.mxu0 0
        %4009 = vmatpush1.bf16.msra.mxu0 0
        %4010 = vmatprep.subr.bf16.mxu0 0
        %4011 = vmatpush1.bf16.msra.mxu0 0
        %4012 = vmatprep.subr.bf16.mxu0 0
        %4013 = vmatpush1.bf16.msra.mxu0 0
        %4014 = vmatprep.subr.bf16.mxu0 0
        %4015 = vmatpush1.bf16.msra.mxu0 0
        %4016 = vmatprep.subr.bf16.mxu0 0
        %4017 = vmatpush1.bf16.msra.mxu0 0
        %4018 = vmatprep.subr.bf16.mxu0 0
        %4019 = vmatpush1.bf16.msra.mxu0 0
        %4020 = vmatprep.subr.bf16.mxu0 0
        %4021 = vmatpush1.bf16.msra.mxu0 0
        %4022 = vmatprep.subr.bf16.mxu0 0
        %4023 = vmatpush1.bf16.msra.mxu0 0
        %4024 = vmatprep.subr.bf16.mxu0 0
        %4025 = vmatpush1.bf16.msra.mxu0 0
        %4026 = vmatprep.subr.bf16.mxu0 0
        %4027 = vmatpush1.bf16.msra.mxu0 0
        %4028 = vmatprep.subr.bf16.mxu0 0
        %4029 = vmatpush1.bf16.msra.mxu0 0
        %4030 = vmatprep.subr.bf16.mxu0 0
        %4031 = vmatpush1.bf16.msra.mxu0 0
        %4032 = vmatprep.mubr.bf16.mxu0 0
        %4033 = vmatmul.mubr.bf16.gmra.mrb[0].mxu0 %v3998
        %v4034 = vpop.f32.mrb[0].mxu0
        %v4035 = vadd.f32 %v3989, %v4034
        %v4036 = vpop.f32.mrb[0].mxu0
        %v4037 = vpop.f32.mrb[0].mxu0
        %v4038 = vpop.f32.mrb[0].mxu0
        %4039 = vdwg.mxu0
        %v4040 = vmul.f32 %v4035, 0.5
        %v4041 = vmul.f32 %v4035, 0.70710677
        %v4042 = verf.f32.pop %v4041
        %v4043 = vadd.f32 %v4042, 1.0
        %v4044 = vmul.f32 %v4040, %v4043
        %v4045 = vpack.c.bf16 %v4044, %v4044
        %v4046 = vld [vmem:[%s61] sm:$0xf]
        %v4047 = vld [vmem:[%s61 + $0x4] sm:$0xf]
        %v4048 = vld [vmem:[%s61 + $0x8] sm:$0xf]
        %v4049 = vld [vmem:[%s61 + $0xc] sm:$0xf]
        %v4050 = vld [vmem:[%s63] sm:$0x1]
        %v4052 = vlaneseq
        %v4053 = vshrl.u32 %v4052, 7
        %v4054 = vsub.s32 0, %v4053
        %v4055 = vrot.slane %v4050, %v4054
        %v4061 = vunpack.c.l.b16 %v4046
        %v4062 = vunpack.c.l.b16 %v4047
        %v4063 = vunpack.c.l.b16 %v4048
        %v4064 = vunpack.c.l.b16 %v4049
        %v4065 = vpack.c.b16 %v4062, %v4061
        %v4066 = vpack.c.b16 %v4064, %v4063
        %v4070 = vsel %vm1287, %v4045, 0
        %4072 = vmatprep.subr.bf16.mxu0 0
        %4073 = vmatpush1.bf16.msra.mxu0 %v4065
        %4074 = vmatprep.subr.bf16.mxu0 0
        %4075 = vmatpush1.bf16.msra.mxu0 %v4066
        %4076 = vmatprep.subr.bf16.mxu0 0
        %4077 = vmatpush1.bf16.msra.mxu0 0
        %4078 = vmatprep.subr.bf16.mxu0 0
        %4079 = vmatpush1.bf16.msra.mxu0 0
        %4080 = vmatprep.subr.bf16.mxu0 0
        %4081 = vmatpush1.bf16.msra.mxu0 0
        %4082 = vmatprep.subr.bf16.mxu0 0
        %4083 = vmatpush1.bf16.msra.mxu0 0
        %4084 = vmatprep.subr.bf16.mxu0 0
        %4085 = vmatpush1.bf16.msra.mxu0 0
        %4086 = vmatprep.subr.bf16.mxu0 0
        %4087 = vmatpush1.bf16.msra.mxu0 0
        %4088 = vmatprep.subr.bf16.mxu0 0
        %4089 = vmatpush1.bf16.msra.mxu0 0
        %4090 = vmatprep.subr.bf16.mxu0 0
        %4091 = vmatpush1.bf16.msra.mxu0 0
        %4092 = vmatprep.subr.bf16.mxu0 0
        %4093 = vmatpush1.bf16.msra.mxu0 0
        %4094 = vmatprep.subr.bf16.mxu0 0
        %4095 = vmatpush1.bf16.msra.mxu0 0
        %4096 = vmatprep.subr.bf16.mxu0 0
        %4097 = vmatpush1.bf16.msra.mxu0 0
        %4098 = vmatprep.subr.bf16.mxu0 0
        %4099 = vmatpush1.bf16.msra.mxu0 0
        %4100 = vmatprep.subr.bf16.mxu0 0
        %4101 = vmatpush1.bf16.msra.mxu0 0
        %4102 = vmatprep.subr.bf16.mxu0 0
        %4103 = vmatpush1.bf16.msra.mxu0 0
        %4104 = vmatprep.mubr.bf16.mxu0 0
        %4105 = vmatmul.mubr.bf16.gmra.mrb[0].mxu0 %v4070
        %v4106 = vpop.f32.mrb[0].mxu0
        %v4107 = vadd.f32 %v4055, %v4106
        %v4108 = vpop.f32.mrb[0].mxu0
        %v4109 = vpop.f32.mrb[0].mxu0
        %v4110 = vpop.f32.mrb[0].mxu0
        %4111 = vdwg.mxu0
        %v4112 = vadd.f32 %v4107, %v3794
        %v4113 = vld [vmem:[%s65] sm:$0x1]
        %v4114 = vld [vmem:[%s67] sm:$0x1]
        %v4115 = vsel %vm1472, %v4112, 0.0
        %4116 = vadd.xlane.f32.xlu0 %v4115
        %v4117 = vpop.xlane.xlu0 %4116
        %v4118 = vmul.f32 %v4117, %v3770
        %v4119 = vsub.f32 %v4112, %v4118
        %v4120 = vmul.f32 %v4119, %v4119
        %v4121 = vsel %vm1472, %v4120, 0.0
        %4122 = vadd.xlane.f32.xlu0 %v4121
        %v4123 = vpop.xlane.xlu0 %4122
        %v4124 = vmul.f32 %v4123, %v3770
        %v4125 = vadd.f32 %v4124, 1e-12
        %v4126 = vrsqrt.pop %v4125
        %v4127 = vmul.f32 %v4119, %v4126
        %v4129 = vlaneseq
        %v4130 = vshrl.u32 %v4129, 7
        %v4131 = vsub.s32 0, %v4130
        %v4132 = vrot.slane %v4113, %v4131
        %v4134 = vmul.f32 %v4127, %v4132
        %v4136 = vlaneseq
        %v4137 = vshrl.u32 %v4136, 7
        %v4138 = vsub.s32 0, %v4137
        %v4139 = vrot.slane %v4114, %v4138
        %v4141 = vadd.f32 %v4134, %v4139
        %v4142 = vpack.c.bf16 %v3980, %v3980
        %vm4143 = vcmask 257024
        %4144 = vst.msk [vmem:[%s1251] sm:$0xf] %vm4143, %v4142
        %v4145 = vpack.c.bf16 %v4141, %v4141
        %vm4146 = vcmask 125952
        %4147 = vst.msk [vmem:[%s1258] sm:$0xf] %vm4146, %v4145
        %s4148 = sand.u32 %s832, 1
        %s4149 = scalar_lea.sflag [#allocation4], %s4148
        %s4150 = sand.u32 %s832, 1
        %s4151 = smul.addr %s4150, 4
        %s4152 = scalar_lea.vmem [#allocation22], %s4151
        %s4153 = sand.u32 %s858, 1
        %s4154 = scalar_lea.sflag [#allocation24], %s4153
        %s4155 = sand.u32 %s858, 1
        %s4156 = smul.addr %s4155, 4
        %s4157 = scalar_lea.vmem [#allocation23], %s4156
        // Predicated region
        $region205: #{tpu_custom_call.1} parent=155 // pred_check
          %p4158 = pneg %p842
        $region206: #{tpu_custom_call.1} parent=155 // pred_check_branch
          %4160 = sbr.rel (%p4158) target = $region208
        $region207: #{tpu_custom_call.1} parent=155 // pred_region
          %s4162 = ssub.s32 64, 64
          %4163 = vsyncadd %s4149, %s4162
          %s4164 = smul.addr %s100, 64
          %s4165 = scalar_lea.hbm %s69, %s4164
          %s4167 = sshll.u32 %s4152, 4
          %s4168 = int_to_ptr.vmem [resolvable:$true] %s4167
          %4170 = dma.vmem_to_hbm [thread:$0]  %s4168, 64, %s4165, %s4149
        $region208: #{tpu_custom_call.1} parent=155 // pred_fallthru
          _
        // Predicated region
        $region209: #{tpu_custom_call.1} parent=155 // pred_check
          %p4171 = pneg %p868
        $region210: #{tpu_custom_call.1} parent=155 // pred_check_branch
          %4173 = sbr.rel (%p4171) target = $region212
        $region211: #{tpu_custom_call.1} parent=155 // pred_region
          %s4175 = ssub.s32 64, 64
          %4176 = vsyncadd %s4154, %s4175
          %s4177 = smul.addr %s100, 64
          %s4178 = scalar_lea.hbm %s71, %s4177
          %s4180 = sshll.u32 %s4157, 4
          %s4181 = int_to_ptr.vmem [resolvable:$true] %s4180
          %4183 = dma.vmem_to_hbm [thread:$0]  %s4181, 64, %s4178, %s4154
        $region212: #{tpu_custom_call.1} parent=155 // pred_fallthru
          _
      $region156: #{tpu_custom_call.1} parent=5 // pred_fallthru
        _
      %p4184 = scmp.le.s32.totalorder 2, %s95
      // Predicated region
      $region213: #{tpu_custom_call.1} parent=5 // pred_check
        %p4185 = pneg %p4184
      $region214: #{tpu_custom_call.1} parent=5 // pred_check_branch
        %4187 = sbr.rel (%p4185) target = $region216
      $region215: #{tpu_custom_call.1} parent=5 // pred_region
        %s4188 = ssub.s32 %s95, 2
        // Predicated region
        $region217: #{tpu_custom_call.1} parent=215 // pred_check
          %p4189 = pneg %p848
        $region218: #{tpu_custom_call.1} parent=215 // pred_check_branch
          %4191 = sbr.rel (%p4189) target = $region220
        $region219: #{tpu_custom_call.1} parent=215 // pred_region
          %s4192 = sand.u32 %s833, 1
          %s4193 = scalar_lea.sflag [#allocation4], %s4192
          %s4194 = sand.u32 %s833, 1
          %s4195 = smul.addr %s4194, 4
          %s4196 = scalar_lea.vmem [#allocation22], %s4195
          %4197 = dma.done %s4193, 64
        $region220: #{tpu_custom_call.1} parent=215 // pred_fallthru
          _
        // Predicated region
        $region221: #{tpu_custom_call.1} parent=215 // pred_check
          %p4198 = pneg %p874
        $region222: #{tpu_custom_call.1} parent=215 // pred_check_branch
          %4200 = sbr.rel (%p4198) target = $region224
        $region223: #{tpu_custom_call.1} parent=215 // pred_region
          %s4201 = sand.u32 %s859, 1
          %s4202 = scalar_lea.sflag [#allocation24], %s4201
          %s4203 = sand.u32 %s859, 1
          %s4204 = smul.addr %s4203, 4
          %s4205 = scalar_lea.vmem [#allocation23], %s4204
          %4206 = dma.done %s4202, 64
        $region224: #{tpu_custom_call.1} parent=215 // pred_fallthru
          _
      $region216: #{tpu_custom_call.1} parent=5 // pred_fallthru
        _
    $region6: #{tpu_custom_call.1} parent=1 // loop_footer
      %s99 = sadd.s32 1, %s95
    $region7: #{tpu_custom_call.1} parent=1 // loop_footer_branch
      %94 = sbr.rel target = $region3
    $region8: #{tpu_custom_call.1} parent=1 // loop_exit
      _
    %4207 = vsyncpa [#allocation3], 1
    %s4208 = scalar_lea.sflag [#allocation3], 1
    %4209 = vsyncpa %s4208, 1
    %4210 = vsyncpa [#allocation6], 1
    %s4211 = scalar_lea.sflag [#allocation6], 1
    %4212 = vsyncpa %s4211, 1
    %4213 = vsyncpa [#allocation9], 1
    %4214 = vsyncpa [#allocation12], 1
    %4215 = vsyncpa [#allocation15], 1
    %4216 = vsyncpa [#allocation18], 1
    %4217 = vsyncpa [#allocation21], 1
    %4218 = vsyncpa [#allocation4], 1
    %s4219 = scalar_lea.sflag [#allocation4], 1
    %4220 = vsyncpa %s4219, 1
    %4221 = vsyncpa [#allocation24], 1
    %s4222 = scalar_lea.sflag [#allocation24], 1
    %4223 = vsyncpa %s4222, 1

</llo_original>
